<compile_context>
chip_gen: v6e
topology: v6e:2x2x1
jax: 0.10.0
libtpu: 0.0.40
codegen_flags: <defaults>
</compile_context>

<pallas_src>
import jax
import jax.numpy as jnp
from jax.experimental import pallas as pl
from jax.experimental.pallas import tpu as pltpu


# ------------------------- fused BasicBlock kernel --------------------------

def _make_block_kernel(H, W, Cin, Cout, stride, equal_in_out):
    """Build the fused BasicBlock kernel (one image per grid step)."""
    Ho, Wo = H // stride, W // stride
    MXU = jnp.bfloat16  # MXU operand dtype (accumulation stays f32)

    def _tap(d):
        # stride-2 tap d in {0,1,2} -> (parity, window start) into a
        # zero-padded (Ho+1)-long parity plane. start 0 == offset -1 (uses the
        # leading zero row), start 1 == offset 0.
        return (0, 1) if d == 1 else ((1, 0) if d == 0 else (1, 1))

    def kernel(*refs):
        it = iter(refs)
        x_ref = next(it)
        s1_ref, b1_ref, w1_ref = next(it), next(it), next(it)
        s2_ref, b2_ref, w2_ref = next(it), next(it), next(it)
        ws_ref = None if equal_in_out else next(it)
        o_ref = next(it)
        pad1_ref = next(it)
        pad2_ref = next(it)

        s1, b1 = s1_ref[...], b1_ref[...]          # (1, Cin)  f32
        s2, b2 = s2_ref[...], b2_ref[...]          # (1, Cout) f32

        # ---- BN1 + ReLU written into zero-padded VMEM plane(s) -------------
        pad1_ref[...] = jnp.zeros(pad1_ref.shape, pad1_ref.dtype)
        if stride == 1:
            xf = x_ref[0].reshape(H * W, Cin)
            act1 = jnp.maximum(xf * s1 + b1, 0.0)
            pad1_ref[pl.ds(1, H), pl.ds(1, W), :] = act1.reshape(H, W, Cin)
            act1_strided = act1           # (only used by a 1x1 shortcut)
        else:
            act1_strided = None
            for p in range(4):            # parity planes p = 2*ph + pw
                xp = x_ref[0, pl.ds(p * Ho, Ho), :, :].reshape(Ho * Wo, Cin)
                a = jnp.maximum(xp * s1 + b1, 0.0)
                pad1_ref[p, pl.ds(1, Ho), pl.ds(1, Wo), :] = \
                    a.reshape(Ho, Wo, Cin)
                if p == 0:                # (even,even) == act1[::2, ::2]
                    act1_strided = a

        # ---- conv1: 9 fused tap-matmuls (bf16 MXU, f32 accumulation) -------
        acc1 = None
        for dh in range(3):
            for dw in range(3):
                if stride == 1:
                    patch = pad1_ref[pl.ds(dh, Ho), pl.ds(dw, Wo), :]
                else:
                    ph, rs = _tap(dh)
                    pw, cs = _tap(dw)
                    patch = pad1_ref[2 * ph + pw,
                                     pl.ds(rs, Ho), pl.ds(cs, Wo), :]
                patch = patch.reshape(Ho * Wo, Cin).astype(MXU)
                contrib = jnp.dot(patch, w1_ref[3 * dh + dw],
                                  preferred_element_type=jnp.float32)
                acc1 = contrib if acc1 is None else acc1 + contrib

        # ---- BN2 + ReLU (dropRate == 0.0 -> dropout is a no-op) ------------
        act2 = jnp.maximum(acc1 * s2 + b2, 0.0)              # (Ho*Wo, Cout)
        pad2_ref[...] = jnp.zeros(pad2_ref.shape, pad2_ref.dtype)
        pad2_ref[pl.ds(1, Ho), pl.ds(1, Wo), :] = act2.reshape(Ho, Wo, Cout)

        # ---- conv2 accumulator initialized with the shortcut (fused add) ---
        if equal_in_out:
            acc2 = x_ref[0].reshape(H * W, Cin)              # identity skip
        else:
            acc2 = jnp.dot(act1_strided.astype(MXU), ws_ref[...],
                           preferred_element_type=jnp.float32)  # 1x1 conv skip

        for dh in range(3):
            for dw in range(3):
                patch = pad2_ref[pl.ds(dh, Ho), pl.ds(dw, Wo), :]
                patch = patch.reshape(Ho * Wo, Cout).astype(MXU)
                acc2 = acc2 + jnp.dot(patch, w2_ref[3 * dh + dw],
                                      preferred_element_type=jnp.float32)

        o_ref[0] = acc2.astype(o_ref.dtype)

    return kernel


# ------------------------------ block wrapper --------------------------------

def basic_block_forward(x_nhwc, p):
    """One WRN BasicBlock as a single fused pallas_call, grid over batch."""
    stride, equal = p["stride"], p["equal_in_out"]
    N, H, W, Cin = x_nhwc.shape
    Cout = p["conv1_w"].shape[-1]
    assert stride == 1 or (H % 2 == 0 and W % 2 == 0)
    assert (not equal) or stride == 1
    Ho, Wo = H // stride, W // stride

    # operands ---------------------------------------------------------------
    if stride == 1:
        x_in = x_nhwc                                        # (N, H, W, Cin)
    else:
        # exact 4-way spatial parity partition of x, stacked along H:
        # rows [p*Ho, (p+1)*Ho) hold parity p = 2*ph + pw.
        x_in = jnp.concatenate(
            [x_nhwc[:, ph::2, pw::2, :] for ph in (0, 1) for pw in (0, 1)],
            axis=1)                                          # (N, 4Ho, Wo, Cin)

    w1 = p["conv1_w"].reshape(9, Cin, Cout).astype(jnp.bfloat16)
    w2 = p["conv2_w"].reshape(9, Cout, Cout).astype(jnp.bfloat16)
    s1 = p["bn1_scale"].reshape(1, Cin).astype(jnp.float32)
    b1 = p["bn1_bias"].reshape(1, Cin).astype(jnp.float32)
    s2 = p["bn2_scale"].reshape(1, Cout).astype(jnp.float32)
    b2 = p["bn2_bias"].reshape(1, Cout).astype(jnp.float32)

    operands = [x_in, s1, b1, w1, s2, b2, w2]
    if not equal:
        operands.append(p["short_w"].astype(jnp.bfloat16))   # (Cin, Cout)

    # BlockSpecs ---------------------------------------------------------------
    def batched(arr):                      # tiled over the batch grid axis
        nd = arr.ndim
        return pl.BlockSpec((1,) + arr.shape[1:],
                            lambda n, _nd=nd: (n,) + (0,) * (_nd - 1))

    def resident(arr):                     # constant index_map -> stays in VMEM
        nd = arr.ndim
        return pl.BlockSpec(arr.shape, lambda n, _z=(0,) * nd: _z)

    in_specs = [batched(x_in)] + [resident(a) for a in operands[1:]]
    out_spec = pl.BlockSpec((1, Ho * Wo, Cout), lambda n: (n, 0, 0))

    if stride == 1:
        pad1 = pltpu.VMEM((H + 2, W + 2, Cin), jnp.float32)
    else:
        pad1 = pltpu.VMEM((4, Ho + 1, Wo + 1, Cin), jnp.float32)
    pad2 = pltpu.VMEM((Ho + 2, Wo + 2, Cout), jnp.float32)

    out = pl.pallas_call(
        _make_block_kernel(H, W, Cin, Cout, stride, equal),
        out_shape=jax.ShapeDtypeStruct((N, Ho * Wo, Cout), jnp.float32),
        grid_spec=pltpu.PrefetchScalarGridSpec(
            num_scalar_prefetch=0,
            grid=(N,),
            in_specs=in_specs,
            out_specs=out_spec,
            scratch_shapes=[pad1, pad2]),
        compiler_params=pltpu.CompilerParams(
            dimension_semantics=("parallel",),        # 2 TCs on v7x split batch
            vmem_limit_bytes=32 * 1024 * 1024),
    )(*operands)
    return out.reshape(N, Ho, Wo, Cout)


def network_block_forward(x_nchw, params):
    x = jnp.transpose(x_nchw, (0, 2, 3, 1)).astype(jnp.float32)  # NCHW -> NHWC
    for p in params:
        x = basic_block_forward(x, p)
    return jnp.transpose(x, (0, 3, 1, 2))                        # NHWC -> NCHW


# ----------------------------- parameter setup -------------------------------

def make_bn_params(key, c):
    k1, k2, k3, k4 = jax.random.split(key, 4)
    gamma = jax.random.uniform(k1, (c,), jnp.float32, 0.5, 1.5)
    beta = jax.random.normal(k2, (c,), jnp.float32) * 0.1
    mean = jax.random.normal(k3, (c,), jnp.float32) * 0.1
    var = jax.random.uniform(k4, (c,), jnp.float32, 0.5, 1.5)
    scale = gamma / jnp.sqrt(var + 1e-5)
    bias = beta - mean * scale
    return scale, bias


def make_network_block_params(key, nb_layers, in_planes, out_planes, stride):
    params = []
    for i in range(nb_layers):
        cin = in_planes if i == 0 else out_planes
        s = stride if i == 0 else 1
        key, k0, k1, k2, k3, k4 = jax.random.split(key, 6)
        bn1_scale, bn1_bias = make_bn_params(k0, cin)
        conv1_w = jax.random.normal(k1, (3, 3, cin, out_planes), jnp.float32) \
            * (2.0 / (9 * out_planes)) ** 0.5
        bn2_scale, bn2_bias = make_bn_params(k2, out_planes)
        conv2_w = jax.random.normal(k3, (3, 3, out_planes, out_planes),
                                    jnp.float32) * (2.0 / (9 * out_planes)) ** 0.5
        p = dict(equal_in_out=(cin == out_planes), stride=s,
                 bn1_scale=bn1_scale, bn1_bias=bn1_bias, conv1_w=conv1_w,
                 bn2_scale=bn2_scale, bn2_bias=bn2_bias, conv2_w=conv2_w)
        if cin != out_planes:
            p["short_w"] = jax.random.normal(k4, (cin, out_planes), jnp.float32) \
                * (2.0 / out_planes) ** 0.5
        params.append(p)
    return params


# ------------------------------ pure-JAX reference ---------------------------

def ref_forward(x_nchw, params):
    dn = ("NHWC", "HWIO", "NHWC")
    x = jnp.transpose(x_nchw, (0, 2, 3, 1))
    for p in params:
        act1 = jnp.maximum(x * p["bn1_scale"] + p["bn1_bias"], 0.0)
        out = jax.lax.conv_general_dilated(
            act1, p["conv1_w"], (p["stride"],) * 2, [(1, 1), (1, 1)],
            dimension_numbers=dn, precision=jax.lax.Precision.HIGHEST)
        out = jnp.maximum(out * p["bn2_scale"] + p["bn2_bias"], 0.0)
        out = jax.lax.conv_general_dilated(
            out, p["conv2_w"], (1, 1), [(1, 1), (1, 1)],
            dimension_numbers=dn, precision=jax.lax.Precision.HIGHEST)
        if p["equal_in_out"]:
            x = x + out
        else:
            sc = jax.lax.conv_general_dilated(
                act1, p["short_w"].reshape(1, 1, *p["short_w"].shape),
                (p["stride"],) * 2, [(0, 0), (0, 0)],
                dimension_numbers=dn, precision=jax.lax.Precision.HIGHEST)
            x = sc + out
    return jnp.transpose(x, (0, 3, 1, 2))


# ----------------------------------- main -----------------------------------

if __name__ == "__main__":
    key = jax.random.PRNGKey(0)
    kx, kp = jax.random.split(key)

    # NetworkBlock(nb_layers=2, in_planes=4, out_planes=8, block=BasicBlock,
    #              stride=2, dropRate=0.0)
    nb_layers, in_planes, out_planes, stride = 2, 4, 8, 2

    x = jax.random.normal(kx, (2, in_planes, 16, 16), jnp.float32)  # NCHW
    params = make_network_block_params(kp, nb_layers, in_planes, out_planes,
                                       stride)

    fwd = jax.jit(lambda inp: network_block_forward(inp, params))
    out = jax.block_until_ready(fwd(x))

    ref = jax.block_until_ready(
        jax.jit(lambda inp: ref_forward(inp, params))(x))

    assert out.shape == (2, out_planes, 8, 8), out.shape
    # bf16 MXU operands (per perf guidance) vs an f32 Precision.HIGHEST
    # reference -> allow a few-percent tolerance.
    assert jnp.allclose(out, ref, atol=3e-2, rtol=3e-2), \
        float(jnp.max(jnp.abs(out - ref)))

    print("KERNEL_OK")
</pallas_src>

<mosaic_0001>
module attributes {stable_mosaic.version = 11 : i64} {
  func.func @kernel(%arg0: i32, %arg1: memref<1x8x8x8xf32, #tpu.memory_space<vmem>>, %arg2: memref<1x8xf32, #tpu.memory_space<vmem>>, %arg3: memref<1x8xf32, #tpu.memory_space<vmem>>, %arg4: memref<9x8x8xbf16, #tpu.memory_space<vmem>>, %arg5: memref<1x8xf32, #tpu.memory_space<vmem>>, %arg6: memref<1x8xf32, #tpu.memory_space<vmem>>, %arg7: memref<9x8x8xbf16, #tpu.memory_space<vmem>>, %arg8: memref<1x64x8xf32, #tpu.memory_space<vmem>>, %arg9: memref<10x10x8xf32, #tpu.memory_space<vmem>>, %arg10: memref<10x10x8xf32, #tpu.memory_space<vmem>>) attributes {dimension_semantics = [#tpu.dimension_semantics<parallel>], iteration_bounds = array<i64: 2>, scalar_prefetch = 0 : i64, scratch_operands = 2 : i64, tpu.core_type = #tpu.core_type<tc>, window_params = [{transform_indices = @transform_0, window_bounds = array<i64: 1, 8, 8, 8>}, {pipeline_mode = #tpu.pipeline_mode<synchronous>, transform_indices = @transform_1, window_bounds = array<i64: 1, 8>}, {pipeline_mode = #tpu.pipeline_mode<synchronous>, transform_indices = @transform_2, window_bounds = array<i64: 1, 8>}, {pipeline_mode = #tpu.pipeline_mode<synchronous>, transform_indices = @transform_3, window_bounds = array<i64: 9, 8, 8>}, {pipeline_mode = #tpu.pipeline_mode<synchronous>, transform_indices = @transform_4, window_bounds = array<i64: 1, 8>}, {pipeline_mode = #tpu.pipeline_mode<synchronous>, transform_indices = @transform_5, window_bounds = array<i64: 1, 8>}, {pipeline_mode = #tpu.pipeline_mode<synchronous>, transform_indices = @transform_6, window_bounds = array<i64: 9, 8, 8>}, {transform_indices = @transform_7, window_bounds = array<i64: 1, 64, 8>}]} {
    %c0 = arith.constant 0 : index
    %c0_0 = arith.constant 0 : index
    %0 = vector.load %arg2[%c0, %c0_0] : memref<1x8xf32, #tpu.memory_space<vmem>>, vector<1x8xf32>
    %c0_1 = arith.constant 0 : index
    %c0_2 = arith.constant 0 : index
    %1 = vector.load %arg3[%c0_1, %c0_2] : memref<1x8xf32, #tpu.memory_space<vmem>>, vector<1x8xf32>
    %c0_3 = arith.constant 0 : index
    %c0_4 = arith.constant 0 : index
    %2 = vector.load %arg5[%c0_3, %c0_4] : memref<1x8xf32, #tpu.memory_space<vmem>>, vector<1x8xf32>
    %c0_5 = arith.constant 0 : index
    %c0_6 = arith.constant 0 : index
    %3 = vector.load %arg6[%c0_5, %c0_6] : memref<1x8xf32, #tpu.memory_space<vmem>>, vector<1x8xf32>
    %cst = arith.constant 0.000000e+00 : f32
    %4 = vector.broadcast %cst : f32 to vector<10x10x8xf32>
    %c0_7 = arith.constant 0 : index
    %c0_8 = arith.constant 0 : index
    %c0_9 = arith.constant 0 : index
    %5 = vector.load %arg9[%c0_7, %c0_8, %c0_9] : memref<10x10x8xf32, #tpu.memory_space<vmem>>, vector<10x10x8xf32>
    tpu.vector_store %arg9[%c0_7, %c0_8, %c0_9], %4 {strides = array<i32>} : memref<10x10x8xf32, #tpu.memory_space<vmem>>, vector<10x10x8xf32>,
    %c0_10 = arith.constant 0 : index
    %c0_11 = arith.constant 0 : index
    %c0_12 = arith.constant 0 : index
    %c0_13 = arith.constant 0 : index
    %6 = vector.load %arg1[%c0_10, %c0_11, %c0_12, %c0_13] : memref<1x8x8x8xf32, #tpu.memory_space<vmem>>, vector<1x8x8x8xf32>
    %7 = vector.shape_cast %6 : vector<1x8x8x8xf32> to vector<8x8x8xf32>
    %8 = vector.shape_cast %7 : vector<8x8x8xf32> to vector<64x8xf32>
    %9 = vector.broadcast %0 : vector<1x8xf32> to vector<64x8xf32>
    %10 = arith.mulf %8, %9 : vector<64x8xf32>
    %11 = vector.broadcast %1 : vector<1x8xf32> to vector<64x8xf32>
    %12 = arith.addf %10, %11 : vector<64x8xf32>
    %cst_14 = arith.constant 0.000000e+00 : f32
    %13 = vector.broadcast %cst_14 : f32 to vector<64x8xf32>
    %14 = arith.maximumf %12, %13 : vector<64x8xf32>
    %15 = vector.shape_cast %14 : vector<64x8xf32> to vector<8x8x8xf32>
    %c1 = arith.constant 1 : index
    %c1_15 = arith.constant 1 : index
    %c0_16 = arith.constant 0 : index
    %16 = vector.load %arg9[%c1, %c1_15, %c0_16] : memref<10x10x8xf32, #tpu.memory_space<vmem>>, vector<8x8x8xf32>
    tpu.vector_store %arg9[%c1, %c1_15, %c0_16], %15 {strides = array<i32>} : memref<10x10x8xf32, #tpu.memory_space<vmem>>, vector<8x8x8xf32>,
    %c0_17 = arith.constant 0 : index
    %c0_18 = arith.constant 0 : index
    %c0_19 = arith.constant 0 : index
    %17 = vector.load %arg9[%c0_17, %c0_18, %c0_19] : memref<10x10x8xf32, #tpu.memory_space<vmem>>, vector<8x8x8xf32>
    %18 = vector.shape_cast %17 : vector<8x8x8xf32> to vector<64x8xf32>
    %19 = arith.truncf %18 : vector<64x8xf32> to vector<64x8xbf16>
    %c0_20 = arith.constant 0 : index
    %c0_21 = arith.constant 0 : index
    %c0_22 = arith.constant 0 : index
    %20 = vector.load %arg4[%c0_20, %c0_21, %c0_22] : memref<9x8x8xbf16, #tpu.memory_space<vmem>>, vector<1x8x8xbf16>
    %21 = vector.shape_cast %20 : vector<1x8x8xbf16> to vector<8x8xbf16>
    %cst_23 = arith.constant dense<0.000000e+00> : vector<64x8xf32>
    %22 = tpu.matmul %19, %21, %cst_23 {dimension_numbers = #tpu.dot_dimension_numbers<[1], [0], [0], [1], [0, 0, 1, 1], [], []>} : vector<64x8xbf16>, vector<8x8xbf16>, vector<64x8xf32> -> vector<64x8xf32>
    %c0_24 = arith.constant 0 : index
    %c1_25 = arith.constant 1 : index
    %c0_26 = arith.constant 0 : index
    %23 = vector.load %arg9[%c0_24, %c1_25, %c0_26] : memref<10x10x8xf32, #tpu.memory_space<vmem>>, vector<8x8x8xf32>
    %24 = vector.shape_cast %23 : vector<8x8x8xf32> to vector<64x8xf32>
    %25 = arith.truncf %24 : vector<64x8xf32> to vector<64x8xbf16>
    %c1_27 = arith.constant 1 : index
    %c0_28 = arith.constant 0 : index
    %c0_29 = arith.constant 0 : index
    %26 = vector.load %arg4[%c1_27, %c0_28, %c0_29] : memref<9x8x8xbf16, #tpu.memory_space<vmem>>, vector<1x8x8xbf16>
    %27 = vector.shape_cast %26 : vector<1x8x8xbf16> to vector<8x8xbf16>
    %cst_30 = arith.constant dense<0.000000e+00> : vector<64x8xf32>
    %28 = tpu.matmul %25, %27, %cst_30 {dimension_numbers = #tpu.dot_dimension_numbers<[1], [0], [0], [1], [0, 0, 1, 1], [], []>} : vector<64x8xbf16>, vector<8x8xbf16>, vector<64x8xf32> -> vector<64x8xf32>
    %29 = arith.addf %22, %28 : vector<64x8xf32>
    %c0_31 = arith.constant 0 : index
    %c2 = arith.constant 2 : index
    %c0_32 = arith.constant 0 : index
    %30 = vector.load %arg9[%c0_31, %c2, %c0_32] : memref<10x10x8xf32, #tpu.memory_space<vmem>>, vector<8x8x8xf32>
    %31 = vector.shape_cast %30 : vector<8x8x8xf32> to vector<64x8xf32>
    %32 = arith.truncf %31 : vector<64x8xf32> to vector<64x8xbf16>
    %c2_33 = arith.constant 2 : index
    %c0_34 = arith.constant 0 : index
    %c0_35 = arith.constant 0 : index
    %33 = vector.load %arg4[%c2_33, %c0_34, %c0_35] : memref<9x8x8xbf16, #tpu.memory_space<vmem>>, vector<1x8x8xbf16>
    %34 = vector.shape_cast %33 : vector<1x8x8xbf16> to vector<8x8xbf16>
    %cst_36 = arith.constant dense<0.000000e+00> : vector<64x8xf32>
    %35 = tpu.matmul %32, %34, %cst_36 {dimension_numbers = #tpu.dot_dimension_numbers<[1], [0], [0], [1], [0, 0, 1, 1], [], []>} : vector<64x8xbf16>, vector<8x8xbf16>, vector<64x8xf32> -> vector<64x8xf32>
    %36 = arith.addf %29, %35 : vector<64x8xf32>
    %c1_37 = arith.constant 1 : index
    %c0_38 = arith.constant 0 : index
    %c0_39 = arith.constant 0 : index
    %37 = vector.load %arg9[%c1_37, %c0_38, %c0_39] : memref<10x10x8xf32, #tpu.memory_space<vmem>>, vector<8x8x8xf32>
    %38 = vector.shape_cast %37 : vector<8x8x8xf32> to vector<64x8xf32>
    %39 = arith.truncf %38 : vector<64x8xf32> to vector<64x8xbf16>
    %c3 = arith.constant 3 : index
    %c0_40 = arith.constant 0 : index
    %c0_41 = arith.constant 0 : index
    %40 = vector.load %arg4[%c3, %c0_40, %c0_41] : memref<9x8x8xbf16, #tpu.memory_space<vmem>>, vector<1x8x8xbf16>
    %41 = vector.shape_cast %40 : vector<1x8x8xbf16> to vector<8x8xbf16>
    %cst_42 = arith.constant dense<0.000000e+00> : vector<64x8xf32>
    %42 = tpu.matmul %39, %41, %cst_42 {dimension_numbers = #tpu.dot_dimension_numbers<[1], [0], [0], [1], [0, 0, 1, 1], [], []>} : vector<64x8xbf16>, vector<8x8xbf16>, vector<64x8xf32> -> vector<64x8xf32>
    %43 = arith.addf %36, %42 : vector<64x8xf32>
    %c1_43 = arith.constant 1 : index
    %c1_44 = arith.constant 1 : index
    %c0_45 = arith.constant 0 : index
    %44 = vector.load %arg9[%c1_43, %c1_44, %c0_45] : memref<10x10x8xf32, #tpu.memory_space<vmem>>, vector<8x8x8xf32>
    %45 = vector.shape_cast %44 : vector<8x8x8xf32> to vector<64x8xf32>
    %46 = arith.truncf %45 : vector<64x8xf32> to vector<64x8xbf16>
    %c4 = arith.constant 4 : index
    %c0_46 = arith.constant 0 : index
    %c0_47 = arith.constant 0 : index
    %47 = vector.load %arg4[%c4, %c0_46, %c0_47] : memref<9x8x8xbf16, #tpu.memory_space<vmem>>, vector<1x8x8xbf16>
    %48 = vector.shape_cast %47 : vector<1x8x8xbf16> to vector<8x8xbf16>
    %cst_48 = arith.constant dense<0.000000e+00> : vector<64x8xf32>
    %49 = tpu.matmul %46, %48, %cst_48 {dimension_numbers = #tpu.dot_dimension_numbers<[1], [0], [0], [1], [0, 0, 1, 1], [], []>} : vector<64x8xbf16>, vector<8x8xbf16>, vector<64x8xf32> -> vector<64x8xf32>
    %50 = arith.addf %43, %49 : vector<64x8xf32>
    %c1_49 = arith.constant 1 : index
    %c2_50 = arith.constant 2 : index
    %c0_51 = arith.constant 0 : index
    %51 = vector.load %arg9[%c1_49, %c2_50, %c0_51] : memref<10x10x8xf32, #tpu.memory_space<vmem>>, vector<8x8x8xf32>
    %52 = vector.shape_cast %51 : vector<8x8x8xf32> to vector<64x8xf32>
    %53 = arith.truncf %52 : vector<64x8xf32> to vector<64x8xbf16>
    %c5 = arith.constant 5 : index
    %c0_52 = arith.constant 0 : index
    %c0_53 = arith.constant 0 : index
    %54 = vector.load %arg4[%c5, %c0_52, %c0_53] : memref<9x8x8xbf16, #tpu.memory_space<vmem>>, vector<1x8x8xbf16>
    %55 = vector.shape_cast %54 : vector<1x8x8xbf16> to vector<8x8xbf16>
    %cst_54 = arith.constant dense<0.000000e+00> : vector<64x8xf32>
    %56 = tpu.matmul %53, %55, %cst_54 {dimension_numbers = #tpu.dot_dimension_numbers<[1], [0], [0], [1], [0, 0, 1, 1], [], []>} : vector<64x8xbf16>, vector<8x8xbf16>, vector<64x8xf32> -> vector<64x8xf32>
    %57 = arith.addf %50, %56 : vector<64x8xf32>
    %c2_55 = arith.constant 2 : index
    %c0_56 = arith.constant 0 : index
    %c0_57 = arith.constant 0 : index
    %58 = vector.load %arg9[%c2_55, %c0_56, %c0_57] : memref<10x10x8xf32, #tpu.memory_space<vmem>>, vector<8x8x8xf32>
    %59 = vector.shape_cast %58 : vector<8x8x8xf32> to vector<64x8xf32>
    %60 = arith.truncf %59 : vector<64x8xf32> to vector<64x8xbf16>
    %c6 = arith.constant 6 : index
    %c0_58 = arith.constant 0 : index
    %c0_59 = arith.constant 0 : index
    %61 = vector.load %arg4[%c6, %c0_58, %c0_59] : memref<9x8x8xbf16, #tpu.memory_space<vmem>>, vector<1x8x8xbf16>
    %62 = vector.shape_cast %61 : vector<1x8x8xbf16> to vector<8x8xbf16>
    %cst_60 = arith.constant dense<0.000000e+00> : vector<64x8xf32>
    %63 = tpu.matmul %60, %62, %cst_60 {dimension_numbers = #tpu.dot_dimension_numbers<[1], [0], [0], [1], [0, 0, 1, 1], [], []>} : vector<64x8xbf16>, vector<8x8xbf16>, vector<64x8xf32> -> vector<64x8xf32>
    %64 = arith.addf %57, %63 : vector<64x8xf32>
    %c2_61 = arith.constant 2 : index
    %c1_62 = arith.constant 1 : index
    %c0_63 = arith.constant 0 : index
    %65 = vector.load %arg9[%c2_61, %c1_62, %c0_63] : memref<10x10x8xf32, #tpu.memory_space<vmem>>, vector<8x8x8xf32>
    %66 = vector.shape_cast %65 : vector<8x8x8xf32> to vector<64x8xf32>
    %67 = arith.truncf %66 : vector<64x8xf32> to vector<64x8xbf16>
    %c7 = arith.constant 7 : index
    %c0_64 = arith.constant 0 : index
    %c0_65 = arith.constant 0 : index
    %68 = vector.load %arg4[%c7, %c0_64, %c0_65] : memref<9x8x8xbf16, #tpu.memory_space<vmem>>, vector<1x8x8xbf16>
    %69 = vector.shape_cast %68 : vector<1x8x8xbf16> to vector<8x8xbf16>
    %cst_66 = arith.constant dense<0.000000e+00> : vector<64x8xf32>
    %70 = tpu.matmul %67, %69, %cst_66 {dimension_numbers = #tpu.dot_dimension_numbers<[1], [0], [0], [1], [0, 0, 1, 1], [], []>} : vector<64x8xbf16>, vector<8x8xbf16>, vector<64x8xf32> -> vector<64x8xf32>
    %71 = arith.addf %64, %70 : vector<64x8xf32>
    %c2_67 = arith.constant 2 : index
    %c2_68 = arith.constant 2 : index
    %c0_69 = arith.constant 0 : index
    %72 = vector.load %arg9[%c2_67, %c2_68, %c0_69] : memref<10x10x8xf32, #tpu.memory_space<vmem>>, vector<8x8x8xf32>
    %73 = vector.shape_cast %72 : vector<8x8x8xf32> to vector<64x8xf32>
    %74 = arith.truncf %73 : vector<64x8xf32> to vector<64x8xbf16>
    %c8 = arith.constant 8 : index
    %c0_70 = arith.constant 0 : index
    %c0_71 = arith.constant 0 : index
    %75 = vector.load %arg4[%c8, %c0_70, %c0_71] : memref<9x8x8xbf16, #tpu.memory_space<vmem>>, vector<1x8x8xbf16>
    %76 = vector.shape_cast %75 : vector<1x8x8xbf16> to vector<8x8xbf16>
    %cst_72 = arith.constant dense<0.000000e+00> : vector<64x8xf32>
    %77 = tpu.matmul %74, %76, %cst_72 {dimension_numbers = #tpu.dot_dimension_numbers<[1], [0], [0], [1], [0, 0, 1, 1], [], []>} : vector<64x8xbf16>, vector<8x8xbf16>, vector<64x8xf32> -> vector<64x8xf32>
    %78 = arith.addf %71, %77 : vector<64x8xf32>
    %79 = vector.broadcast %2 : vector<1x8xf32> to vector<64x8xf32>
    %80 = arith.mulf %78, %79 : vector<64x8xf32>
    %81 = vector.broadcast %3 : vector<1x8xf32> to vector<64x8xf32>
    %82 = arith.addf %80, %81 : vector<64x8xf32>
    %cst_73 = arith.constant 0.000000e+00 : f32
    %83 = vector.broadcast %cst_73 : f32 to vector<64x8xf32>
    %84 = arith.maximumf %82, %83 : vector<64x8xf32>
    %cst_74 = arith.constant 0.000000e+00 : f32
    %85 = vector.broadcast %cst_74 : f32 to vector<10x10x8xf32>
    %c0_75 = arith.constant 0 : index
    %c0_76 = arith.constant 0 : index
    %c0_77 = arith.constant 0 : index
    %86 = vector.load %arg10[%c0_75, %c0_76, %c0_77] : memref<10x10x8xf32, #tpu.memory_space<vmem>>, vector<10x10x8xf32>
    tpu.vector_store %arg10[%c0_75, %c0_76, %c0_77], %85 {strides = array<i32>} : memref<10x10x8xf32, #tpu.memory_space<vmem>>, vector<10x10x8xf32>,
    %87 = vector.shape_cast %84 : vector<64x8xf32> to vector<8x8x8xf32>
    %c1_78 = arith.constant 1 : index
    %c1_79 = arith.constant 1 : index
    %c0_80 = arith.constant 0 : index
    %88 = vector.load %arg10[%c1_78, %c1_79, %c0_80] : memref<10x10x8xf32, #tpu.memory_space<vmem>>, vector<8x8x8xf32>
    tpu.vector_store %arg10[%c1_78, %c1_79, %c0_80], %87 {strides = array<i32>} : memref<10x10x8xf32, #tpu.memory_space<vmem>>, vector<8x8x8xf32>,
    %c0_81 = arith.constant 0 : index
    %c0_82 = arith.constant 0 : index
    %c0_83 = arith.constant 0 : index
    %c0_84 = arith.constant 0 : index
    %89 = vector.load %arg1[%c0_81, %c0_82, %c0_83, %c0_84] : memref<1x8x8x8xf32, #tpu.memory_space<vmem>>, vector<1x8x8x8xf32>
    %90 = vector.shape_cast %89 : vector<1x8x8x8xf32> to vector<8x8x8xf32>
    %91 = vector.shape_cast %90 : vector<8x8x8xf32> to vector<64x8xf32>
    %c0_85 = arith.constant 0 : index
    %c0_86 = arith.constant 0 : index
    %c0_87 = arith.constant 0 : index
    %92 = vector.load %arg10[%c0_85, %c0_86, %c0_87] : memref<10x10x8xf32, #tpu.memory_space<vmem>>, vector<8x8x8xf32>
    %93 = vector.shape_cast %92 : vector<8x8x8xf32> to vector<64x8xf32>
    %94 = arith.truncf %93 : vector<64x8xf32> to vector<64x8xbf16>
    %c0_88 = arith.constant 0 : index
    %c0_89 = arith.constant 0 : index
    %c0_90 = arith.constant 0 : index
    %95 = vector.load %arg7[%c0_88, %c0_89, %c0_90] : memref<9x8x8xbf16, #tpu.memory_space<vmem>>, vector<1x8x8xbf16>
    %96 = vector.shape_cast %95 : vector<1x8x8xbf16> to vector<8x8xbf16>
    %cst_91 = arith.constant dense<0.000000e+00> : vector<64x8xf32>
    %97 = tpu.matmul %94, %96, %cst_91 {dimension_numbers = #tpu.dot_dimension_numbers<[1], [0], [0], [1], [0, 0, 1, 1], [], []>} : vector<64x8xbf16>, vector<8x8xbf16>, vector<64x8xf32> -> vector<64x8xf32>
    %98 = arith.addf %91, %97 : vector<64x8xf32>
    %c0_92 = arith.constant 0 : index
    %c1_93 = arith.constant 1 : index
    %c0_94 = arith.constant 0 : index
    %99 = vector.load %arg10[%c0_92, %c1_93, %c0_94] : memref<10x10x8xf32, #tpu.memory_space<vmem>>, vector<8x8x8xf32>
    %100 = vector.shape_cast %99 : vector<8x8x8xf32> to vector<64x8xf32>
    %101 = arith.truncf %100 : vector<64x8xf32> to vector<64x8xbf16>
    %c1_95 = arith.constant 1 : index
    %c0_96 = arith.constant 0 : index
    %c0_97 = arith.constant 0 : index
    %102 = vector.load %arg7[%c1_95, %c0_96, %c0_97] : memref<9x8x8xbf16, #tpu.memory_space<vmem>>, vector<1x8x8xbf16>
    %103 = vector.shape_cast %102 : vector<1x8x8xbf16> to vector<8x8xbf16>
    %cst_98 = arith.constant dense<0.000000e+00> : vector<64x8xf32>
    %104 = tpu.matmul %101, %103, %cst_98 {dimension_numbers = #tpu.dot_dimension_numbers<[1], [0], [0], [1], [0, 0, 1, 1], [], []>} : vector<64x8xbf16>, vector<8x8xbf16>, vector<64x8xf32> -> vector<64x8xf32>
    %105 = arith.addf %98, %104 : vector<64x8xf32>
    %c0_99 = arith.constant 0 : index
    %c2_100 = arith.constant 2 : index
    %c0_101 = arith.constant 0 : index
    %106 = vector.load %arg10[%c0_99, %c2_100, %c0_101] : memref<10x10x8xf32, #tpu.memory_space<vmem>>, vector<8x8x8xf32>
    %107 = vector.shape_cast %106 : vector<8x8x8xf32> to vector<64x8xf32>
    %108 = arith.truncf %107 : vector<64x8xf32> to vector<64x8xbf16>
    %c2_102 = arith.constant 2 : index
    %c0_103 = arith.constant 0 : index
    %c0_104 = arith.constant 0 : index
    %109 = vector.load %arg7[%c2_102, %c0_103, %c0_104] : memref<9x8x8xbf16, #tpu.memory_space<vmem>>, vector<1x8x8xbf16>
    %110 = vector.shape_cast %109 : vector<1x8x8xbf16> to vector<8x8xbf16>
    %cst_105 = arith.constant dense<0.000000e+00> : vector<64x8xf32>
    %111 = tpu.matmul %108, %110, %cst_105 {dimension_numbers = #tpu.dot_dimension_numbers<[1], [0], [0], [1], [0, 0, 1, 1], [], []>} : vector<64x8xbf16>, vector<8x8xbf16>, vector<64x8xf32> -> vector<64x8xf32>
    %112 = arith.addf %105, %111 : vector<64x8xf32>
    %c1_106 = arith.constant 1 : index
    %c0_107 = arith.constant 0 : index
    %c0_108 = arith.constant 0 : index
    %113 = vector.load %arg10[%c1_106, %c0_107, %c0_108] : memref<10x10x8xf32, #tpu.memory_space<vmem>>, vector<8x8x8xf32>
    %114 = vector.shape_cast %113 : vector<8x8x8xf32> to vector<64x8xf32>
    %115 = arith.truncf %114 : vector<64x8xf32> to vector<64x8xbf16>
    %c3_109 = arith.constant 3 : index
    %c0_110 = arith.constant 0 : index
    %c0_111 = arith.constant 0 : index
    %116 = vector.load %arg7[%c3_109, %c0_110, %c0_111] : memref<9x8x8xbf16, #tpu.memory_space<vmem>>, vector<1x8x8xbf16>
    %117 = vector.shape_cast %116 : vector<1x8x8xbf16> to vector<8x8xbf16>
    %cst_112 = arith.constant dense<0.000000e+00> : vector<64x8xf32>
    %118 = tpu.matmul %115, %117, %cst_112 {dimension_numbers = #tpu.dot_dimension_numbers<[1], [0], [0], [1], [0, 0, 1, 1], [], []>} : vector<64x8xbf16>, vector<8x8xbf16>, vector<64x8xf32> -> vector<64x8xf32>
    %119 = arith.addf %112, %118 : vector<64x8xf32>
    %c1_113 = arith.constant 1 : index
    %c1_114 = arith.constant 1 : index
    %c0_115 = arith.constant 0 : index
    %120 = vector.load %arg10[%c1_113, %c1_114, %c0_115] : memref<10x10x8xf32, #tpu.memory_space<vmem>>, vector<8x8x8xf32>
    %121 = vector.shape_cast %120 : vector<8x8x8xf32> to vector<64x8xf32>
    %122 = arith.truncf %121 : vector<64x8xf32> to vector<64x8xbf16>
    %c4_116 = arith.constant 4 : index
    %c0_117 = arith.constant 0 : index
    %c0_118 = arith.constant 0 : index
    %123 = vector.load %arg7[%c4_116, %c0_117, %c0_118] : memref<9x8x8xbf16, #tpu.memory_space<vmem>>, vector<1x8x8xbf16>
    %124 = vector.shape_cast %123 : vector<1x8x8xbf16> to vector<8x8xbf16>
    %cst_119 = arith.constant dense<0.000000e+00> : vector<64x8xf32>
    %125 = tpu.matmul %122, %124, %cst_119 {dimension_numbers = #tpu.dot_dimension_numbers<[1], [0], [0], [1], [0, 0, 1, 1], [], []>} : vector<64x8xbf16>, vector<8x8xbf16>, vector<64x8xf32> -> vector<64x8xf32>
    %126 = arith.addf %119, %125 : vector<64x8xf32>
    %c1_120 = arith.constant 1 : index
    %c2_121 = arith.constant 2 : index
    %c0_122 = arith.constant 0 : index
    %127 = vector.load %arg10[%c1_120, %c2_121, %c0_122] : memref<10x10x8xf32, #tpu.memory_space<vmem>>, vector<8x8x8xf32>
    %128 = vector.shape_cast %127 : vector<8x8x8xf32> to vector<64x8xf32>
    %129 = arith.truncf %128 : vector<64x8xf32> to vector<64x8xbf16>
    %c5_123 = arith.constant 5 : index
    %c0_124 = arith.constant 0 : index
    %c0_125 = arith.constant 0 : index
    %130 = vector.load %arg7[%c5_123, %c0_124, %c0_125] : memref<9x8x8xbf16, #tpu.memory_space<vmem>>, vector<1x8x8xbf16>
    %131 = vector.shape_cast %130 : vector<1x8x8xbf16> to vector<8x8xbf16>
    %cst_126 = arith.constant dense<0.000000e+00> : vector<64x8xf32>
    %132 = tpu.matmul %129, %131, %cst_126 {dimension_numbers = #tpu.dot_dimension_numbers<[1], [0], [0], [1], [0, 0, 1, 1], [], []>} : vector<64x8xbf16>, vector<8x8xbf16>, vector<64x8xf32> -> vector<64x8xf32>
    %133 = arith.addf %126, %132 : vector<64x8xf32>
    %c2_127 = arith.constant 2 : index
    %c0_128 = arith.constant 0 : index
    %c0_129 = arith.constant 0 : index
    %134 = vector.load %arg10[%c2_127, %c0_128, %c0_129] : memref<10x10x8xf32, #tpu.memory_space<vmem>>, vector<8x8x8xf32>
    %135 = vector.shape_cast %134 : vector<8x8x8xf32> to vector<64x8xf32>
    %136 = arith.truncf %135 : vector<64x8xf32> to vector<64x8xbf16>
    %c6_130 = arith.constant 6 : index
    %c0_131 = arith.constant 0 : index
    %c0_132 = arith.constant 0 : index
    %137 = vector.load %arg7[%c6_130, %c0_131, %c0_132] : memref<9x8x8xbf16, #tpu.memory_space<vmem>>, vector<1x8x8xbf16>
    %138 = vector.shape_cast %137 : vector<1x8x8xbf16> to vector<8x8xbf16>
    %cst_133 = arith.constant dense<0.000000e+00> : vector<64x8xf32>
    %139 = tpu.matmul %136, %138, %cst_133 {dimension_numbers = #tpu.dot_dimension_numbers<[1], [0], [0], [1], [0, 0, 1, 1], [], []>} : vector<64x8xbf16>, vector<8x8xbf16>, vector<64x8xf32> -> vector<64x8xf32>
    %140 = arith.addf %133, %139 : vector<64x8xf32>
    %c2_134 = arith.constant 2 : index
    %c1_135 = arith.constant 1 : index
    %c0_136 = arith.constant 0 : index
    %141 = vector.load %arg10[%c2_134, %c1_135, %c0_136] : memref<10x10x8xf32, #tpu.memory_space<vmem>>, vector<8x8x8xf32>
    %142 = vector.shape_cast %141 : vector<8x8x8xf32> to vector<64x8xf32>
    %143 = arith.truncf %142 : vector<64x8xf32> to vector<64x8xbf16>
    %c7_137 = arith.constant 7 : index
    %c0_138 = arith.constant 0 : index
    %c0_139 = arith.constant 0 : index
    %144 = vector.load %arg7[%c7_137, %c0_138, %c0_139] : memref<9x8x8xbf16, #tpu.memory_space<vmem>>, vector<1x8x8xbf16>
    %145 = vector.shape_cast %144 : vector<1x8x8xbf16> to vector<8x8xbf16>
    %cst_140 = arith.constant dense<0.000000e+00> : vector<64x8xf32>
    %146 = tpu.matmul %143, %145, %cst_140 {dimension_numbers = #tpu.dot_dimension_numbers<[1], [0], [0], [1], [0, 0, 1, 1], [], []>} : vector<64x8xbf16>, vector<8x8xbf16>, vector<64x8xf32> -> vector<64x8xf32>
    %147 = arith.addf %140, %146 : vector<64x8xf32>
    %c2_141 = arith.constant 2 : index
    %c2_142 = arith.constant 2 : index
    %c0_143 = arith.constant 0 : index
    %148 = vector.load %arg10[%c2_141, %c2_142, %c0_143] : memref<10x10x8xf32, #tpu.memory_space<vmem>>, vector<8x8x8xf32>
    %149 = vector.shape_cast %148 : vector<8x8x8xf32> to vector<64x8xf32>
    %150 = arith.truncf %149 : vector<64x8xf32> to vector<64x8xbf16>
    %c8_144 = arith.constant 8 : index
    %c0_145 = arith.constant 0 : index
    %c0_146 = arith.constant 0 : index
    %151 = vector.load %arg7[%c8_144, %c0_145, %c0_146] : memref<9x8x8xbf16, #tpu.memory_space<vmem>>, vector<1x8x8xbf16>
    %152 = vector.shape_cast %151 : vector<1x8x8xbf16> to vector<8x8xbf16>
    %cst_147 = arith.constant dense<0.000000e+00> : vector<64x8xf32>
    %153 = tpu.matmul %150, %152, %cst_147 {dimension_numbers = #tpu.dot_dimension_numbers<[1], [0], [0], [1], [0, 0, 1, 1], [], []>} : vector<64x8xbf16>, vector<8x8xbf16>, vector<64x8xf32> -> vector<64x8xf32>
    %154 = arith.addf %147, %153 : vector<64x8xf32>
    %c0_148 = arith.constant 0 : index
    %c0_149 = arith.constant 0 : index
    %c0_150 = arith.constant 0 : index
    %155 = vector.load %arg8[%c0_148, %c0_149, %c0_150] : memref<1x64x8xf32, #tpu.memory_space<vmem>>, vector<1x64x8xf32>
    %156 = vector.shape_cast %155 : vector<1x64x8xf32> to vector<64x8xf32>
    %157 = vector.shape_cast %154 : vector<64x8xf32> to vector<1x64x8xf32>
    tpu.vector_store %arg8[%c0_148, %c0_149, %c0_150], %157 {strides = array<i32>} : memref<1x64x8xf32, #tpu.memory_space<vmem>>, vector<1x64x8xf32>,
    return
  }
  func.func @transform_0(%arg0: i32) -> (i32, i32, i32, i32) {
    %c0_i32 = arith.constant 0 : i32
    %c0_i32_0 = arith.constant 0 : i32
    %c0_i32_1 = arith.constant 0 : i32
    %c0_i32_2 = arith.constant 0 : i32
    return %arg0, %c0_i32, %c0_i32_0, %c0_i32_1 : i32, i32, i32, i32
  }
  func.func @transform_1(%arg0: i32) -> (i32, i32) {
    %c0_i32 = arith.constant 0 : i32
    %c0_i32_0 = arith.constant 0 : i32
    %c0_i32_1 = arith.constant 0 : i32
    return %c0_i32, %c0_i32_0 : i32, i32
  }
  func.func @transform_2(%arg0: i32) -> (i32, i32) {
    %c0_i32 = arith.constant 0 : i32
    %c0_i32_0 = arith.constant 0 : i32
    %c0_i32_1 = arith.constant 0 : i32
    return %c0_i32, %c0_i32_0 : i32, i32
  }
  func.func @transform_3(%arg0: i32) -> (i32, i32, i32) {
    %c0_i32 = arith.constant 0 : i32
    %c0_i32_0 = arith.constant 0 : i32
    %c0_i32_1 = arith.constant 0 : i32
    %c0_i32_2 = arith.constant 0 : i32
    return %c0_i32, %c0_i32_0, %c0_i32_1 : i32, i32, i32
  }
  func.func @transform_4(%arg0: i32) -> (i32, i32) {
    %c0_i32 = arith.constant 0 : i32
    %c0_i32_0 = arith.constant 0 : i32
    %c0_i32_1 = arith.constant 0 : i32
    return %c0_i32, %c0_i32_0 : i32, i32
  }
  func.func @transform_5(%arg0: i32) -> (i32, i32) {
    %c0_i32 = arith.constant 0 : i32
    %c0_i32_0 = arith.constant 0 : i32
    %c0_i32_1 = arith.constant 0 : i32
    return %c0_i32, %c0_i32_0 : i32, i32
  }
  func.func @transform_6(%arg0: i32) -> (i32, i32, i32) {
    %c0_i32 = arith.constant 0 : i32
    %c0_i32_0 = arith.constant 0 : i32
    %c0_i32_1 = arith.constant 0 : i32
    %c0_i32_2 = arith.constant 0 : i32
    return %c0_i32, %c0_i32_0, %c0_i32_1 : i32, i32, i32
  }
  func.func @transform_7(%arg0: i32) -> (i32, i32, i32) {
    %c0_i32 = arith.constant 0 : i32
    %c0_i32_0 = arith.constant 0 : i32
    %c0_i32_1 = arith.constant 0 : i32
    return %arg0, %c0_i32, %c0_i32_0 : i32, i32, i32
  }
}

module attributes {stable_mosaic.version = 11 : i64} {
  func.func @kernel(%arg0: i32, %arg1: memref<1x32x8x4xf32, #tpu.memory_space<vmem>>, %arg2: memref<1x4xf32, #tpu.memory_space<vmem>>, %arg3: memref<1x4xf32, #tpu.memory_space<vmem>>, %arg4: memref<9x4x8xbf16, #tpu.memory_space<vmem>>, %arg5: memref<1x8xf32, #tpu.memory_space<vmem>>, %arg6: memref<1x8xf32, #tpu.memory_space<vmem>>, %arg7: memref<9x8x8xbf16, #tpu.memory_space<vmem>>, %arg8: memref<4x8xbf16, #tpu.memory_space<vmem>>, %arg9: memref<1x64x8xf32, #tpu.memory_space<vmem>>, %arg10: memref<4x9x9x4xf32, #tpu.memory_space<vmem>>, %arg11: memref<10x10x8xf32, #tpu.memory_space<vmem>>) attributes {dimension_semantics = [#tpu.dimension_semantics<parallel>], iteration_bounds = array<i64: 2>, scalar_prefetch = 0 : i64, scratch_operands = 2 : i64, tpu.core_type = #tpu.core_type<tc>, window_params = [{transform_indices = @transform_0, window_bounds = array<i64: 1, 32, 8, 4>}, {pipeline_mode = #tpu.pipeline_mode<synchronous>, transform_indices = @transform_1, window_bounds = array<i64: 1, 4>}, {pipeline_mode = #tpu.pipeline_mode<synchronous>, transform_indices = @transform_2, window_bounds = array<i64: 1, 4>}, {pipeline_mode = #tpu.pipeline_mode<synchronous>, transform_indices = @transform_3, window_bounds = array<i64: 9, 4, 8>}, {pipeline_mode = #tpu.pipeline_mode<synchronous>, transform_indices = @transform_4, window_bounds = array<i64: 1, 8>}, {pipeline_mode = #tpu.pipeline_mode<synchronous>, transform_indices = @transform_5, window_bounds = array<i64: 1, 8>}, {pipeline_mode = #tpu.pipeline_mode<synchronous>, transform_indices = @transform_6, window_bounds = array<i64: 9, 8, 8>}, {pipeline_mode = #tpu.pipeline_mode<synchronous>, transform_indices = @transform_7, window_bounds = array<i64: 4, 8>}, {transform_indices = @transform_8, window_bounds = array<i64: 1, 64, 8>}]} {
    %c0 = arith.constant 0 : index
    %c0_0 = arith.constant 0 : index
    %0 = vector.load %arg2[%c0, %c0_0] : memref<1x4xf32, #tpu.memory_space<vmem>>, vector<1x4xf32>
    %c0_1 = arith.constant 0 : index
    %c0_2 = arith.constant 0 : index
    %1 = vector.load %arg3[%c0_1, %c0_2] : memref<1x4xf32, #tpu.memory_space<vmem>>, vector<1x4xf32>
    %c0_3 = arith.constant 0 : index
    %c0_4 = arith.constant 0 : index
    %2 = vector.load %arg5[%c0_3, %c0_4] : memref<1x8xf32, #tpu.memory_space<vmem>>, vector<1x8xf32>
    %c0_5 = arith.constant 0 : index
    %c0_6 = arith.constant 0 : index
    %3 = vector.load %arg6[%c0_5, %c0_6] : memref<1x8xf32, #tpu.memory_space<vmem>>, vector<1x8xf32>
    %cst = arith.constant 0.000000e+00 : f32
    %4 = vector.broadcast %cst : f32 to vector<4x9x9x4xf32>
    %c0_7 = arith.constant 0 : index
    %c0_8 = arith.constant 0 : index
    %c0_9 = arith.constant 0 : index
    %c0_10 = arith.constant 0 : index
    %5 = vector.load %arg10[%c0_7, %c0_8, %c0_9, %c0_10] : memref<4x9x9x4xf32, #tpu.memory_space<vmem>>, vector<4x9x9x4xf32>
    tpu.vector_store %arg10[%c0_7, %c0_8, %c0_9, %c0_10], %4 {strides = array<i32>} : memref<4x9x9x4xf32, #tpu.memory_space<vmem>>, vector<4x9x9x4xf32>,
    %c0_11 = arith.constant 0 : index
    %c0_12 = arith.constant 0 : index
    %c0_13 = arith.constant 0 : index
    %c0_14 = arith.constant 0 : index
    %6 = vector.load %arg1[%c0_11, %c0_12, %c0_13, %c0_14] : memref<1x32x8x4xf32, #tpu.memory_space<vmem>>, vector<1x8x8x4xf32>
    %7 = vector.shape_cast %6 : vector<1x8x8x4xf32> to vector<8x8x4xf32>
    %8 = vector.shape_cast %7 : vector<8x8x4xf32> to vector<64x4xf32>
    %9 = vector.broadcast %0 : vector<1x4xf32> to vector<64x4xf32>
    %10 = arith.mulf %8, %9 : vector<64x4xf32>
    %11 = vector.broadcast %1 : vector<1x4xf32> to vector<64x4xf32>
    %12 = arith.addf %10, %11 : vector<64x4xf32>
    %cst_15 = arith.constant 0.000000e+00 : f32
    %13 = vector.broadcast %cst_15 : f32 to vector<64x4xf32>
    %14 = arith.maximumf %12, %13 : vector<64x4xf32>
    %15 = vector.shape_cast %14 : vector<64x4xf32> to vector<8x8x4xf32>
    %c0_16 = arith.constant 0 : index
    %c1 = arith.constant 1 : index
    %c1_17 = arith.constant 1 : index
    %c0_18 = arith.constant 0 : index
    %16 = vector.load %arg10[%c0_16, %c1, %c1_17, %c0_18] : memref<4x9x9x4xf32, #tpu.memory_space<vmem>>, vector<1x8x8x4xf32>
    %17 = vector.shape_cast %16 : vector<1x8x8x4xf32> to vector<8x8x4xf32>
    %18 = vector.shape_cast %15 : vector<8x8x4xf32> to vector<1x8x8x4xf32>
    tpu.vector_store %arg10[%c0_16, %c1, %c1_17, %c0_18], %18 {strides = array<i32>} : memref<4x9x9x4xf32, #tpu.memory_space<vmem>>, vector<1x8x8x4xf32>,
    %c0_19 = arith.constant 0 : index
    %c8 = arith.constant 8 : index
    %c0_20 = arith.constant 0 : index
    %c0_21 = arith.constant 0 : index
    %19 = vector.load %arg1[%c0_19, %c8, %c0_20, %c0_21] : memref<1x32x8x4xf32, #tpu.memory_space<vmem>>, vector<1x8x8x4xf32>
    %20 = vector.shape_cast %19 : vector<1x8x8x4xf32> to vector<8x8x4xf32>
    %21 = vector.shape_cast %20 : vector<8x8x4xf32> to vector<64x4xf32>
    %22 = vector.broadcast %0 : vector<1x4xf32> to vector<64x4xf32>
    %23 = arith.mulf %21, %22 : vector<64x4xf32>
    %24 = vector.broadcast %1 : vector<1x4xf32> to vector<64x4xf32>
    %25 = arith.addf %23, %24 : vector<64x4xf32>
    %cst_22 = arith.constant 0.000000e+00 : f32
    %26 = vector.broadcast %cst_22 : f32 to vector<64x4xf32>
    %27 = arith.maximumf %25, %26 : vector<64x4xf32>
    %28 = vector.shape_cast %27 : vector<64x4xf32> to vector<8x8x4xf32>
    %c1_23 = arith.constant 1 : index
    %c1_24 = arith.constant 1 : index
    %c1_25 = arith.constant 1 : index
    %c0_26 = arith.constant 0 : index
    %29 = vector.load %arg10[%c1_23, %c1_24, %c1_25, %c0_26] : memref<4x9x9x4xf32, #tpu.memory_space<vmem>>, vector<1x8x8x4xf32>
    %30 = vector.shape_cast %29 : vector<1x8x8x4xf32> to vector<8x8x4xf32>
    %31 = vector.shape_cast %28 : vector<8x8x4xf32> to vector<1x8x8x4xf32>
    tpu.vector_store %arg10[%c1_23, %c1_24, %c1_25, %c0_26], %31 {strides = array<i32>} : memref<4x9x9x4xf32, #tpu.memory_space<vmem>>, vector<1x8x8x4xf32>,
    %c0_27 = arith.constant 0 : index
    %c16 = arith.constant 16 : index
    %c0_28 = arith.constant 0 : index
    %c0_29 = arith.constant 0 : index
    %32 = vector.load %arg1[%c0_27, %c16, %c0_28, %c0_29] : memref<1x32x8x4xf32, #tpu.memory_space<vmem>>, vector<1x8x8x4xf32>
    %33 = vector.shape_cast %32 : vector<1x8x8x4xf32> to vector<8x8x4xf32>
    %34 = vector.shape_cast %33 : vector<8x8x4xf32> to vector<64x4xf32>
    %35 = vector.broadcast %0 : vector<1x4xf32> to vector<64x4xf32>
    %36 = arith.mulf %34, %35 : vector<64x4xf32>
    %37 = vector.broadcast %1 : vector<1x4xf32> to vector<64x4xf32>
    %38 = arith.addf %36, %37 : vector<64x4xf32>
    %cst_30 = arith.constant 0.000000e+00 : f32
    %39 = vector.broadcast %cst_30 : f32 to vector<64x4xf32>
    %40 = arith.maximumf %38, %39 : vector<64x4xf32>
    %41 = vector.shape_cast %40 : vector<64x4xf32> to vector<8x8x4xf32>
    %c2 = arith.constant 2 : index
    %c1_31 = arith.constant 1 : index
    %c1_32 = arith.constant 1 : index
    %c0_33 = arith.constant 0 : index
    %42 = vector.load %arg10[%c2, %c1_31, %c1_32, %c0_33] : memref<4x9x9x4xf32, #tpu.memory_space<vmem>>, vector<1x8x8x4xf32>
    %43 = vector.shape_cast %42 : vector<1x8x8x4xf32> to vector<8x8x4xf32>
    %44 = vector.shape_cast %41 : vector<8x8x4xf32> to vector<1x8x8x4xf32>
    tpu.vector_store %arg10[%c2, %c1_31, %c1_32, %c0_33], %44 {strides = array<i32>} : memref<4x9x9x4xf32, #tpu.memory_space<vmem>>, vector<1x8x8x4xf32>,
    %c0_34 = arith.constant 0 : index
    %c24 = arith.constant 24 : index
    %c0_35 = arith.constant 0 : index
    %c0_36 = arith.constant 0 : index
    %45 = vector.load %arg1[%c0_34, %c24, %c0_35, %c0_36] : memref<1x32x8x4xf32, #tpu.memory_space<vmem>>, vector<1x8x8x4xf32>
    %46 = vector.shape_cast %45 : vector<1x8x8x4xf32> to vector<8x8x4xf32>
    %47 = vector.shape_cast %46 : vector<8x8x4xf32> to vector<64x4xf32>
    %48 = vector.broadcast %0 : vector<1x4xf32> to vector<64x4xf32>
    %49 = arith.mulf %47, %48 : vector<64x4xf32>
    %50 = vector.broadcast %1 : vector<1x4xf32> to vector<64x4xf32>
    %51 = arith.addf %49, %50 : vector<64x4xf32>
    %cst_37 = arith.constant 0.000000e+00 : f32
    %52 = vector.broadcast %cst_37 : f32 to vector<64x4xf32>
    %53 = arith.maximumf %51, %52 : vector<64x4xf32>
    %54 = vector.shape_cast %53 : vector<64x4xf32> to vector<8x8x4xf32>
    %c3 = arith.constant 3 : index
    %c1_38 = arith.constant 1 : index
    %c1_39 = arith.constant 1 : index
    %c0_40 = arith.constant 0 : index
    %55 = vector.load %arg10[%c3, %c1_38, %c1_39, %c0_40] : memref<4x9x9x4xf32, #tpu.memory_space<vmem>>, vector<1x8x8x4xf32>
    %56 = vector.shape_cast %55 : vector<1x8x8x4xf32> to vector<8x8x4xf32>
    %57 = vector.shape_cast %54 : vector<8x8x4xf32> to vector<1x8x8x4xf32>
    tpu.vector_store %arg10[%c3, %c1_38, %c1_39, %c0_40], %57 {strides = array<i32>} : memref<4x9x9x4xf32, #tpu.memory_space<vmem>>, vector<1x8x8x4xf32>,
    %c3_41 = arith.constant 3 : index
    %c0_42 = arith.constant 0 : index
    %c0_43 = arith.constant 0 : index
    %c0_44 = arith.constant 0 : index
    %58 = vector.load %arg10[%c3_41, %c0_42, %c0_43, %c0_44] : memref<4x9x9x4xf32, #tpu.memory_space<vmem>>, vector<1x8x8x4xf32>
    %59 = vector.shape_cast %58 : vector<1x8x8x4xf32> to vector<8x8x4xf32>
    %60 = vector.shape_cast %59 : vector<8x8x4xf32> to vector<64x4xf32>
    %61 = arith.truncf %60 : vector<64x4xf32> to vector<64x4xbf16>
    %c0_45 = arith.constant 0 : index
    %c0_46 = arith.constant 0 : index
    %c0_47 = arith.constant 0 : index
    %62 = vector.load %arg4[%c0_45, %c0_46, %c0_47] : memref<9x4x8xbf16, #tpu.memory_space<vmem>>, vector<1x4x8xbf16>
    %63 = vector.shape_cast %62 : vector<1x4x8xbf16> to vector<4x8xbf16>
    %cst_48 = arith.constant dense<0.000000e+00> : vector<64x8xf32>
    %64 = tpu.matmul %61, %63, %cst_48 {dimension_numbers = #tpu.dot_dimension_numbers<[1], [0], [0], [1], [0, 0, 1, 1], [], []>} : vector<64x4xbf16>, vector<4x8xbf16>, vector<64x8xf32> -> vector<64x8xf32>
    %c2_49 = arith.constant 2 : index
    %c0_50 = arith.constant 0 : index
    %c1_51 = arith.constant 1 : index
    %c0_52 = arith.constant 0 : index
    %65 = vector.load %arg10[%c2_49, %c0_50, %c1_51, %c0_52] : memref<4x9x9x4xf32, #tpu.memory_space<vmem>>, vector<1x8x8x4xf32>
    %66 = vector.shape_cast %65 : vector<1x8x8x4xf32> to vector<8x8x4xf32>
    %67 = vector.shape_cast %66 : vector<8x8x4xf32> to vector<64x4xf32>
    %68 = arith.truncf %67 : vector<64x4xf32> to vector<64x4xbf16>
    %c1_53 = arith.constant 1 : index
    %c0_54 = arith.constant 0 : index
    %c0_55 = arith.constant 0 : index
    %69 = vector.load %arg4[%c1_53, %c0_54, %c0_55] : memref<9x4x8xbf16, #tpu.memory_space<vmem>>, vector<1x4x8xbf16>
    %70 = vector.shape_cast %69 : vector<1x4x8xbf16> to vector<4x8xbf16>
    %cst_56 = arith.constant dense<0.000000e+00> : vector<64x8xf32>
    %71 = tpu.matmul %68, %70, %cst_56 {dimension_numbers = #tpu.dot_dimension_numbers<[1], [0], [0], [1], [0, 0, 1, 1], [], []>} : vector<64x4xbf16>, vector<4x8xbf16>, vector<64x8xf32> -> vector<64x8xf32>
    %72 = arith.addf %64, %71 : vector<64x8xf32>
    %c3_57 = arith.constant 3 : index
    %c0_58 = arith.constant 0 : index
    %c1_59 = arith.constant 1 : index
    %c0_60 = arith.constant 0 : index
    %73 = vector.load %arg10[%c3_57, %c0_58, %c1_59, %c0_60] : memref<4x9x9x4xf32, #tpu.memory_space<vmem>>, vector<1x8x8x4xf32>
    %74 = vector.shape_cast %73 : vector<1x8x8x4xf32> to vector<8x8x4xf32>
    %75 = vector.shape_cast %74 : vector<8x8x4xf32> to vector<64x4xf32>
    %76 = arith.truncf %75 : vector<64x4xf32> to vector<64x4xbf16>
    %c2_61 = arith.constant 2 : index
    %c0_62 = arith.constant 0 : index
    %c0_63 = arith.constant 0 : index
    %77 = vector.load %arg4[%c2_61, %c0_62, %c0_63] : memref<9x4x8xbf16, #tpu.memory_space<vmem>>, vector<1x4x8xbf16>
    %78 = vector.shape_cast %77 : vector<1x4x8xbf16> to vector<4x8xbf16>
    %cst_64 = arith.constant dense<0.000000e+00> : vector<64x8xf32>
    %79 = tpu.matmul %76, %78, %cst_64 {dimension_numbers = #tpu.dot_dimension_numbers<[1], [0], [0], [1], [0, 0, 1, 1], [], []>} : vector<64x4xbf16>, vector<4x8xbf16>, vector<64x8xf32> -> vector<64x8xf32>
    %80 = arith.addf %72, %79 : vector<64x8xf32>
    %c1_65 = arith.constant 1 : index
    %c1_66 = arith.constant 1 : index
    %c0_67 = arith.constant 0 : index
    %c0_68 = arith.constant 0 : index
    %81 = vector.load %arg10[%c1_65, %c1_66, %c0_67, %c0_68] : memref<4x9x9x4xf32, #tpu.memory_space<vmem>>, vector<1x8x8x4xf32>
    %82 = vector.shape_cast %81 : vector<1x8x8x4xf32> to vector<8x8x4xf32>
    %83 = vector.shape_cast %82 : vector<8x8x4xf32> to vector<64x4xf32>
    %84 = arith.truncf %83 : vector<64x4xf32> to vector<64x4xbf16>
    %c3_69 = arith.constant 3 : index
    %c0_70 = arith.constant 0 : index
    %c0_71 = arith.constant 0 : index
    %85 = vector.load %arg4[%c3_69, %c0_70, %c0_71] : memref<9x4x8xbf16, #tpu.memory_space<vmem>>, vector<1x4x8xbf16>
    %86 = vector.shape_cast %85 : vector<1x4x8xbf16> to vector<4x8xbf16>
    %cst_72 = arith.constant dense<0.000000e+00> : vector<64x8xf32>
    %87 = tpu.matmul %84, %86, %cst_72 {dimension_numbers = #tpu.dot_dimension_numbers<[1], [0], [0], [1], [0, 0, 1, 1], [], []>} : vector<64x4xbf16>, vector<4x8xbf16>, vector<64x8xf32> -> vector<64x8xf32>
    %88 = arith.addf %80, %87 : vector<64x8xf32>
    %c0_73 = arith.constant 0 : index
    %c1_74 = arith.constant 1 : index
    %c1_75 = arith.constant 1 : index
    %c0_76 = arith.constant 0 : index
    %89 = vector.load %arg10[%c0_73, %c1_74, %c1_75, %c0_76] : memref<4x9x9x4xf32, #tpu.memory_space<vmem>>, vector<1x8x8x4xf32>
    %90 = vector.shape_cast %89 : vector<1x8x8x4xf32> to vector<8x8x4xf32>
    %91 = vector.shape_cast %90 : vector<8x8x4xf32> to vector<64x4xf32>
    %92 = arith.truncf %91 : vector<64x4xf32> to vector<64x4xbf16>
    %c4 = arith.constant 4 : index
    %c0_77 = arith.constant 0 : index
    %c0_78 = arith.constant 0 : index
    %93 = vector.load %arg4[%c4, %c0_77, %c0_78] : memref<9x4x8xbf16, #tpu.memory_space<vmem>>, vector<1x4x8xbf16>
    %94 = vector.shape_cast %93 : vector<1x4x8xbf16> to vector<4x8xbf16>
    %cst_79 = arith.constant dense<0.000000e+00> : vector<64x8xf32>
    %95 = tpu.matmul %92, %94, %cst_79 {dimension_numbers = #tpu.dot_dimension_numbers<[1], [0], [0], [1], [0, 0, 1, 1], [], []>} : vector<64x4xbf16>, vector<4x8xbf16>, vector<64x8xf32> -> vector<64x8xf32>
    %96 = arith.addf %88, %95 : vector<64x8xf32>
    %c1_80 = arith.constant 1 : index
    %c1_81 = arith.constant 1 : index
    %c1_82 = arith.constant 1 : index
    %c0_83 = arith.constant 0 : index
    %97 = vector.load %arg10[%c1_80, %c1_81, %c1_82, %c0_83] : memref<4x9x9x4xf32, #tpu.memory_space<vmem>>, vector<1x8x8x4xf32>
    %98 = vector.shape_cast %97 : vector<1x8x8x4xf32> to vector<8x8x4xf32>
    %99 = vector.shape_cast %98 : vector<8x8x4xf32> to vector<64x4xf32>
    %100 = arith.truncf %99 : vector<64x4xf32> to vector<64x4xbf16>
    %c5 = arith.constant 5 : index
    %c0_84 = arith.constant 0 : index
    %c0_85 = arith.constant 0 : index
    %101 = vector.load %arg4[%c5, %c0_84, %c0_85] : memref<9x4x8xbf16, #tpu.memory_space<vmem>>, vector<1x4x8xbf16>
    %102 = vector.shape_cast %101 : vector<1x4x8xbf16> to vector<4x8xbf16>
    %cst_86 = arith.constant dense<0.000000e+00> : vector<64x8xf32>
    %103 = tpu.matmul %100, %102, %cst_86 {dimension_numbers = #tpu.dot_dimension_numbers<[1], [0], [0], [1], [0, 0, 1, 1], [], []>} : vector<64x4xbf16>, vector<4x8xbf16>, vector<64x8xf32> -> vector<64x8xf32>
    %104 = arith.addf %96, %103 : vector<64x8xf32>
    %c3_87 = arith.constant 3 : index
    %c1_88 = arith.constant 1 : index
    %c0_89 = arith.constant 0 : index
    %c0_90 = arith.constant 0 : index
    %105 = vector.load %arg10[%c3_87, %c1_88, %c0_89, %c0_90] : memref<4x9x9x4xf32, #tpu.memory_space<vmem>>, vector<1x8x8x4xf32>
    %106 = vector.shape_cast %105 : vector<1x8x8x4xf32> to vector<8x8x4xf32>
    %107 = vector.shape_cast %106 : vector<8x8x4xf32> to vector<64x4xf32>
    %108 = arith.truncf %107 : vector<64x4xf32> to vector<64x4xbf16>
    %c6 = arith.constant 6 : index
    %c0_91 = arith.constant 0 : index
    %c0_92 = arith.constant 0 : index
    %109 = vector.load %arg4[%c6, %c0_91, %c0_92] : memref<9x4x8xbf16, #tpu.memory_space<vmem>>, vector<1x4x8xbf16>
    %110 = vector.shape_cast %109 : vector<1x4x8xbf16> to vector<4x8xbf16>
    %cst_93 = arith.constant dense<0.000000e+00> : vector<64x8xf32>
    %111 = tpu.matmul %108, %110, %cst_93 {dimension_numbers = #tpu.dot_dimension_numbers<[1], [0], [0], [1], [0, 0, 1, 1], [], []>} : vector<64x4xbf16>, vector<4x8xbf16>, vector<64x8xf32> -> vector<64x8xf32>
    %112 = arith.addf %104, %111 : vector<64x8xf32>
    %c2_94 = arith.constant 2 : index
    %c1_95 = arith.constant 1 : index
    %c1_96 = arith.constant 1 : index
    %c0_97 = arith.constant 0 : index
    %113 = vector.load %arg10[%c2_94, %c1_95, %c1_96, %c0_97] : memref<4x9x9x4xf32, #tpu.memory_space<vmem>>, vector<1x8x8x4xf32>
    %114 = vector.shape_cast %113 : vector<1x8x8x4xf32> to vector<8x8x4xf32>
    %115 = vector.shape_cast %114 : vector<8x8x4xf32> to vector<64x4xf32>
    %116 = arith.truncf %115 : vector<64x4xf32> to vector<64x4xbf16>
    %c7 = arith.constant 7 : index
    %c0_98 = arith.constant 0 : index
    %c0_99 = arith.constant 0 : index
    %117 = vector.load %arg4[%c7, %c0_98, %c0_99] : memref<9x4x8xbf16, #tpu.memory_space<vmem>>, vector<1x4x8xbf16>
    %118 = vector.shape_cast %117 : vector<1x4x8xbf16> to vector<4x8xbf16>
    %cst_100 = arith.constant dense<0.000000e+00> : vector<64x8xf32>
    %119 = tpu.matmul %116, %118, %cst_100 {dimension_numbers = #tpu.dot_dimension_numbers<[1], [0], [0], [1], [0, 0, 1, 1], [], []>} : vector<64x4xbf16>, vector<4x8xbf16>, vector<64x8xf32> -> vector<64x8xf32>
    %120 = arith.addf %112, %119 : vector<64x8xf32>
    %c3_101 = arith.constant 3 : index
    %c1_102 = arith.constant 1 : index
    %c1_103 = arith.constant 1 : index
    %c0_104 = arith.constant 0 : index
    %121 = vector.load %arg10[%c3_101, %c1_102, %c1_103, %c0_104] : memref<4x9x9x4xf32, #tpu.memory_space<vmem>>, vector<1x8x8x4xf32>
    %122 = vector.shape_cast %121 : vector<1x8x8x4xf32> to vector<8x8x4xf32>
    %123 = vector.shape_cast %122 : vector<8x8x4xf32> to vector<64x4xf32>
    %124 = arith.truncf %123 : vector<64x4xf32> to vector<64x4xbf16>
    %c8_105 = arith.constant 8 : index
    %c0_106 = arith.constant 0 : index
    %c0_107 = arith.constant 0 : index
    %125 = vector.load %arg4[%c8_105, %c0_106, %c0_107] : memref<9x4x8xbf16, #tpu.memory_space<vmem>>, vector<1x4x8xbf16>
    %126 = vector.shape_cast %125 : vector<1x4x8xbf16> to vector<4x8xbf16>
    %cst_108 = arith.constant dense<0.000000e+00> : vector<64x8xf32>
    %127 = tpu.matmul %124, %126, %cst_108 {dimension_numbers = #tpu.dot_dimension_numbers<[1], [0], [0], [1], [0, 0, 1, 1], [], []>} : vector<64x4xbf16>, vector<4x8xbf16>, vector<64x8xf32> -> vector<64x8xf32>
    %128 = arith.addf %120, %127 : vector<64x8xf32>
    %129 = vector.broadcast %2 : vector<1x8xf32> to vector<64x8xf32>
    %130 = arith.mulf %128, %129 : vector<64x8xf32>
    %131 = vector.broadcast %3 : vector<1x8xf32> to vector<64x8xf32>
    %132 = arith.addf %130, %131 : vector<64x8xf32>
    %cst_109 = arith.constant 0.000000e+00 : f32
    %133 = vector.broadcast %cst_109 : f32 to vector<64x8xf32>
    %134 = arith.maximumf %132, %133 : vector<64x8xf32>
    %cst_110 = arith.constant 0.000000e+00 : f32
    %135 = vector.broadcast %cst_110 : f32 to vector<10x10x8xf32>
    %c0_111 = arith.constant 0 : index
    %c0_112 = arith.constant 0 : index
    %c0_113 = arith.constant 0 : index
    %136 = vector.load %arg11[%c0_111, %c0_112, %c0_113] : memref<10x10x8xf32, #tpu.memory_space<vmem>>, vector<10x10x8xf32>
    tpu.vector_store %arg11[%c0_111, %c0_112, %c0_113], %135 {strides = array<i32>} : memref<10x10x8xf32, #tpu.memory_space<vmem>>, vector<10x10x8xf32>,
    %137 = vector.shape_cast %134 : vector<64x8xf32> to vector<8x8x8xf32>
    %c1_114 = arith.constant 1 : index
    %c1_115 = arith.constant 1 : index
    %c0_116 = arith.constant 0 : index
    %138 = vector.load %arg11[%c1_114, %c1_115, %c0_116] : memref<10x10x8xf32, #tpu.memory_space<vmem>>, vector<8x8x8xf32>
    tpu.vector_store %arg11[%c1_114, %c1_115, %c0_116], %137 {strides = array<i32>} : memref<10x10x8xf32, #tpu.memory_space<vmem>>, vector<8x8x8xf32>,
    %139 = arith.truncf %14 : vector<64x4xf32> to vector<64x4xbf16>
    %c0_117 = arith.constant 0 : index
    %c0_118 = arith.constant 0 : index
    %140 = vector.load %arg8[%c0_117, %c0_118] : memref<4x8xbf16, #tpu.memory_space<vmem>>, vector<4x8xbf16>
    %cst_119 = arith.constant dense<0.000000e+00> : vector<64x8xf32>
    %141 = tpu.matmul %139, %140, %cst_119 {dimension_numbers = #tpu.dot_dimension_numbers<[1], [0], [0], [1], [0, 0, 1, 1], [], []>} : vector<64x4xbf16>, vector<4x8xbf16>, vector<64x8xf32> -> vector<64x8xf32>
    %c0_120 = arith.constant 0 : index
    %c0_121 = arith.constant 0 : index
    %c0_122 = arith.constant 0 : index
    %142 = vector.load %arg11[%c0_120, %c0_121, %c0_122] : memref<10x10x8xf32, #tpu.memory_space<vmem>>, vector<8x8x8xf32>
    %143 = vector.shape_cast %142 : vector<8x8x8xf32> to vector<64x8xf32>
    %144 = arith.truncf %143 : vector<64x8xf32> to vector<64x8xbf16>
    %c0_123 = arith.constant 0 : index
    %c0_124 = arith.constant 0 : index
    %c0_125 = arith.constant 0 : index
    %145 = vector.load %arg7[%c0_123, %c0_124, %c0_125] : memref<9x8x8xbf16, #tpu.memory_space<vmem>>, vector<1x8x8xbf16>
    %146 = vector.shape_cast %145 : vector<1x8x8xbf16> to vector<8x8xbf16>
    %cst_126 = arith.constant dense<0.000000e+00> : vector<64x8xf32>
    %147 = tpu.matmul %144, %146, %cst_126 {dimension_numbers = #tpu.dot_dimension_numbers<[1], [0], [0], [1], [0, 0, 1, 1], [], []>} : vector<64x8xbf16>, vector<8x8xbf16>, vector<64x8xf32> -> vector<64x8xf32>
    %148 = arith.addf %141, %147 : vector<64x8xf32>
    %c0_127 = arith.constant 0 : index
    %c1_128 = arith.constant 1 : index
    %c0_129 = arith.constant 0 : index
    %149 = vector.load %arg11[%c0_127, %c1_128, %c0_129] : memref<10x10x8xf32, #tpu.memory_space<vmem>>, vector<8x8x8xf32>
    %150 = vector.shape_cast %149 : vector<8x8x8xf32> to vector<64x8xf32>
    %151 = arith.truncf %150 : vector<64x8xf32> to vector<64x8xbf16>
    %c1_130 = arith.constant 1 : index
    %c0_131 = arith.constant 0 : index
    %c0_132 = arith.constant 0 : index
    %152 = vector.load %arg7[%c1_130, %c0_131, %c0_132] : memref<9x8x8xbf16, #tpu.memory_space<vmem>>, vector<1x8x8xbf16>
    %153 = vector.shape_cast %152 : vector<1x8x8xbf16> to vector<8x8xbf16>
    %cst_133 = arith.constant dense<0.000000e+00> : vector<64x8xf32>
    %154 = tpu.matmul %151, %153, %cst_133 {dimension_numbers = #tpu.dot_dimension_numbers<[1], [0], [0], [1], [0, 0, 1, 1], [], []>} : vector<64x8xbf16>, vector<8x8xbf16>, vector<64x8xf32> -> vector<64x8xf32>
    %155 = arith.addf %148, %154 : vector<64x8xf32>
    %c0_134 = arith.constant 0 : index
    %c2_135 = arith.constant 2 : index
    %c0_136 = arith.constant 0 : index
    %156 = vector.load %arg11[%c0_134, %c2_135, %c0_136] : memref<10x10x8xf32, #tpu.memory_space<vmem>>, vector<8x8x8xf32>
    %157 = vector.shape_cast %156 : vector<8x8x8xf32> to vector<64x8xf32>
    %158 = arith.truncf %157 : vector<64x8xf32> to vector<64x8xbf16>
    %c2_137 = arith.constant 2 : index
    %c0_138 = arith.constant 0 : index
    %c0_139 = arith.constant 0 : index
    %159 = vector.load %arg7[%c2_137, %c0_138, %c0_139] : memref<9x8x8xbf16, #tpu.memory_space<vmem>>, vector<1x8x8xbf16>
    %160 = vector.shape_cast %159 : vector<1x8x8xbf16> to vector<8x8xbf16>
    %cst_140 = arith.constant dense<0.000000e+00> : vector<64x8xf32>
    %161 = tpu.matmul %158, %160, %cst_140 {dimension_numbers = #tpu.dot_dimension_numbers<[1], [0], [0], [1], [0, 0, 1, 1], [], []>} : vector<64x8xbf16>, vector<8x8xbf16>, vector<64x8xf32> -> vector<64x8xf32>
    %162 = arith.addf %155, %161 : vector<64x8xf32>
    %c1_141 = arith.constant 1 : index
    %c0_142 = arith.constant 0 : index
    %c0_143 = arith.constant 0 : index
    %163 = vector.load %arg11[%c1_141, %c0_142, %c0_143] : memref<10x10x8xf32, #tpu.memory_space<vmem>>, vector<8x8x8xf32>
    %164 = vector.shape_cast %163 : vector<8x8x8xf32> to vector<64x8xf32>
    %165 = arith.truncf %164 : vector<64x8xf32> to vector<64x8xbf16>
    %c3_144 = arith.constant 3 : index
    %c0_145 = arith.constant 0 : index
    %c0_146 = arith.constant 0 : index
    %166 = vector.load %arg7[%c3_144, %c0_145, %c0_146] : memref<9x8x8xbf16, #tpu.memory_space<vmem>>, vector<1x8x8xbf16>
    %167 = vector.shape_cast %166 : vector<1x8x8xbf16> to vector<8x8xbf16>
    %cst_147 = arith.constant dense<0.000000e+00> : vector<64x8xf32>
    %168 = tpu.matmul %165, %167, %cst_147 {dimension_numbers = #tpu.dot_dimension_numbers<[1], [0], [0], [1], [0, 0, 1, 1], [], []>} : vector<64x8xbf16>, vector<8x8xbf16>, vector<64x8xf32> -> vector<64x8xf32>
    %169 = arith.addf %162, %168 : vector<64x8xf32>
    %c1_148 = arith.constant 1 : index
    %c1_149 = arith.constant 1 : index
    %c0_150 = arith.constant 0 : index
    %170 = vector.load %arg11[%c1_148, %c1_149, %c0_150] : memref<10x10x8xf32, #tpu.memory_space<vmem>>, vector<8x8x8xf32>
    %171 = vector.shape_cast %170 : vector<8x8x8xf32> to vector<64x8xf32>
    %172 = arith.truncf %171 : vector<64x8xf32> to vector<64x8xbf16>
    %c4_151 = arith.constant 4 : index
    %c0_152 = arith.constant 0 : index
    %c0_153 = arith.constant 0 : index
    %173 = vector.load %arg7[%c4_151, %c0_152, %c0_153] : memref<9x8x8xbf16, #tpu.memory_space<vmem>>, vector<1x8x8xbf16>
    %174 = vector.shape_cast %173 : vector<1x8x8xbf16> to vector<8x8xbf16>
    %cst_154 = arith.constant dense<0.000000e+00> : vector<64x8xf32>
    %175 = tpu.matmul %172, %174, %cst_154 {dimension_numbers = #tpu.dot_dimension_numbers<[1], [0], [0], [1], [0, 0, 1, 1], [], []>} : vector<64x8xbf16>, vector<8x8xbf16>, vector<64x8xf32> -> vector<64x8xf32>
    %176 = arith.addf %169, %175 : vector<64x8xf32>
    %c1_155 = arith.constant 1 : index
    %c2_156 = arith.constant 2 : index
    %c0_157 = arith.constant 0 : index
    %177 = vector.load %arg11[%c1_155, %c2_156, %c0_157] : memref<10x10x8xf32, #tpu.memory_space<vmem>>, vector<8x8x8xf32>
    %178 = vector.shape_cast %177 : vector<8x8x8xf32> to vector<64x8xf32>
    %179 = arith.truncf %178 : vector<64x8xf32> to vector<64x8xbf16>
    %c5_158 = arith.constant 5 : index
    %c0_159 = arith.constant 0 : index
    %c0_160 = arith.constant 0 : index
    %180 = vector.load %arg7[%c5_158, %c0_159, %c0_160] : memref<9x8x8xbf16, #tpu.memory_space<vmem>>, vector<1x8x8xbf16>
    %181 = vector.shape_cast %180 : vector<1x8x8xbf16> to vector<8x8xbf16>
    %cst_161 = arith.constant dense<0.000000e+00> : vector<64x8xf32>
    %182 = tpu.matmul %179, %181, %cst_161 {dimension_numbers = #tpu.dot_dimension_numbers<[1], [0], [0], [1], [0, 0, 1, 1], [], []>} : vector<64x8xbf16>, vector<8x8xbf16>, vector<64x8xf32> -> vector<64x8xf32>
    %183 = arith.addf %176, %182 : vector<64x8xf32>
    %c2_162 = arith.constant 2 : index
    %c0_163 = arith.constant 0 : index
    %c0_164 = arith.constant 0 : index
    %184 = vector.load %arg11[%c2_162, %c0_163, %c0_164] : memref<10x10x8xf32, #tpu.memory_space<vmem>>, vector<8x8x8xf32>
    %185 = vector.shape_cast %184 : vector<8x8x8xf32> to vector<64x8xf32>
    %186 = arith.truncf %185 : vector<64x8xf32> to vector<64x8xbf16>
    %c6_165 = arith.constant 6 : index
    %c0_166 = arith.constant 0 : index
    %c0_167 = arith.constant 0 : index
    %187 = vector.load %arg7[%c6_165, %c0_166, %c0_167] : memref<9x8x8xbf16, #tpu.memory_space<vmem>>, vector<1x8x8xbf16>
    %188 = vector.shape_cast %187 : vector<1x8x8xbf16> to vector<8x8xbf16>
    %cst_168 = arith.constant dense<0.000000e+00> : vector<64x8xf32>
    %189 = tpu.matmul %186, %188, %cst_168 {dimension_numbers = #tpu.dot_dimension_numbers<[1], [0], [0], [1], [0, 0, 1, 1], [], []>} : vector<64x8xbf16>, vector<8x8xbf16>, vector<64x8xf32> -> vector<64x8xf32>
    %190 = arith.addf %183, %189 : vector<64x8xf32>
    %c2_169 = arith.constant 2 : index
    %c1_170 = arith.constant 1 : index
    %c0_171 = arith.constant 0 : index
    %191 = vector.load %arg11[%c2_169, %c1_170, %c0_171] : memref<10x10x8xf32, #tpu.memory_space<vmem>>, vector<8x8x8xf32>
    %192 = vector.shape_cast %191 : vector<8x8x8xf32> to vector<64x8xf32>
    %193 = arith.truncf %192 : vector<64x8xf32> to vector<64x8xbf16>
    %c7_172 = arith.constant 7 : index
    %c0_173 = arith.constant 0 : index
    %c0_174 = arith.constant 0 : index
    %194 = vector.load %arg7[%c7_172, %c0_173, %c0_174] : memref<9x8x8xbf16, #tpu.memory_space<vmem>>, vector<1x8x8xbf16>
    %195 = vector.shape_cast %194 : vector<1x8x8xbf16> to vector<8x8xbf16>
    %cst_175 = arith.constant dense<0.000000e+00> : vector<64x8xf32>
    %196 = tpu.matmul %193, %195, %cst_175 {dimension_numbers = #tpu.dot_dimension_numbers<[1], [0], [0], [1], [0, 0, 1, 1], [], []>} : vector<64x8xbf16>, vector<8x8xbf16>, vector<64x8xf32> -> vector<64x8xf32>
    %197 = arith.addf %190, %196 : vector<64x8xf32>
    %c2_176 = arith.constant 2 : index
    %c2_177 = arith.constant 2 : index
    %c0_178 = arith.constant 0 : index
    %198 = vector.load %arg11[%c2_176, %c2_177, %c0_178] : memref<10x10x8xf32, #tpu.memory_space<vmem>>, vector<8x8x8xf32>
    %199 = vector.shape_cast %198 : vector<8x8x8xf32> to vector<64x8xf32>
    %200 = arith.truncf %199 : vector<64x8xf32> to vector<64x8xbf16>
    %c8_179 = arith.constant 8 : index
    %c0_180 = arith.constant 0 : index
    %c0_181 = arith.constant 0 : index
    %201 = vector.load %arg7[%c8_179, %c0_180, %c0_181] : memref<9x8x8xbf16, #tpu.memory_space<vmem>>, vector<1x8x8xbf16>
    %202 = vector.shape_cast %201 : vector<1x8x8xbf16> to vector<8x8xbf16>
    %cst_182 = arith.constant dense<0.000000e+00> : vector<64x8xf32>
    %203 = tpu.matmul %200, %202, %cst_182 {dimension_numbers = #tpu.dot_dimension_numbers<[1], [0], [0], [1], [0, 0, 1, 1], [], []>} : vector<64x8xbf16>, vector<8x8xbf16>, vector<64x8xf32> -> vector<64x8xf32>
    %204 = arith.addf %197, %203 : vector<64x8xf32>
    %c0_183 = arith.constant 0 : index
    %c0_184 = arith.constant 0 : index
    %c0_185 = arith.constant 0 : index
    %205 = vector.load %arg9[%c0_183, %c0_184, %c0_185] : memref<1x64x8xf32, #tpu.memory_space<vmem>>, vector<1x64x8xf32>
    %206 = vector.shape_cast %205 : vector<1x64x8xf32> to vector<64x8xf32>
    %207 = vector.shape_cast %204 : vector<64x8xf32> to vector<1x64x8xf32>
    tpu.vector_store %arg9[%c0_183, %c0_184, %c0_185], %207 {strides = array<i32>} : memref<1x64x8xf32, #tpu.memory_space<vmem>>, vector<1x64x8xf32>,
    return
  }
  func.func @transform_0(%arg0: i32) -> (i32, i32, i32, i32) {
    %c0_i32 = arith.constant 0 : i32
    %c0_i32_0 = arith.constant 0 : i32
    %c0_i32_1 = arith.constant 0 : i32
    %c0_i32_2 = arith.constant 0 : i32
    return %arg0, %c0_i32, %c0_i32_0, %c0_i32_1 : i32, i32, i32, i32
  }
  func.func @transform_1(%arg0: i32) -> (i32, i32) {
    %c0_i32 = arith.constant 0 : i32
    %c0_i32_0 = arith.constant 0 : i32
    %c0_i32_1 = arith.constant 0 : i32
    return %c0_i32, %c0_i32_0 : i32, i32
  }
  func.func @transform_2(%arg0: i32) -> (i32, i32) {
    %c0_i32 = arith.constant 0 : i32
    %c0_i32_0 = arith.constant 0 : i32
    %c0_i32_1 = arith.constant 0 : i32
    return %c0_i32, %c0_i32_0 : i32, i32
  }
  func.func @transform_3(%arg0: i32) -> (i32, i32, i32) {
    %c0_i32 = arith.constant 0 : i32
    %c0_i32_0 = arith.constant 0 : i32
    %c0_i32_1 = arith.constant 0 : i32
    %c0_i32_2 = arith.constant 0 : i32
    return %c0_i32, %c0_i32_0, %c0_i32_1 : i32, i32, i32
  }
  func.func @transform_4(%arg0: i32) -> (i32, i32) {
    %c0_i32 = arith.constant 0 : i32
    %c0_i32_0 = arith.constant 0 : i32
    %c0_i32_1 = arith.constant 0 : i32
    return %c0_i32, %c0_i32_0 : i32, i32
  }
  func.func @transform_5(%arg0: i32) -> (i32, i32) {
    %c0_i32 = arith.constant 0 : i32
    %c0_i32_0 = arith.constant 0 : i32
    %c0_i32_1 = arith.constant 0 : i32
    return %c0_i32, %c0_i32_0 : i32, i32
  }
  func.func @transform_6(%arg0: i32) -> (i32, i32, i32) {
    %c0_i32 = arith.constant 0 : i32
    %c0_i32_0 = arith.constant 0 : i32
    %c0_i32_1 = arith.constant 0 : i32
    %c0_i32_2 = arith.constant 0 : i32
    return %c0_i32, %c0_i32_0, %c0_i32_1 : i32, i32, i32
  }
  func.func @transform_7(%arg0: i32) -> (i32, i32) {
    %c0_i32 = arith.constant 0 : i32
    %c0_i32_0 = arith.constant 0 : i32
    %c0_i32_1 = arith.constant 0 : i32
    return %c0_i32, %c0_i32_0 : i32, i32
  }
  func.func @transform_8(%arg0: i32) -> (i32, i32, i32) {
    %c0_i32 = arith.constant 0 : i32
    %c0_i32_0 = arith.constant 0 : i32
    %c0_i32_1 = arith.constant 0 : i32
    return %arg0, %c0_i32, %c0_i32_0 : i32, i32, i32
  }
}

</mosaic_0001>

<llo_original>
// kernel: _lambda_.3
$region0: #{_lambda_.3}
  #allocation0 [shape = 'u32[]', space=smem, size = 0x4, offset = 0x4, fixed_abs, tag = 'smem constant byte address 0x4 - core index']
  #allocation1 [shape = 'u32[144,128]{1,0:T(1,128)}', space=vmem, size = 0x12000, scoped, tag = 'internal scratch']
  #allocation2 [shape = 'f32[10,10,8]{2,1,0:T(8,128)}', space=vmem, size = 0x14000, scoped, tag = 'scratch operand']
  #allocation3 [shape = 'f32[10,10,8]{2,1,0:T(8,128)}', space=vmem, size = 0x14000, scoped, tag = 'scratch operand']
  %s0 = inlined_call_operand.vmem [shape: f32[2,8,8,8], index: 0, kind: input, shape index: {}]
  %s1 = inlined_call_operand.vmem [shape: f32[1,8], index: 1, kind: input, shape index: {}]
  %s2 = inlined_call_operand.vmem [shape: f32[1,8], index: 2, kind: input, shape index: {}]
  %s3 = inlined_call_operand.vmem [shape: bf16[9,8,8], index: 3, kind: input, shape index: {}]
  %s4 = inlined_call_operand.vmem [shape: f32[1,8], index: 4, kind: input, shape index: {}]
  %s5 = inlined_call_operand.vmem [shape: f32[1,8], index: 5, kind: input, shape index: {}]
  %s6 = inlined_call_operand.vmem [shape: bf16[9,8,8], index: 6, kind: input, shape index: {}]
  %s7 = inlined_call_operand.vmem [shape: f32[2,64,8], index: 7, kind: output, shape index: {}]
  %s8 = sld [smem:[#allocation0]]
  $region61: #{_lambda_.3} parent=0
    _
  %s10 = ssub.s32 1, %s8
  %s11 = scalar_select 0, %s10, %s8
  loop: start=0, step=1, limit=4
  $region2: #{_lambda_.3} parent=0 // loop_pre_header
    _
  $region3: #{_lambda_.3} parent=0 // loop_header
    %s13 = sphi 0, %s17
    %p14 = scmp.ge.s32.totalorder %s13, 4
    %s23 = sphi 0, %s25
    %s26 = sphi 0, %s23
    %s27 = sphi 0, %s26
    %s43 = sphi 0, %s27
    %s47 = sphi 0, %s47
    %s49 = sphi 0, %s47
    %s50 = sphi 0, %s49
    %s64 = sphi 0, %s50
    %s68 = sphi 0, %s68
    %s70 = sphi 0, %s68
    %s71 = sphi 0, %s70
    %s85 = sphi 0, %s71
    %s89 = sphi 0, %s89
    %s91 = sphi 0, %s89
    %s92 = sphi 0, %s91
    %s106 = sphi 0, %s92
    %s110 = sphi 0, %s110
    %s112 = sphi 0, %s110
    %s113 = sphi 0, %s112
    %s127 = sphi 0, %s113
    %s131 = sphi 0, %s131
    %s133 = sphi 0, %s131
    %s134 = sphi 0, %s133
    %s148 = sphi 0, %s134
    %s152 = sphi 0, %s152
    %s154 = sphi 0, %s152
    %s155 = sphi 0, %s154
    %s169 = sphi 0, %s155
    %s175 = sphi 0, %s177
    %s178 = sphi 0, %s175
    %s179 = sphi 0, %s178
    %s195 = sphi 0, %s179
  $region4: #{_lambda_.3} parent=0 // loop_header_branch
    %16 = sbr.rel (%p14) target = $region8
  $region5: #{_lambda_.3} parent=0 // loop_body
    %s18 = ssub.s32 %s13, 1
    %s19 = ssub.s32 %s13, 2
    %s20 = sadd.s32 %s13, 1
    %s21 = ssub.s32 %s13, %s20
    %p22 = scmp.eq.s32.totalorder %s21, 0
    %s24 = sadd.s32 %s23, 1
    %s25 = scalar_select %p22, %s23, %s24
    %p28 = pneg %p22
    %p29 = scmp.eq.s32.totalorder %s13, 1
    %p30 = por %p28, %p29
    %p31 = scmp.ne.s32.totalorder %s23, %s26
    %p32 = scmp.eq.s32.totalorder %s13, 0
    %p33 = por %p31, %p32
    %p34 = scmp.ne.s32.totalorder %s23, %s26
    %p35 = scmp.eq.s32.totalorder %s18, 1
    %p36 = por %p34, %p35
    %p37 = scmp.ne.s32.totalorder %s26, %s27
    %p38 = scmp.eq.s32.totalorder %s18, 0
    %p39 = por %p37, %p38
    %p40 = scmp.ne.s32.totalorder %s26, %s27
    %p41 = scmp.eq.s32.totalorder %s19, 1
    %p42 = por %p40, %p41
    %p44 = scmp.ne.s32.totalorder %s27, %s43
    %p45 = scmp.eq.s32.totalorder %s19, 0
    %p46 = por %p44, %p45
    %s48 = sadd.s32 %s47, 1
    %p51 = scmp.eq.s32.totalorder %s13, 1
    %p52 = scmp.ne.s32.totalorder %s47, %s49
    %p53 = scmp.eq.s32.totalorder %s13, 0
    %p54 = por %p52, %p53
    %p55 = scmp.ne.s32.totalorder %s47, %s49
    %p56 = scmp.eq.s32.totalorder %s18, 1
    %p57 = por %p55, %p56
    %p58 = scmp.ne.s32.totalorder %s49, %s50
    %p59 = scmp.eq.s32.totalorder %s18, 0
    %p60 = por %p58, %p59
    %p61 = scmp.ne.s32.totalorder %s49, %s50
    %p62 = scmp.eq.s32.totalorder %s19, 1
    %p63 = por %p61, %p62
    %p65 = scmp.ne.s32.totalorder %s50, %s64
    %p66 = scmp.eq.s32.totalorder %s19, 0
    %p67 = por %p65, %p66
    %s69 = sadd.s32 %s68, 1
    %p72 = scmp.eq.s32.totalorder %s13, 1
    %p73 = scmp.ne.s32.totalorder %s68, %s70
    %p74 = scmp.eq.s32.totalorder %s13, 0
    %p75 = por %p73, %p74
    %p76 = scmp.ne.s32.totalorder %s68, %s70
    %p77 = scmp.eq.s32.totalorder %s18, 1
    %p78 = por %p76, %p77
    %p79 = scmp.ne.s32.totalorder %s70, %s71
    %p80 = scmp.eq.s32.totalorder %s18, 0
    %p81 = por %p79, %p80
    %p82 = scmp.ne.s32.totalorder %s70, %s71
    %p83 = scmp.eq.s32.totalorder %s19, 1
    %p84 = por %p82, %p83
    %p86 = scmp.ne.s32.totalorder %s71, %s85
    %p87 = scmp.eq.s32.totalorder %s19, 0
    %p88 = por %p86, %p87
    %s90 = sadd.s32 %s89, 1
    %p93 = scmp.eq.s32.totalorder %s13, 1
    %p94 = scmp.ne.s32.totalorder %s89, %s91
    %p95 = scmp.eq.s32.totalorder %s13, 0
    %p96 = por %p94, %p95
    %p97 = scmp.ne.s32.totalorder %s89, %s91
    %p98 = scmp.eq.s32.totalorder %s18, 1
    %p99 = por %p97, %p98
    %p100 = scmp.ne.s32.totalorder %s91, %s92
    %p101 = scmp.eq.s32.totalorder %s18, 0
    %p102 = por %p100, %p101
    %p103 = scmp.ne.s32.totalorder %s91, %s92
    %p104 = scmp.eq.s32.totalorder %s19, 1
    %p105 = por %p103, %p104
    %p107 = scmp.ne.s32.totalorder %s92, %s106
    %p108 = scmp.eq.s32.totalorder %s19, 0
    %p109 = por %p107, %p108
    %s111 = sadd.s32 %s110, 1
    %p114 = scmp.eq.s32.totalorder %s13, 1
    %p115 = scmp.ne.s32.totalorder %s110, %s112
    %p116 = scmp.eq.s32.totalorder %s13, 0
    %p117 = por %p115, %p116
    %p118 = scmp.ne.s32.totalorder %s110, %s112
    %p119 = scmp.eq.s32.totalorder %s18, 1
    %p120 = por %p118, %p119
    %p121 = scmp.ne.s32.totalorder %s112, %s113
    %p122 = scmp.eq.s32.totalorder %s18, 0
    %p123 = por %p121, %p122
    %p124 = scmp.ne.s32.totalorder %s112, %s113
    %p125 = scmp.eq.s32.totalorder %s19, 1
    %p126 = por %p124, %p125
    %p128 = scmp.ne.s32.totalorder %s113, %s127
    %p129 = scmp.eq.s32.totalorder %s19, 0
    %p130 = por %p128, %p129
    %s132 = sadd.s32 %s131, 1
    %p135 = scmp.eq.s32.totalorder %s13, 1
    %p136 = scmp.ne.s32.totalorder %s131, %s133
    %p137 = scmp.eq.s32.totalorder %s13, 0
    %p138 = por %p136, %p137
    %p139 = scmp.ne.s32.totalorder %s131, %s133
    %p140 = scmp.eq.s32.totalorder %s18, 1
    %p141 = por %p139, %p140
    %p142 = scmp.ne.s32.totalorder %s133, %s134
    %p143 = scmp.eq.s32.totalorder %s18, 0
    %p144 = por %p142, %p143
    %p145 = scmp.ne.s32.totalorder %s133, %s134
    %p146 = scmp.eq.s32.totalorder %s19, 1
    %p147 = por %p145, %p146
    %p149 = scmp.ne.s32.totalorder %s134, %s148
    %p150 = scmp.eq.s32.totalorder %s19, 0
    %p151 = por %p149, %p150
    %s153 = sadd.s32 %s152, 1
    %p156 = scmp.eq.s32.totalorder %s13, 1
    %p157 = scmp.ne.s32.totalorder %s152, %s154
    %p158 = scmp.eq.s32.totalorder %s13, 0
    %p159 = por %p157, %p158
    %p160 = scmp.ne.s32.totalorder %s152, %s154
    %p161 = scmp.eq.s32.totalorder %s18, 1
    %p162 = por %p160, %p161
    %p163 = scmp.ne.s32.totalorder %s154, %s155
    %p164 = scmp.eq.s32.totalorder %s18, 0
    %p165 = por %p163, %p164
    %p166 = scmp.ne.s32.totalorder %s154, %s155
    %p167 = scmp.eq.s32.totalorder %s19, 1
    %p168 = por %p166, %p167
    %p170 = scmp.ne.s32.totalorder %s155, %s169
    %p171 = scmp.eq.s32.totalorder %s19, 0
    %p172 = por %p170, %p171
    %s173 = ssub.s32 %s13, %s20
    %p174 = scmp.eq.s32.totalorder %s173, 0
    %s176 = sadd.s32 %s175, 1
    %s177 = scalar_select %p174, %s175, %s176
    %p180 = pneg %p174
    %p181 = scmp.eq.s32.totalorder %s13, 1
    %p182 = por %p180, %p181
    %p183 = scmp.ne.s32.totalorder %s175, %s178
    %p184 = scmp.eq.s32.totalorder %s13, 0
    %p185 = por %p183, %p184
    %p186 = scmp.ne.s32.totalorder %s175, %s178
    %p187 = scmp.eq.s32.totalorder %s18, 1
    %p188 = por %p186, %p187
    %p189 = scmp.ne.s32.totalorder %s178, %s179
    %p190 = scmp.eq.s32.totalorder %s18, 0
    %p191 = por %p189, %p190
    %p192 = scmp.ne.s32.totalorder %s178, %s179
    %p193 = scmp.eq.s32.totalorder %s19, 1
    %p194 = por %p192, %p193
    %p196 = scmp.ne.s32.totalorder %s179, %s195
    %p197 = scmp.eq.s32.totalorder %s19, 0
    %p198 = por %p196, %p197
    %p199 = scmp.le.s32.totalorder 1, %s13
    %p200 = scmp.lt.s32.totalorder %s13, 3
    %p201 = pnand %p199, %p200
    %p202 = pneg %p201
    // Predicated region
    $region9: #{_lambda_.3} parent=5 // pred_check
      _
    $region10: #{_lambda_.3} parent=5 // pred_check_branch
      %204 = sbr.rel (%p201) target = $region12
    $region11: #{_lambda_.3} parent=5 // pred_region
      %s205 = ssub.s32 %s13, 1
      // Predicated region
      $region13: #{_lambda_.3} parent=11 // pred_check
        %p206 = pneg %p60
      $region14: #{_lambda_.3} parent=11 // pred_check_branch
        %208 = sbr.rel (%p206) target = $region16
      $region15: #{_lambda_.3} parent=11 // pred_region
        _
      $region16: #{_lambda_.3} parent=11 // pred_fallthru
        _
      // Predicated region
      $region17: #{_lambda_.3} parent=11 // pred_check
        %p209 = pneg %p81
      $region18: #{_lambda_.3} parent=11 // pred_check_branch
        %211 = sbr.rel (%p209) target = $region20
      $region19: #{_lambda_.3} parent=11 // pred_region
        _
      $region20: #{_lambda_.3} parent=11 // pred_fallthru
        _
      // Predicated region
      $region21: #{_lambda_.3} parent=11 // pred_check
        %p212 = pneg %p102
      $region22: #{_lambda_.3} parent=11 // pred_check_branch
        %214 = sbr.rel (%p212) target = $region24
      $region23: #{_lambda_.3} parent=11 // pred_region
        _
      $region24: #{_lambda_.3} parent=11 // pred_fallthru
        _
      // Predicated region
      $region25: #{_lambda_.3} parent=11 // pred_check
        %p215 = pneg %p123
      $region26: #{_lambda_.3} parent=11 // pred_check_branch
        %217 = sbr.rel (%p215) target = $region28
      $region27: #{_lambda_.3} parent=11 // pred_region
        _
      $region28: #{_lambda_.3} parent=11 // pred_fallthru
        _
      // Predicated region
      $region29: #{_lambda_.3} parent=11 // pred_check
        %p218 = pneg %p144
      $region30: #{_lambda_.3} parent=11 // pred_check_branch
        %220 = sbr.rel (%p218) target = $region32
      $region31: #{_lambda_.3} parent=11 // pred_region
        _
      $region32: #{_lambda_.3} parent=11 // pred_fallthru
        _
      // Predicated region
      $region33: #{_lambda_.3} parent=11 // pred_check
        %p221 = pneg %p165
      $region34: #{_lambda_.3} parent=11 // pred_check_branch
        %223 = sbr.rel (%p221) target = $region36
      $region35: #{_lambda_.3} parent=11 // pred_region
        _
      $region36: #{_lambda_.3} parent=11 // pred_fallthru
        _
    $region12: #{_lambda_.3} parent=5 // pred_fallthru
      _
    %p224 = scmp.lt.s32.totalorder %s13, 2
    // Predicated region
    $region37: #{_lambda_.3} parent=5 // pred_check
      %p225 = pneg %p224
    $region38: #{_lambda_.3} parent=5 // pred_check_branch
      %227 = sbr.rel (%p225) target = $region40
    $region39: #{_lambda_.3} parent=5 // pred_region
      // Predicated region
      $region41: #{_lambda_.3} parent=39 // pred_check
        %p228 = pneg %p33
      $region42: #{_lambda_.3} parent=39 // pred_check_branch
        %230 = sbr.rel (%p228) target = $region44
      $region43: #{_lambda_.3} parent=39 // pred_region
        %p231 = scmp.lt.s32.totalorder %s13, 1
        %s232 = scalar_select %p231, %s13, 1
        %s233 = smul.addr %s232, 8
        %s234 = smul.addr %s233, 8
        %s235 = scalar_lea.vmem %s0, %s234
      $region44: #{_lambda_.3} parent=39 // pred_fallthru
        _
    $region40: #{_lambda_.3} parent=5 // pred_fallthru
      _
    %p236 = scmp.le.s32.totalorder 1, %s13
    %p237 = scmp.lt.s32.totalorder %s13, 3
    %p238 = pnand %p236, %p237
    %p239 = pneg %p238
    // Predicated region
    $region45: #{_lambda_.3} parent=5 // pred_check
      _
    $region46: #{_lambda_.3} parent=5 // pred_check_branch
      %241 = sbr.rel (%p238) target = $region48
    $region47: #{_lambda_.3} parent=5 // pred_region
      %s242 = ssub.s32 %s13, 1
      %p243 = scmp.lt.s32.totalorder %s18, 1
      %s244 = scalar_select %p243, %s18, 1
      %s245 = smul.addr %s244, 8
      %s246 = smul.addr %s245, 8
      %s247 = scalar_lea.vmem %s0, %s246
      %p248 = pneg %p39
      %p249 = pneg %p36
      %p250 = pneg %p60
      %p251 = pneg %p57
      %p252 = pneg %p81
      %p253 = pneg %p78
      %p254 = pneg %p102
      %p255 = pneg %p99
      %p256 = pneg %p123
      %p257 = pneg %p120
      %p258 = pneg %p144
      %p259 = pneg %p141
      %p260 = pneg %p165
      %p261 = pneg %p162
      %p262 = pneg %p191
      %p263 = pneg %p188
      %p264 = scmp.lt.s32.totalorder %s18, 1
      %s265 = scalar_select %p264, %s18, 1
      %s266 = smul.addr %s265, 8
      %s267 = smul.addr %s266, 8
      %s268 = scalar_lea.vmem %s7, %s267
      %p269 = scmp.lt.s32.totalorder %s18, 1
      %s270 = scalar_select %p269, %s18, 1
      %s271 = smul.addr %s270, 8
      %s272 = smul.addr %s271, 8
      %s273 = scalar_lea.vmem %s0, %s272
      %p274 = scmp.lt.s32.totalorder %s18, 1
      %s275 = scalar_select %p274, %s18, 1
      %s276 = smul.addr %s275, 8
      %s277 = smul.addr %s276, 8
      %s278 = scalar_lea.vmem %s7, %s277
      %v280 = vld [vmem:[%s1] sm:$0x1]
      %v281 = vld [vmem:[%s2] sm:$0x1]
      %v282 = vld [vmem:[%s4] sm:$0x1]
      %v283 = vld [vmem:[%s5] sm:$0x1]
      %vm284 = vcmask 64512
      %285 = vst.msk [vmem:[#allocation2] sm:$0xff] %vm284, 0.0
      %vm286 = vcmask 58368
      %287 = vst.msk [vmem:[#allocation2 + $0x8] sm:$0x3] %vm286, 0.0
      %288 = vst.msk [vmem:[#allocation2 + $0x10] sm:$0xff] %vm284, 0.0
      %289 = vst.msk [vmem:[#allocation2 + $0x18] sm:$0x3] %vm286, 0.0
      %290 = vst.msk [vmem:[#allocation2 + $0x20] sm:$0xff] %vm284, 0.0
      %291 = vst.msk [vmem:[#allocation2 + $0x28] sm:$0x3] %vm286, 0.0
      %292 = vst.msk [vmem:[#allocation2 + $0x30] sm:$0xff] %vm284, 0.0
      %293 = vst.msk [vmem:[#allocation2 + $0x38] sm:$0x3] %vm286, 0.0
      %294 = vst.msk [vmem:[#allocation2 + $0x40] sm:$0xff] %vm284, 0.0
      %295 = vst.msk [vmem:[#allocation2 + $0x48] sm:$0x3] %vm286, 0.0
      %296 = vst.msk [vmem:[#allocation2 + $0x50] sm:$0xff] %vm284, 0.0
      %297 = vst.msk [vmem:[#allocation2 + $0x58] sm:$0x3] %vm286, 0.0
      %298 = vst.msk [vmem:[#allocation2 + $0x60] sm:$0xff] %vm284, 0.0
      %299 = vst.msk [vmem:[#allocation2 + $0x68] sm:$0x3] %vm286, 0.0
      %300 = vst.msk [vmem:[#allocation2 + $0x70] sm:$0xff] %vm284, 0.0
      %301 = vst.msk [vmem:[#allocation2 + $0x78] sm:$0x3] %vm286, 0.0
      %302 = vst.msk [vmem:[#allocation2 + $0x80] sm:$0xff] %vm284, 0.0
      %303 = vst.msk [vmem:[#allocation2 + $0x88] sm:$0x3] %vm286, 0.0
      %304 = vst.msk [vmem:[#allocation2 + $0x90] sm:$0xff] %vm284, 0.0
      %305 = vst.msk [vmem:[#allocation2 + $0x98] sm:$0x3] %vm286, 0.0
      %v306 = vld [vmem:[%s273] sm:$0xff]
      %v307 = vld [vmem:[%s273 + $0x8] sm:$0xff]
      %v308 = vld [vmem:[%s273 + $0x10] sm:$0xff]
      %v309 = vld [vmem:[%s273 + $0x18] sm:$0xff]
      %v310 = vld [vmem:[%s273 + $0x20] sm:$0xff]
      %v311 = vld [vmem:[%s273 + $0x28] sm:$0xff]
      %v312 = vld [vmem:[%s273 + $0x30] sm:$0xff]
      %v313 = vld [vmem:[%s273 + $0x38] sm:$0xff]
      %v315 = vlaneseq
      %v316 = vshrl.u32 %v315, 7
      %v317 = vsub.s32 0, %v316
      %v318 = vrot.slane %v280, %v317
      %v320 = vmul.f32 %v306, %v318
      %v321 = vmul.f32 %v307, %v318
      %v322 = vmul.f32 %v308, %v318
      %v323 = vmul.f32 %v309, %v318
      %v324 = vmul.f32 %v310, %v318
      %v325 = vmul.f32 %v311, %v318
      %v326 = vmul.f32 %v312, %v318
      %v327 = vmul.f32 %v313, %v318
      %v329 = vlaneseq
      %v330 = vshrl.u32 %v329, 7
      %v331 = vsub.s32 0, %v330
      %v332 = vrot.slane %v281, %v331
      %v334 = vadd.f32 %v320, %v332
      %v335 = vadd.f32 %v321, %v332
      %v336 = vadd.f32 %v322, %v332
      %v337 = vadd.f32 %v323, %v332
      %v338 = vadd.f32 %v324, %v332
      %v339 = vadd.f32 %v325, %v332
      %v340 = vadd.f32 %v326, %v332
      %v341 = vadd.f32 %v327, %v332
      %v342 = vmax.f32 %v334, 0.0
      %v343 = vmax.f32 %v335, 0.0
      %v344 = vmax.f32 %v336, 0.0
      %v345 = vmax.f32 %v337, 0.0
      %v346 = vmax.f32 %v338, 0.0
      %v347 = vmax.f32 %v339, 0.0
      %v348 = vmax.f32 %v340, 0.0
      %v349 = vmax.f32 %v341, 0.0
      %s350 = scalar_lea.vmem [#allocation2], 16
      %351 = vst.msk [vmem:[%s350 + $0x1] sm:$0xff] %vm284, %v342
      %352 = vst.msk [vmem:[%s350 + $0x11] sm:$0xff] %vm284, %v343
      %353 = vst.msk [vmem:[%s350 + $0x21] sm:$0xff] %vm284, %v344
      %354 = vst.msk [vmem:[%s350 + $0x31] sm:$0xff] %vm284, %v345
      %355 = vst.msk [vmem:[%s350 + $0x41] sm:$0xff] %vm284, %v346
      %356 = vst.msk [vmem:[%s350 + $0x51] sm:$0xff] %vm284, %v347
      %357 = vst.msk [vmem:[%s350 + $0x61] sm:$0xff] %vm284, %v348
      %358 = vst.msk [vmem:[%s350 + $0x71] sm:$0xff] %vm284, %v349
      %v359 = vld [vmem:[#allocation2] sm:$0xff]
      %v360 = vld [vmem:[#allocation2 + $0x10] sm:$0xff]
      %v361 = vld [vmem:[#allocation2 + $0x20] sm:$0xff]
      %v362 = vld [vmem:[#allocation2 + $0x30] sm:$0xff]
      %v363 = vld [vmem:[#allocation2 + $0x40] sm:$0xff]
      %v364 = vld [vmem:[#allocation2 + $0x50] sm:$0xff]
      %v365 = vld [vmem:[#allocation2 + $0x60] sm:$0xff]
      %v366 = vld [vmem:[#allocation2 + $0x70] sm:$0xff]
      %v367 = vpack.c.bf16 %v360, %v359
      %v368 = vpack.c.bf16 %v362, %v361
      %v369 = vpack.c.bf16 %v364, %v363
      %v370 = vpack.c.bf16 %v366, %v365
      %v371 = vld [vmem:[%s3] sm:$0xf]
      %v372 = vld [vmem:[#allocation2 + $0x1] sm:$0xff]
      %v373 = vld [vmem:[#allocation2 + $0x11] sm:$0xff]
      %v374 = vld [vmem:[#allocation2 + $0x21] sm:$0xff]
      %v375 = vld [vmem:[#allocation2 + $0x31] sm:$0xff]
      %v376 = vld [vmem:[#allocation2 + $0x41] sm:$0xff]
      %v377 = vld [vmem:[#allocation2 + $0x51] sm:$0xff]
      %v378 = vld [vmem:[#allocation2 + $0x61] sm:$0xff]
      %v379 = vld [vmem:[#allocation2 + $0x71] sm:$0xff]
      %v380 = vpack.c.bf16 %v373, %v372
      %v381 = vpack.c.bf16 %v375, %v374
      %v382 = vpack.c.bf16 %v377, %v376
      %v383 = vpack.c.bf16 %v379, %v378
      %s384 = scalar_lea.vmem %s3, 4
      %v385 = vld [vmem:[%s384] sm:$0xf]
      %v387 = vsel %vm284, %v380, 0
      %v390 = vsel %vm284, %v381, 0
      %v393 = vsel %vm284, %v382, 0
      %v396 = vsel %vm284, %v383, 0
      %vm398 = vcmask 1043456
      %v400 = vsel %vm398, %v385, 0
      %402 = vmatprep.subr.bf16.mxu0 0
      %403 = vmatpush1.bf16.msra.mxu0 0
      %404 = vmatprep.subr.bf16.mxu0 0
      %405 = vmatpush1.bf16.msra.mxu0 0
      %406 = vmatprep.subr.bf16.mxu0 0
      %407 = vmatpush1.bf16.msra.mxu0 0
      %408 = vmatprep.subr.bf16.mxu0 0
      %409 = vmatpush1.bf16.msra.mxu0 0
      %410 = vmatprep.subr.bf16.mxu0 0
      %411 = vmatpush1.bf16.msra.mxu0 0
      %412 = vmatprep.subr.bf16.mxu0 0
      %413 = vmatpush1.bf16.msra.mxu0 0
      %414 = vmatprep.subr.bf16.mxu0 0
      %415 = vmatpush1.bf16.msra.mxu0 0
      %416 = vmatprep.subr.bf16.mxu0 0
      %417 = vmatpush1.bf16.msra.mxu0 %v400
      %418 = vmatprep.subr.bf16.mxu0 0
      %419 = vmatpush2.bf16.msra.mxu0 0
      %420 = vmatprep.subr.bf16.mxu0 0
      %421 = vmatpush2.bf16.msra.mxu0 0
      %422 = vmatprep.subr.bf16.mxu0 0
      %423 = vmatpush2.bf16.msra.mxu0 0
      %424 = vmatprep.subr.bf16.mxu0 0
      %425 = vmatpush2.bf16.msra.mxu0 0
      %426 = vmatprep.subr.bf16.mxu0 0
      %427 = vmatpush2.bf16.msra.mxu0 0
      %428 = vmatprep.subr.bf16.mxu0 0
      %429 = vmatpush2.bf16.msra.mxu0 0
      %430 = vmatprep.subr.bf16.mxu0 0
      %431 = vmatpush2.bf16.msra.mxu0 0
      %432 = vmatprep.subr.bf16.mxu0 0
      %433 = vmatpush2.bf16.msra.mxu0 0
      %434 = vmatprep.mubr.bf16.mxu0 0
      %435 = vmatmul.mubr.bf16.gmra.mxu0 %v387
      %v436 = vpop.f32.mrf.mxu0
      %v437 = vadd.f32 0.0, %v436
      %v438 = vpop.f32.mrf.mxu0
      %v439 = vpop.f32.mrf.mxu0
      %v440 = vadd.f32 0.0, %v439
      %v441 = vpop.f32.mrf.mxu0
      %442 = vmatprep.mubr.bf16.mxu0 0
      %443 = vmatmul.mubr.bf16.gmra.mxu0 %v390
      %v444 = vpop.f32.mrf.mxu0
      %v445 = vadd.f32 0.0, %v444
      %v446 = vpop.f32.mrf.mxu0
      %v447 = vpop.f32.mrf.mxu0
      %v448 = vadd.f32 0.0, %v447
      %v449 = vpop.f32.mrf.mxu0
      %450 = vmatprep.mubr.bf16.mxu0 0
      %451 = vmatmul.mubr.bf16.gmra.mxu0 %v393
      %v452 = vpop.f32.mrf.mxu0
      %v453 = vadd.f32 0.0, %v452
      %v454 = vpop.f32.mrf.mxu0
      %v455 = vpop.f32.mrf.mxu0
      %v456 = vadd.f32 0.0, %v455
      %v457 = vpop.f32.mrf.mxu0
      %458 = vmatprep.mubr.bf16.mxu0 0
      %459 = vmatmul.mubr.bf16.gmra.mxu0 %v396
      %v460 = vpop.f32.mrf.mxu0
      %v461 = vadd.f32 0.0, %v460
      %v462 = vpop.f32.mrf.mxu0
      %v463 = vpop.f32.mrf.mxu0
      %v464 = vadd.f32 0.0, %v463
      %v465 = vpop.f32.mrf.mxu0
      %466 = vdwg.mxu0
      %v468 = vsel %vm284, %v367, 0
      %v471 = vsel %vm284, %v368, 0
      %v474 = vsel %vm284, %v369, 0
      %v477 = vsel %vm284, %v370, 0
      %v480 = vsel %vm398, %v371, 0
      %482 = vmatprep.subr.bf16.mxu0 0
      %483 = vmatpush1.bf16.msra.mxu0 0
      %484 = vmatprep.subr.bf16.mxu0 0
      %485 = vmatpush1.bf16.msra.mxu0 0
      %486 = vmatprep.subr.bf16.mxu0 0
      %487 = vmatpush1.bf16.msra.mxu0 0
      %488 = vmatprep.subr.bf16.mxu0 0
      %489 = vmatpush1.bf16.msra.mxu0 0
      %490 = vmatprep.subr.bf16.mxu0 0
      %491 = vmatpush1.bf16.msra.mxu0 0
      %492 = vmatprep.subr.bf16.mxu0 0
      %493 = vmatpush1.bf16.msra.mxu0 0
      %494 = vmatprep.subr.bf16.mxu0 0
      %495 = vmatpush1.bf16.msra.mxu0 0
      %496 = vmatprep.subr.bf16.mxu0 0
      %497 = vmatpush1.bf16.msra.mxu0 %v480
      %498 = vmatprep.subr.bf16.mxu0 0
      %499 = vmatpush2.bf16.msra.mxu0 0
      %500 = vmatprep.subr.bf16.mxu0 0
      %501 = vmatpush2.bf16.msra.mxu0 0
      %502 = vmatprep.subr.bf16.mxu0 0
      %503 = vmatpush2.bf16.msra.mxu0 0
      %504 = vmatprep.subr.bf16.mxu0 0
      %505 = vmatpush2.bf16.msra.mxu0 0
      %506 = vmatprep.subr.bf16.mxu0 0
      %507 = vmatpush2.bf16.msra.mxu0 0
      %508 = vmatprep.subr.bf16.mxu0 0
      %509 = vmatpush2.bf16.msra.mxu0 0
      %510 = vmatprep.subr.bf16.mxu0 0
      %511 = vmatpush2.bf16.msra.mxu0 0
      %512 = vmatprep.subr.bf16.mxu0 0
      %513 = vmatpush2.bf16.msra.mxu0 0
      %514 = vmatprep.mubr.bf16.mxu0 0
      %515 = vmatmul.mubr.bf16.gmra.mxu0 %v468
      %v516 = vpop.f32.mrf.mxu0
      %v517 = vadd.f32 %v437, %v516
      %v518 = vpop.f32.mrf.mxu0
      %v519 = vpop.f32.mrf.mxu0
      %v520 = vadd.f32 %v440, %v519
      %v521 = vpop.f32.mrf.mxu0
      %522 = vmatprep.mubr.bf16.mxu0 0
      %523 = vmatmul.mubr.bf16.gmra.mxu0 %v471
      %v524 = vpop.f32.mrf.mxu0
      %v525 = vadd.f32 %v445, %v524
      %v526 = vpop.f32.mrf.mxu0
      %v527 = vpop.f32.mrf.mxu0
      %v528 = vadd.f32 %v448, %v527
      %v529 = vpop.f32.mrf.mxu0
      %530 = vmatprep.mubr.bf16.mxu0 0
      %531 = vmatmul.mubr.bf16.gmra.mxu0 %v474
      %v532 = vpop.f32.mrf.mxu0
      %v533 = vadd.f32 %v453, %v532
      %v534 = vpop.f32.mrf.mxu0
      %v535 = vpop.f32.mrf.mxu0
      %v536 = vadd.f32 %v456, %v535
      %v537 = vpop.f32.mrf.mxu0
      %538 = vmatprep.mubr.bf16.mxu0 0
      %539 = vmatmul.mubr.bf16.gmra.mxu0 %v477
      %v540 = vpop.f32.mrf.mxu0
      %v541 = vadd.f32 %v461, %v540
      %v542 = vpop.f32.mrf.mxu0
      %v543 = vpop.f32.mrf.mxu0
      %v544 = vadd.f32 %v464, %v543
      %v545 = vpop.f32.mrf.mxu0
      %546 = vdwg.mxu0
      %v547 = vld [vmem:[#allocation2 + $0x2] sm:$0xff]
      %v548 = vld [vmem:[#allocation2 + $0x12] sm:$0xff]
      %v549 = vld [vmem:[#allocation2 + $0x22] sm:$0xff]
      %v550 = vld [vmem:[#allocation2 + $0x32] sm:$0xff]
      %v551 = vld [vmem:[#allocation2 + $0x42] sm:$0xff]
      %v552 = vld [vmem:[#allocation2 + $0x52] sm:$0xff]
      %v553 = vld [vmem:[#allocation2 + $0x62] sm:$0xff]
      %v554 = vld [vmem:[#allocation2 + $0x72] sm:$0xff]
      %v555 = vpack.c.bf16 %v548, %v547
      %v556 = vpack.c.bf16 %v550, %v549
      %v557 = vpack.c.bf16 %v552, %v551
      %v558 = vpack.c.bf16 %v554, %v553
      %s559 = scalar_lea.vmem %s3, 8
      %v560 = vld [vmem:[%s559] sm:$0xf]
      %v562 = vsel %vm284, %v555, 0
      %v565 = vsel %vm284, %v556, 0
      %v568 = vsel %vm284, %v557, 0
      %v571 = vsel %vm284, %v558, 0
      %v574 = vsel %vm398, %v560, 0
      %576 = vmatprep.subr.bf16.mxu0 0
      %577 = vmatpush1.bf16.msra.mxu0 0
      %578 = vmatprep.subr.bf16.mxu0 0
      %579 = vmatpush1.bf16.msra.mxu0 0
      %580 = vmatprep.subr.bf16.mxu0 0
      %581 = vmatpush1.bf16.msra.mxu0 0
      %582 = vmatprep.subr.bf16.mxu0 0
      %583 = vmatpush1.bf16.msra.mxu0 0
      %584 = vmatprep.subr.bf16.mxu0 0
      %585 = vmatpush1.bf16.msra.mxu0 0
      %586 = vmatprep.subr.bf16.mxu0 0
      %587 = vmatpush1.bf16.msra.mxu0 0
      %588 = vmatprep.subr.bf16.mxu0 0
      %589 = vmatpush1.bf16.msra.mxu0 0
      %590 = vmatprep.subr.bf16.mxu0 0
      %591 = vmatpush1.bf16.msra.mxu0 %v574
      %592 = vmatprep.subr.bf16.mxu0 0
      %593 = vmatpush2.bf16.msra.mxu0 0
      %594 = vmatprep.subr.bf16.mxu0 0
      %595 = vmatpush2.bf16.msra.mxu0 0
      %596 = vmatprep.subr.bf16.mxu0 0
      %597 = vmatpush2.bf16.msra.mxu0 0
      %598 = vmatprep.subr.bf16.mxu0 0
      %599 = vmatpush2.bf16.msra.mxu0 0
      %600 = vmatprep.subr.bf16.mxu0 0
      %601 = vmatpush2.bf16.msra.mxu0 0
      %602 = vmatprep.subr.bf16.mxu0 0
      %603 = vmatpush2.bf16.msra.mxu0 0
      %604 = vmatprep.subr.bf16.mxu0 0
      %605 = vmatpush2.bf16.msra.mxu0 0
      %606 = vmatprep.subr.bf16.mxu0 0
      %607 = vmatpush2.bf16.msra.mxu0 0
      %608 = vmatprep.mubr.bf16.mxu0 0
      %609 = vmatmul.mubr.bf16.gmra.mxu0 %v562
      %v610 = vpop.f32.mrf.mxu0
      %v611 = vadd.f32 0.0, %v610
      %v612 = vpop.f32.mrf.mxu0
      %v613 = vpop.f32.mrf.mxu0
      %v614 = vadd.f32 0.0, %v613
      %v615 = vpop.f32.mrf.mxu0
      %616 = vmatprep.mubr.bf16.mxu0 0
      %617 = vmatmul.mubr.bf16.gmra.mxu0 %v565
      %v618 = vpop.f32.mrf.mxu0
      %v619 = vadd.f32 0.0, %v618
      %v620 = vpop.f32.mrf.mxu0
      %v621 = vpop.f32.mrf.mxu0
      %v622 = vadd.f32 0.0, %v621
      %v623 = vpop.f32.mrf.mxu0
      %624 = vmatprep.mubr.bf16.mxu0 0
      %625 = vmatmul.mubr.bf16.gmra.mxu0 %v568
      %v626 = vpop.f32.mrf.mxu0
      %v627 = vadd.f32 0.0, %v626
      %v628 = vpop.f32.mrf.mxu0
      %v629 = vpop.f32.mrf.mxu0
      %v630 = vadd.f32 0.0, %v629
      %v631 = vpop.f32.mrf.mxu0
      %632 = vmatprep.mubr.bf16.mxu0 0
      %633 = vmatmul.mubr.bf16.gmra.mxu0 %v571
      %v634 = vpop.f32.mrf.mxu0
      %v635 = vadd.f32 0.0, %v634
      %v636 = vpop.f32.mrf.mxu0
      %v637 = vpop.f32.mrf.mxu0
      %v638 = vadd.f32 0.0, %v637
      %v639 = vpop.f32.mrf.mxu0
      %640 = vdwg.mxu0
      %v641 = vadd.f32 %v517, %v611
      %v642 = vadd.f32 %v520, %v614
      %v643 = vadd.f32 %v525, %v619
      %v644 = vadd.f32 %v528, %v622
      %v645 = vadd.f32 %v533, %v627
      %v646 = vadd.f32 %v536, %v630
      %v647 = vadd.f32 %v541, %v635
      %v648 = vadd.f32 %v544, %v638
      %v649 = vld [vmem:[%s350] sm:$0xff]
      %v650 = vld [vmem:[%s350 + $0x10] sm:$0xff]
      %v651 = vld [vmem:[%s350 + $0x20] sm:$0xff]
      %v652 = vld [vmem:[%s350 + $0x30] sm:$0xff]
      %v653 = vld [vmem:[%s350 + $0x40] sm:$0xff]
      %v654 = vld [vmem:[%s350 + $0x50] sm:$0xff]
      %v655 = vld [vmem:[%s350 + $0x60] sm:$0xff]
      %v656 = vld [vmem:[%s350 + $0x70] sm:$0xff]
      %v657 = vpack.c.bf16 %v650, %v649
      %v658 = vpack.c.bf16 %v652, %v651
      %v659 = vpack.c.bf16 %v654, %v653
      %v660 = vpack.c.bf16 %v656, %v655
      %s661 = scalar_lea.vmem %s3, 12
      %v662 = vld [vmem:[%s661] sm:$0xf]
      %v664 = vsel %vm284, %v657, 0
      %v667 = vsel %vm284, %v658, 0
      %v670 = vsel %vm284, %v659, 0
      %v673 = vsel %vm284, %v660, 0
      %v676 = vsel %vm398, %v662, 0
      %678 = vmatprep.subr.bf16.mxu0 0
      %679 = vmatpush1.bf16.msra.mxu0 0
      %680 = vmatprep.subr.bf16.mxu0 0
      %681 = vmatpush1.bf16.msra.mxu0 0
      %682 = vmatprep.subr.bf16.mxu0 0
      %683 = vmatpush1.bf16.msra.mxu0 0
      %684 = vmatprep.subr.bf16.mxu0 0
      %685 = vmatpush1.bf16.msra.mxu0 0
      %686 = vmatprep.subr.bf16.mxu0 0
      %687 = vmatpush1.bf16.msra.mxu0 0
      %688 = vmatprep.subr.bf16.mxu0 0
      %689 = vmatpush1.bf16.msra.mxu0 0
      %690 = vmatprep.subr.bf16.mxu0 0
      %691 = vmatpush1.bf16.msra.mxu0 0
      %692 = vmatprep.subr.bf16.mxu0 0
      %693 = vmatpush1.bf16.msra.mxu0 %v676
      %694 = vmatprep.subr.bf16.mxu0 0
      %695 = vmatpush2.bf16.msra.mxu0 0
      %696 = vmatprep.subr.bf16.mxu0 0
      %697 = vmatpush2.bf16.msra.mxu0 0
      %698 = vmatprep.subr.bf16.mxu0 0
      %699 = vmatpush2.bf16.msra.mxu0 0
      %700 = vmatprep.subr.bf16.mxu0 0
      %701 = vmatpush2.bf16.msra.mxu0 0
      %702 = vmatprep.subr.bf16.mxu0 0
      %703 = vmatpush2.bf16.msra.mxu0 0
      %704 = vmatprep.subr.bf16.mxu0 0
      %705 = vmatpush2.bf16.msra.mxu0 0
      %706 = vmatprep.subr.bf16.mxu0 0
      %707 = vmatpush2.bf16.msra.mxu0 0
      %708 = vmatprep.subr.bf16.mxu0 0
      %709 = vmatpush2.bf16.msra.mxu0 0
      %710 = vmatprep.mubr.bf16.mxu0 0
      %711 = vmatmul.mubr.bf16.gmra.mxu0 %v664
      %v712 = vpop.f32.mrf.mxu0
      %v713 = vadd.f32 0.0, %v712
      %v714 = vpop.f32.mrf.mxu0
      %v715 = vpop.f32.mrf.mxu0
      %v716 = vadd.f32 0.0, %v715
      %v717 = vpop.f32.mrf.mxu0
      %718 = vmatprep.mubr.bf16.mxu0 0
      %719 = vmatmul.mubr.bf16.gmra.mxu0 %v667
      %v720 = vpop.f32.mrf.mxu0
      %v721 = vadd.f32 0.0, %v720
      %v722 = vpop.f32.mrf.mxu0
      %v723 = vpop.f32.mrf.mxu0
      %v724 = vadd.f32 0.0, %v723
      %v725 = vpop.f32.mrf.mxu0
      %726 = vmatprep.mubr.bf16.mxu0 0
      %727 = vmatmul.mubr.bf16.gmra.mxu0 %v670
      %v728 = vpop.f32.mrf.mxu0
      %v729 = vadd.f32 0.0, %v728
      %v730 = vpop.f32.mrf.mxu0
      %v731 = vpop.f32.mrf.mxu0
      %v732 = vadd.f32 0.0, %v731
      %v733 = vpop.f32.mrf.mxu0
      %734 = vmatprep.mubr.bf16.mxu0 0
      %735 = vmatmul.mubr.bf16.gmra.mxu0 %v673
      %v736 = vpop.f32.mrf.mxu0
      %v737 = vadd.f32 0.0, %v736
      %v738 = vpop.f32.mrf.mxu0
      %v739 = vpop.f32.mrf.mxu0
      %v740 = vadd.f32 0.0, %v739
      %v741 = vpop.f32.mrf.mxu0
      %742 = vdwg.mxu0
      %v743 = vadd.f32 %v641, %v713
      %v744 = vadd.f32 %v642, %v716
      %v745 = vadd.f32 %v643, %v721
      %v746 = vadd.f32 %v644, %v724
      %v747 = vadd.f32 %v645, %v729
      %v748 = vadd.f32 %v646, %v732
      %v749 = vadd.f32 %v647, %v737
      %v750 = vadd.f32 %v648, %v740
      %v751 = vld [vmem:[%s350 + $0x1] sm:$0xff]
      %v752 = vld [vmem:[%s350 + $0x11] sm:$0xff]
      %v753 = vld [vmem:[%s350 + $0x21] sm:$0xff]
      %v754 = vld [vmem:[%s350 + $0x31] sm:$0xff]
      %v755 = vld [vmem:[%s350 + $0x41] sm:$0xff]
      %v756 = vld [vmem:[%s350 + $0x51] sm:$0xff]
      %v757 = vld [vmem:[%s350 + $0x61] sm:$0xff]
      %v758 = vld [vmem:[%s350 + $0x71] sm:$0xff]
      %v759 = vpack.c.bf16 %v752, %v751
      %v760 = vpack.c.bf16 %v754, %v753
      %v761 = vpack.c.bf16 %v756, %v755
      %v762 = vpack.c.bf16 %v758, %v757
      %s763 = scalar_lea.vmem %s3, 16
      %v764 = vld [vmem:[%s763] sm:$0xf]
      %v766 = vsel %vm284, %v759, 0
      %v769 = vsel %vm284, %v760, 0
      %v772 = vsel %vm284, %v761, 0
      %v775 = vsel %vm284, %v762, 0
      %v778 = vsel %vm398, %v764, 0
      %780 = vmatprep.subr.bf16.mxu0 0
      %781 = vmatpush1.bf16.msra.mxu0 0
      %782 = vmatprep.subr.bf16.mxu0 0
      %783 = vmatpush1.bf16.msra.mxu0 0
      %784 = vmatprep.subr.bf16.mxu0 0
      %785 = vmatpush1.bf16.msra.mxu0 0
      %786 = vmatprep.subr.bf16.mxu0 0
      %787 = vmatpush1.bf16.msra.mxu0 0
      %788 = vmatprep.subr.bf16.mxu0 0
      %789 = vmatpush1.bf16.msra.mxu0 0
      %790 = vmatprep.subr.bf16.mxu0 0
      %791 = vmatpush1.bf16.msra.mxu0 0
      %792 = vmatprep.subr.bf16.mxu0 0
      %793 = vmatpush1.bf16.msra.mxu0 0
      %794 = vmatprep.subr.bf16.mxu0 0
      %795 = vmatpush1.bf16.msra.mxu0 %v778
      %796 = vmatprep.subr.bf16.mxu0 0
      %797 = vmatpush2.bf16.msra.mxu0 0
      %798 = vmatprep.subr.bf16.mxu0 0
      %799 = vmatpush2.bf16.msra.mxu0 0
      %800 = vmatprep.subr.bf16.mxu0 0
      %801 = vmatpush2.bf16.msra.mxu0 0
      %802 = vmatprep.subr.bf16.mxu0 0
      %803 = vmatpush2.bf16.msra.mxu0 0
      %804 = vmatprep.subr.bf16.mxu0 0
      %805 = vmatpush2.bf16.msra.mxu0 0
      %806 = vmatprep.subr.bf16.mxu0 0
      %807 = vmatpush2.bf16.msra.mxu0 0
      %808 = vmatprep.subr.bf16.mxu0 0
      %809 = vmatpush2.bf16.msra.mxu0 0
      %810 = vmatprep.subr.bf16.mxu0 0
      %811 = vmatpush2.bf16.msra.mxu0 0
      %812 = vmatprep.mubr.bf16.mxu0 0
      %813 = vmatmul.mubr.bf16.gmra.mxu0 %v766
      %v814 = vpop.f32.mrf.mxu0
      %v815 = vadd.f32 0.0, %v814
      %v816 = vpop.f32.mrf.mxu0
      %v817 = vpop.f32.mrf.mxu0
      %v818 = vadd.f32 0.0, %v817
      %v819 = vpop.f32.mrf.mxu0
      %820 = vmatprep.mubr.bf16.mxu0 0
      %821 = vmatmul.mubr.bf16.gmra.mxu0 %v769
      %v822 = vpop.f32.mrf.mxu0
      %v823 = vadd.f32 0.0, %v822
      %v824 = vpop.f32.mrf.mxu0
      %v825 = vpop.f32.mrf.mxu0
      %v826 = vadd.f32 0.0, %v825
      %v827 = vpop.f32.mrf.mxu0
      %828 = vmatprep.mubr.bf16.mxu0 0
      %829 = vmatmul.mubr.bf16.gmra.mxu0 %v772
      %v830 = vpop.f32.mrf.mxu0
      %v831 = vadd.f32 0.0, %v830
      %v832 = vpop.f32.mrf.mxu0
      %v833 = vpop.f32.mrf.mxu0
      %v834 = vadd.f32 0.0, %v833
      %v835 = vpop.f32.mrf.mxu0
      %836 = vmatprep.mubr.bf16.mxu0 0
      %837 = vmatmul.mubr.bf16.gmra.mxu0 %v775
      %v838 = vpop.f32.mrf.mxu0
      %v839 = vadd.f32 0.0, %v838
      %v840 = vpop.f32.mrf.mxu0
      %v841 = vpop.f32.mrf.mxu0
      %v842 = vadd.f32 0.0, %v841
      %v843 = vpop.f32.mrf.mxu0
      %844 = vdwg.mxu0
      %v845 = vadd.f32 %v743, %v815
      %v846 = vadd.f32 %v744, %v818
      %v847 = vadd.f32 %v745, %v823
      %v848 = vadd.f32 %v746, %v826
      %v849 = vadd.f32 %v747, %v831
      %v850 = vadd.f32 %v748, %v834
      %v851 = vadd.f32 %v749, %v839
      %v852 = vadd.f32 %v750, %v842
      %v853 = vld [vmem:[%s350 + $0x2] sm:$0xff]
      %v854 = vld [vmem:[%s350 + $0x12] sm:$0xff]
      %v855 = vld [vmem:[%s350 + $0x22] sm:$0xff]
      %v856 = vld [vmem:[%s350 + $0x32] sm:$0xff]
      %v857 = vld [vmem:[%s350 + $0x42] sm:$0xff]
      %v858 = vld [vmem:[%s350 + $0x52] sm:$0xff]
      %v859 = vld [vmem:[%s350 + $0x62] sm:$0xff]
      %v860 = vld [vmem:[%s350 + $0x72] sm:$0xff]
      %v861 = vpack.c.bf16 %v854, %v853
      %v862 = vpack.c.bf16 %v856, %v855
      %v863 = vpack.c.bf16 %v858, %v857
      %v864 = vpack.c.bf16 %v860, %v859
      %s865 = scalar_lea.vmem %s3, 20
      %v866 = vld [vmem:[%s865] sm:$0xf]
      %v868 = vsel %vm284, %v861, 0
      %v871 = vsel %vm284, %v862, 0
      %v874 = vsel %vm284, %v863, 0
      %v877 = vsel %vm284, %v864, 0
      %v880 = vsel %vm398, %v866, 0
      %882 = vmatprep.subr.bf16.mxu0 0
      %883 = vmatpush1.bf16.msra.mxu0 0
      %884 = vmatprep.subr.bf16.mxu0 0
      %885 = vmatpush1.bf16.msra.mxu0 0
      %886 = vmatprep.subr.bf16.mxu0 0
      %887 = vmatpush1.bf16.msra.mxu0 0
      %888 = vmatprep.subr.bf16.mxu0 0
      %889 = vmatpush1.bf16.msra.mxu0 0
      %890 = vmatprep.subr.bf16.mxu0 0
      %891 = vmatpush1.bf16.msra.mxu0 0
      %892 = vmatprep.subr.bf16.mxu0 0
      %893 = vmatpush1.bf16.msra.mxu0 0
      %894 = vmatprep.subr.bf16.mxu0 0
      %895 = vmatpush1.bf16.msra.mxu0 0
      %896 = vmatprep.subr.bf16.mxu0 0
      %897 = vmatpush1.bf16.msra.mxu0 %v880
      %898 = vmatprep.subr.bf16.mxu0 0
      %899 = vmatpush2.bf16.msra.mxu0 0
      %900 = vmatprep.subr.bf16.mxu0 0
      %901 = vmatpush2.bf16.msra.mxu0 0
      %902 = vmatprep.subr.bf16.mxu0 0
      %903 = vmatpush2.bf16.msra.mxu0 0
      %904 = vmatprep.subr.bf16.mxu0 0
      %905 = vmatpush2.bf16.msra.mxu0 0
      %906 = vmatprep.subr.bf16.mxu0 0
      %907 = vmatpush2.bf16.msra.mxu0 0
      %908 = vmatprep.subr.bf16.mxu0 0
      %909 = vmatpush2.bf16.msra.mxu0 0
      %910 = vmatprep.subr.bf16.mxu0 0
      %911 = vmatpush2.bf16.msra.mxu0 0
      %912 = vmatprep.subr.bf16.mxu0 0
      %913 = vmatpush2.bf16.msra.mxu0 0
      %914 = vmatprep.mubr.bf16.mxu0 0
      %915 = vmatmul.mubr.bf16.gmra.mxu0 %v868
      %v916 = vpop.f32.mrf.mxu0
      %v917 = vadd.f32 0.0, %v916
      %v918 = vpop.f32.mrf.mxu0
      %v919 = vpop.f32.mrf.mxu0
      %v920 = vadd.f32 0.0, %v919
      %v921 = vpop.f32.mrf.mxu0
      %922 = vmatprep.mubr.bf16.mxu0 0
      %923 = vmatmul.mubr.bf16.gmra.mxu0 %v871
      %v924 = vpop.f32.mrf.mxu0
      %v925 = vadd.f32 0.0, %v924
      %v926 = vpop.f32.mrf.mxu0
      %v927 = vpop.f32.mrf.mxu0
      %v928 = vadd.f32 0.0, %v927
      %v929 = vpop.f32.mrf.mxu0
      %930 = vmatprep.mubr.bf16.mxu0 0
      %931 = vmatmul.mubr.bf16.gmra.mxu0 %v874
      %v932 = vpop.f32.mrf.mxu0
      %v933 = vadd.f32 0.0, %v932
      %v934 = vpop.f32.mrf.mxu0
      %v935 = vpop.f32.mrf.mxu0
      %v936 = vadd.f32 0.0, %v935
      %v937 = vpop.f32.mrf.mxu0
      %938 = vmatprep.mubr.bf16.mxu0 0
      %939 = vmatmul.mubr.bf16.gmra.mxu0 %v877
      %v940 = vpop.f32.mrf.mxu0
      %v941 = vadd.f32 0.0, %v940
      %v942 = vpop.f32.mrf.mxu0
      %v943 = vpop.f32.mrf.mxu0
      %v944 = vadd.f32 0.0, %v943
      %v945 = vpop.f32.mrf.mxu0
      %946 = vdwg.mxu0
      %v947 = vadd.f32 %v845, %v917
      %v948 = vadd.f32 %v846, %v920
      %v949 = vadd.f32 %v847, %v925
      %v950 = vadd.f32 %v848, %v928
      %v951 = vadd.f32 %v849, %v933
      %v952 = vadd.f32 %v850, %v936
      %v953 = vadd.f32 %v851, %v941
      %v954 = vadd.f32 %v852, %v944
      %s955 = scalar_lea.vmem [#allocation2], 32
      %v956 = vld [vmem:[%s955] sm:$0xff]
      %v957 = vld [vmem:[%s955 + $0x10] sm:$0xff]
      %v958 = vld [vmem:[%s955 + $0x20] sm:$0xff]
      %v959 = vld [vmem:[%s955 + $0x30] sm:$0xff]
      %v960 = vld [vmem:[%s955 + $0x40] sm:$0xff]
      %v961 = vld [vmem:[%s955 + $0x50] sm:$0xff]
      %v962 = vld [vmem:[%s955 + $0x60] sm:$0xff]
      %v963 = vld [vmem:[%s955 + $0x70] sm:$0xff]
      %v964 = vpack.c.bf16 %v957, %v956
      %v965 = vpack.c.bf16 %v959, %v958
      %v966 = vpack.c.bf16 %v961, %v960
      %v967 = vpack.c.bf16 %v963, %v962
      %s968 = scalar_lea.vmem %s3, 24
      %v969 = vld [vmem:[%s968] sm:$0xf]
      %v971 = vsel %vm284, %v964, 0
      %v974 = vsel %vm284, %v965, 0
      %v977 = vsel %vm284, %v966, 0
      %v980 = vsel %vm284, %v967, 0
      %v983 = vsel %vm398, %v969, 0
      %985 = vmatprep.subr.bf16.mxu0 0
      %986 = vmatpush1.bf16.msra.mxu0 0
      %987 = vmatprep.subr.bf16.mxu0 0
      %988 = vmatpush1.bf16.msra.mxu0 0
      %989 = vmatprep.subr.bf16.mxu0 0
      %990 = vmatpush1.bf16.msra.mxu0 0
      %991 = vmatprep.subr.bf16.mxu0 0
      %992 = vmatpush1.bf16.msra.mxu0 0
      %993 = vmatprep.subr.bf16.mxu0 0
      %994 = vmatpush1.bf16.msra.mxu0 0
      %995 = vmatprep.subr.bf16.mxu0 0
      %996 = vmatpush1.bf16.msra.mxu0 0
      %997 = vmatprep.subr.bf16.mxu0 0
      %998 = vmatpush1.bf16.msra.mxu0 0
      %999 = vmatprep.subr.bf16.mxu0 0
      %1000 = vmatpush1.bf16.msra.mxu0 %v983
      %1001 = vmatprep.subr.bf16.mxu0 0
      %1002 = vmatpush2.bf16.msra.mxu0 0
      %1003 = vmatprep.subr.bf16.mxu0 0
      %1004 = vmatpush2.bf16.msra.mxu0 0
      %1005 = vmatprep.subr.bf16.mxu0 0
      %1006 = vmatpush2.bf16.msra.mxu0 0
      %1007 = vmatprep.subr.bf16.mxu0 0
      %1008 = vmatpush2.bf16.msra.mxu0 0
      %1009 = vmatprep.subr.bf16.mxu0 0
      %1010 = vmatpush2.bf16.msra.mxu0 0
      %1011 = vmatprep.subr.bf16.mxu0 0
      %1012 = vmatpush2.bf16.msra.mxu0 0
      %1013 = vmatprep.subr.bf16.mxu0 0
      %1014 = vmatpush2.bf16.msra.mxu0 0
      %1015 = vmatprep.subr.bf16.mxu0 0
      %1016 = vmatpush2.bf16.msra.mxu0 0
      %1017 = vmatprep.mubr.bf16.mxu0 0
      %1018 = vmatmul.mubr.bf16.gmra.mxu0 %v971
      %v1019 = vpop.f32.mrf.mxu0
      %v1020 = vadd.f32 0.0, %v1019
      %v1021 = vpop.f32.mrf.mxu0
      %v1022 = vpop.f32.mrf.mxu0
      %v1023 = vadd.f32 0.0, %v1022
      %v1024 = vpop.f32.mrf.mxu0
      %1025 = vmatprep.mubr.bf16.mxu0 0
      %1026 = vmatmul.mubr.bf16.gmra.mxu0 %v974
      %v1027 = vpop.f32.mrf.mxu0
      %v1028 = vadd.f32 0.0, %v1027
      %v1029 = vpop.f32.mrf.mxu0
      %v1030 = vpop.f32.mrf.mxu0
      %v1031 = vadd.f32 0.0, %v1030
      %v1032 = vpop.f32.mrf.mxu0
      %1033 = vmatprep.mubr.bf16.mxu0 0
      %1034 = vmatmul.mubr.bf16.gmra.mxu0 %v977
      %v1035 = vpop.f32.mrf.mxu0
      %v1036 = vadd.f32 0.0, %v1035
      %v1037 = vpop.f32.mrf.mxu0
      %v1038 = vpop.f32.mrf.mxu0
      %v1039 = vadd.f32 0.0, %v1038
      %v1040 = vpop.f32.mrf.mxu0
      %1041 = vmatprep.mubr.bf16.mxu0 0
      %1042 = vmatmul.mubr.bf16.gmra.mxu0 %v980
      %v1043 = vpop.f32.mrf.mxu0
      %v1044 = vadd.f32 0.0, %v1043
      %v1045 = vpop.f32.mrf.mxu0
      %v1046 = vpop.f32.mrf.mxu0
      %v1047 = vadd.f32 0.0, %v1046
      %v1048 = vpop.f32.mrf.mxu0
      %1049 = vdwg.mxu0
      %v1050 = vadd.f32 %v947, %v1020
      %v1051 = vadd.f32 %v948, %v1023
      %v1052 = vadd.f32 %v949, %v1028
      %v1053 = vadd.f32 %v950, %v1031
      %v1054 = vadd.f32 %v951, %v1036
      %v1055 = vadd.f32 %v952, %v1039
      %v1056 = vadd.f32 %v953, %v1044
      %v1057 = vadd.f32 %v954, %v1047
      %v1058 = vld [vmem:[%s955 + $0x1] sm:$0xff]
      %v1059 = vld [vmem:[%s955 + $0x11] sm:$0xff]
      %v1060 = vld [vmem:[%s955 + $0x21] sm:$0xff]
      %v1061 = vld [vmem:[%s955 + $0x31] sm:$0xff]
      %v1062 = vld [vmem:[%s955 + $0x41] sm:$0xff]
      %v1063 = vld [vmem:[%s955 + $0x51] sm:$0xff]
      %v1064 = vld [vmem:[%s955 + $0x61] sm:$0xff]
      %v1065 = vld [vmem:[%s955 + $0x71] sm:$0xff]
      %v1066 = vpack.c.bf16 %v1059, %v1058
      %v1067 = vpack.c.bf16 %v1061, %v1060
      %v1068 = vpack.c.bf16 %v1063, %v1062
      %v1069 = vpack.c.bf16 %v1065, %v1064
      %s1070 = scalar_lea.vmem %s3, 28
      %v1071 = vld [vmem:[%s1070] sm:$0xf]
      %v1073 = vsel %vm284, %v1066, 0
      %v1076 = vsel %vm284, %v1067, 0
      %v1079 = vsel %vm284, %v1068, 0
      %v1082 = vsel %vm284, %v1069, 0
      %v1085 = vsel %vm398, %v1071, 0
      %1087 = vmatprep.subr.bf16.mxu0 0
      %1088 = vmatpush1.bf16.msra.mxu0 0
      %1089 = vmatprep.subr.bf16.mxu0 0
      %1090 = vmatpush1.bf16.msra.mxu0 0
      %1091 = vmatprep.subr.bf16.mxu0 0
      %1092 = vmatpush1.bf16.msra.mxu0 0
      %1093 = vmatprep.subr.bf16.mxu0 0
      %1094 = vmatpush1.bf16.msra.mxu0 0
      %1095 = vmatprep.subr.bf16.mxu0 0
      %1096 = vmatpush1.bf16.msra.mxu0 0
      %1097 = vmatprep.subr.bf16.mxu0 0
      %1098 = vmatpush1.bf16.msra.mxu0 0
      %1099 = vmatprep.subr.bf16.mxu0 0
      %1100 = vmatpush1.bf16.msra.mxu0 0
      %1101 = vmatprep.subr.bf16.mxu0 0
      %1102 = vmatpush1.bf16.msra.mxu0 %v1085
      %1103 = vmatprep.subr.bf16.mxu0 0
      %1104 = vmatpush2.bf16.msra.mxu0 0
      %1105 = vmatprep.subr.bf16.mxu0 0
      %1106 = vmatpush2.bf16.msra.mxu0 0
      %1107 = vmatprep.subr.bf16.mxu0 0
      %1108 = vmatpush2.bf16.msra.mxu0 0
      %1109 = vmatprep.subr.bf16.mxu0 0
      %1110 = vmatpush2.bf16.msra.mxu0 0
      %1111 = vmatprep.subr.bf16.mxu0 0
      %1112 = vmatpush2.bf16.msra.mxu0 0
      %1113 = vmatprep.subr.bf16.mxu0 0
      %1114 = vmatpush2.bf16.msra.mxu0 0
      %1115 = vmatprep.subr.bf16.mxu0 0
      %1116 = vmatpush2.bf16.msra.mxu0 0
      %1117 = vmatprep.subr.bf16.mxu0 0
      %1118 = vmatpush2.bf16.msra.mxu0 0
      %1119 = vmatprep.mubr.bf16.mxu0 0
      %1120 = vmatmul.mubr.bf16.gmra.mxu0 %v1073
      %v1121 = vpop.f32.mrf.mxu0
      %v1122 = vadd.f32 0.0, %v1121
      %v1123 = vpop.f32.mrf.mxu0
      %v1124 = vpop.f32.mrf.mxu0
      %v1125 = vadd.f32 0.0, %v1124
      %v1126 = vpop.f32.mrf.mxu0
      %1127 = vmatprep.mubr.bf16.mxu0 0
      %1128 = vmatmul.mubr.bf16.gmra.mxu0 %v1076
      %v1129 = vpop.f32.mrf.mxu0
      %v1130 = vadd.f32 0.0, %v1129
      %v1131 = vpop.f32.mrf.mxu0
      %v1132 = vpop.f32.mrf.mxu0
      %v1133 = vadd.f32 0.0, %v1132
      %v1134 = vpop.f32.mrf.mxu0
      %1135 = vmatprep.mubr.bf16.mxu0 0
      %1136 = vmatmul.mubr.bf16.gmra.mxu0 %v1079
      %v1137 = vpop.f32.mrf.mxu0
      %v1138 = vadd.f32 0.0, %v1137
      %v1139 = vpop.f32.mrf.mxu0
      %v1140 = vpop.f32.mrf.mxu0
      %v1141 = vadd.f32 0.0, %v1140
      %v1142 = vpop.f32.mrf.mxu0
      %1143 = vmatprep.mubr.bf16.mxu0 0
      %1144 = vmatmul.mubr.bf16.gmra.mxu0 %v1082
      %v1145 = vpop.f32.mrf.mxu0
      %v1146 = vadd.f32 0.0, %v1145
      %v1147 = vpop.f32.mrf.mxu0
      %v1148 = vpop.f32.mrf.mxu0
      %v1149 = vadd.f32 0.0, %v1148
      %v1150 = vpop.f32.mrf.mxu0
      %1151 = vdwg.mxu0
      %v1152 = vadd.f32 %v1050, %v1122
      %v1153 = vadd.f32 %v1051, %v1125
      %v1154 = vadd.f32 %v1052, %v1130
      %v1155 = vadd.f32 %v1053, %v1133
      %v1156 = vadd.f32 %v1054, %v1138
      %v1157 = vadd.f32 %v1055, %v1141
      %v1158 = vadd.f32 %v1056, %v1146
      %v1159 = vadd.f32 %v1057, %v1149
      %v1160 = vld [vmem:[%s955 + $0x2] sm:$0xff]
      %v1161 = vld [vmem:[%s955 + $0x12] sm:$0xff]
      %v1162 = vld [vmem:[%s955 + $0x22] sm:$0xff]
      %v1163 = vld [vmem:[%s955 + $0x32] sm:$0xff]
      %v1164 = vld [vmem:[%s955 + $0x42] sm:$0xff]
      %v1165 = vld [vmem:[%s955 + $0x52] sm:$0xff]
      %v1166 = vld [vmem:[%s955 + $0x62] sm:$0xff]
      %v1167 = vld [vmem:[%s955 + $0x72] sm:$0xff]
      %v1168 = vpack.c.bf16 %v1161, %v1160
      %v1169 = vpack.c.bf16 %v1163, %v1162
      %v1170 = vpack.c.bf16 %v1165, %v1164
      %v1171 = vpack.c.bf16 %v1167, %v1166
      %s1172 = scalar_lea.vmem %s3, 32
      %v1173 = vld [vmem:[%s1172] sm:$0xf]
      %v1175 = vsel %vm284, %v1168, 0
      %v1178 = vsel %vm284, %v1169, 0
      %v1181 = vsel %vm284, %v1170, 0
      %v1184 = vsel %vm284, %v1171, 0
      %v1187 = vsel %vm398, %v1173, 0
      %1189 = vmatprep.subr.bf16.mxu0 0
      %1190 = vmatpush1.bf16.msra.mxu0 0
      %1191 = vmatprep.subr.bf16.mxu0 0
      %1192 = vmatpush1.bf16.msra.mxu0 0
      %1193 = vmatprep.subr.bf16.mxu0 0
      %1194 = vmatpush1.bf16.msra.mxu0 0
      %1195 = vmatprep.subr.bf16.mxu0 0
      %1196 = vmatpush1.bf16.msra.mxu0 0
      %1197 = vmatprep.subr.bf16.mxu0 0
      %1198 = vmatpush1.bf16.msra.mxu0 0
      %1199 = vmatprep.subr.bf16.mxu0 0
      %1200 = vmatpush1.bf16.msra.mxu0 0
      %1201 = vmatprep.subr.bf16.mxu0 0
      %1202 = vmatpush1.bf16.msra.mxu0 0
      %1203 = vmatprep.subr.bf16.mxu0 0
      %1204 = vmatpush1.bf16.msra.mxu0 %v1187
      %1205 = vmatprep.subr.bf16.mxu0 0
      %1206 = vmatpush2.bf16.msra.mxu0 0
      %1207 = vmatprep.subr.bf16.mxu0 0
      %1208 = vmatpush2.bf16.msra.mxu0 0
      %1209 = vmatprep.subr.bf16.mxu0 0
      %1210 = vmatpush2.bf16.msra.mxu0 0
      %1211 = vmatprep.subr.bf16.mxu0 0
      %1212 = vmatpush2.bf16.msra.mxu0 0
      %1213 = vmatprep.subr.bf16.mxu0 0
      %1214 = vmatpush2.bf16.msra.mxu0 0
      %1215 = vmatprep.subr.bf16.mxu0 0
      %1216 = vmatpush2.bf16.msra.mxu0 0
      %1217 = vmatprep.subr.bf16.mxu0 0
      %1218 = vmatpush2.bf16.msra.mxu0 0
      %1219 = vmatprep.subr.bf16.mxu0 0
      %1220 = vmatpush2.bf16.msra.mxu0 0
      %1221 = vmatprep.mubr.bf16.mxu0 0
      %1222 = vmatmul.mubr.bf16.gmra.mxu0 %v1175
      %v1223 = vpop.f32.mrf.mxu0
      %v1224 = vadd.f32 0.0, %v1223
      %v1225 = vpop.f32.mrf.mxu0
      %v1226 = vpop.f32.mrf.mxu0
      %v1227 = vadd.f32 0.0, %v1226
      %v1228 = vpop.f32.mrf.mxu0
      %1229 = vmatprep.mubr.bf16.mxu0 0
      %1230 = vmatmul.mubr.bf16.gmra.mxu0 %v1178
      %v1231 = vpop.f32.mrf.mxu0
      %v1232 = vadd.f32 0.0, %v1231
      %v1233 = vpop.f32.mrf.mxu0
      %v1234 = vpop.f32.mrf.mxu0
      %v1235 = vadd.f32 0.0, %v1234
      %v1236 = vpop.f32.mrf.mxu0
      %1237 = vmatprep.mubr.bf16.mxu0 0
      %1238 = vmatmul.mubr.bf16.gmra.mxu0 %v1181
      %v1239 = vpop.f32.mrf.mxu0
      %v1240 = vadd.f32 0.0, %v1239
      %v1241 = vpop.f32.mrf.mxu0
      %v1242 = vpop.f32.mrf.mxu0
      %v1243 = vadd.f32 0.0, %v1242
      %v1244 = vpop.f32.mrf.mxu0
      %1245 = vmatprep.mubr.bf16.mxu0 0
      %1246 = vmatmul.mubr.bf16.gmra.mxu0 %v1184
      %v1247 = vpop.f32.mrf.mxu0
      %v1248 = vadd.f32 0.0, %v1247
      %v1249 = vpop.f32.mrf.mxu0
      %v1250 = vpop.f32.mrf.mxu0
      %v1251 = vadd.f32 0.0, %v1250
      %v1252 = vpop.f32.mrf.mxu0
      %1253 = vdwg.mxu0
      %v1254 = vadd.f32 %v1152, %v1224
      %v1255 = vadd.f32 %v1153, %v1227
      %v1256 = vadd.f32 %v1154, %v1232
      %v1257 = vadd.f32 %v1155, %v1235
      %v1258 = vadd.f32 %v1156, %v1240
      %v1259 = vadd.f32 %v1157, %v1243
      %v1260 = vadd.f32 %v1158, %v1248
      %v1261 = vadd.f32 %v1159, %v1251
      %v1263 = vlaneseq
      %v1264 = vshrl.u32 %v1263, 7
      %v1265 = vsub.s32 0, %v1264
      %v1266 = vrot.slane %v282, %v1265
      %v1268 = vmul.f32 %v1254, %v1266
      %v1269 = vmul.f32 %v1255, %v1266
      %v1270 = vmul.f32 %v1256, %v1266
      %v1271 = vmul.f32 %v1257, %v1266
      %v1272 = vmul.f32 %v1258, %v1266
      %v1273 = vmul.f32 %v1259, %v1266
      %v1274 = vmul.f32 %v1260, %v1266
      %v1275 = vmul.f32 %v1261, %v1266
      %v1277 = vlaneseq
      %v1278 = vshrl.u32 %v1277, 7
      %v1279 = vsub.s32 0, %v1278
      %v1280 = vrot.slane %v283, %v1279
      %v1282 = vadd.f32 %v1268, %v1280
      %v1283 = vadd.f32 %v1269, %v1280
      %v1284 = vadd.f32 %v1270, %v1280
      %v1285 = vadd.f32 %v1271, %v1280
      %v1286 = vadd.f32 %v1272, %v1280
      %v1287 = vadd.f32 %v1273, %v1280
      %v1288 = vadd.f32 %v1274, %v1280
      %v1289 = vadd.f32 %v1275, %v1280
      %v1290 = vmax.f32 %v1282, 0.0
      %v1291 = vmax.f32 %v1283, 0.0
      %v1292 = vmax.f32 %v1284, 0.0
      %v1293 = vmax.f32 %v1285, 0.0
      %v1294 = vmax.f32 %v1286, 0.0
      %v1295 = vmax.f32 %v1287, 0.0
      %v1296 = vmax.f32 %v1288, 0.0
      %v1297 = vmax.f32 %v1289, 0.0
      %1298 = vst.msk [vmem:[#allocation3] sm:$0xff] %vm284, 0.0
      %1299 = vst.msk [vmem:[#allocation3 + $0x8] sm:$0x3] %vm286, 0.0
      %1300 = vst.msk [vmem:[#allocation3 + $0x10] sm:$0xff] %vm284, 0.0
      %1301 = vst.msk [vmem:[#allocation3 + $0x18] sm:$0x3] %vm286, 0.0
      %1302 = vst.msk [vmem:[#allocation3 + $0x20] sm:$0xff] %vm284, 0.0
      %1303 = vst.msk [vmem:[#allocation3 + $0x28] sm:$0x3] %vm286, 0.0
      %1304 = vst.msk [vmem:[#allocation3 + $0x30] sm:$0xff] %vm284, 0.0
      %1305 = vst.msk [vmem:[#allocation3 + $0x38] sm:$0x3] %vm286, 0.0
      %1306 = vst.msk [vmem:[#allocation3 + $0x40] sm:$0xff] %vm284, 0.0
      %1307 = vst.msk [vmem:[#allocation3 + $0x48] sm:$0x3] %vm286, 0.0
      %1308 = vst.msk [vmem:[#allocation3 + $0x50] sm:$0xff] %vm284, 0.0
      %1309 = vst.msk [vmem:[#allocation3 + $0x58] sm:$0x3] %vm286, 0.0
      %1310 = vst.msk [vmem:[#allocation3 + $0x60] sm:$0xff] %vm284, 0.0
      %1311 = vst.msk [vmem:[#allocation3 + $0x68] sm:$0x3] %vm286, 0.0
      %1312 = vst.msk [vmem:[#allocation3 + $0x70] sm:$0xff] %vm284, 0.0
      %1313 = vst.msk [vmem:[#allocation3 + $0x78] sm:$0x3] %vm286, 0.0
      %1314 = vst.msk [vmem:[#allocation3 + $0x80] sm:$0xff] %vm284, 0.0
      %1315 = vst.msk [vmem:[#allocation3 + $0x88] sm:$0x3] %vm286, 0.0
      %1316 = vst.msk [vmem:[#allocation3 + $0x90] sm:$0xff] %vm284, 0.0
      %1317 = vst.msk [vmem:[#allocation3 + $0x98] sm:$0x3] %vm286, 0.0
      %s1318 = scalar_lea.vmem [#allocation3], 16
      %1319 = vst.msk [vmem:[%s1318 + $0x1] sm:$0xff] %vm284, %v1290
      %1320 = vst.msk [vmem:[%s1318 + $0x11] sm:$0xff] %vm284, %v1291
      %1321 = vst.msk [vmem:[%s1318 + $0x21] sm:$0xff] %vm284, %v1292
      %1322 = vst.msk [vmem:[%s1318 + $0x31] sm:$0xff] %vm284, %v1293
      %1323 = vst.msk [vmem:[%s1318 + $0x41] sm:$0xff] %vm284, %v1294
      %1324 = vst.msk [vmem:[%s1318 + $0x51] sm:$0xff] %vm284, %v1295
      %1325 = vst.msk [vmem:[%s1318 + $0x61] sm:$0xff] %vm284, %v1296
      %1326 = vst.msk [vmem:[%s1318 + $0x71] sm:$0xff] %vm284, %v1297
      %v1327 = vld [vmem:[%s273] sm:$0xff]
      %v1328 = vld [vmem:[%s273 + $0x8] sm:$0xff]
      %v1329 = vld [vmem:[%s273 + $0x10] sm:$0xff]
      %v1330 = vld [vmem:[%s273 + $0x18] sm:$0xff]
      %v1331 = vld [vmem:[%s273 + $0x20] sm:$0xff]
      %v1332 = vld [vmem:[%s273 + $0x28] sm:$0xff]
      %v1333 = vld [vmem:[%s273 + $0x30] sm:$0xff]
      %v1334 = vld [vmem:[%s273 + $0x38] sm:$0xff]
      %v1335 = vld [vmem:[#allocation3] sm:$0xff]
      %v1336 = vld [vmem:[#allocation3 + $0x10] sm:$0xff]
      %v1337 = vld [vmem:[#allocation3 + $0x20] sm:$0xff]
      %v1338 = vld [vmem:[#allocation3 + $0x30] sm:$0xff]
      %v1339 = vld [vmem:[#allocation3 + $0x40] sm:$0xff]
      %v1340 = vld [vmem:[#allocation3 + $0x50] sm:$0xff]
      %v1341 = vld [vmem:[#allocation3 + $0x60] sm:$0xff]
      %v1342 = vld [vmem:[#allocation3 + $0x70] sm:$0xff]
      %v1343 = vpack.c.bf16 %v1336, %v1335
      %v1344 = vpack.c.bf16 %v1338, %v1337
      %v1345 = vpack.c.bf16 %v1340, %v1339
      %v1346 = vpack.c.bf16 %v1342, %v1341
      %v1347 = vld [vmem:[%s6] sm:$0xf]
      %v1349 = vsel %vm284, %v1343, 0
      %v1352 = vsel %vm284, %v1344, 0
      %v1355 = vsel %vm284, %v1345, 0
      %v1358 = vsel %vm284, %v1346, 0
      %v1361 = vsel %vm398, %v1347, 0
      %1363 = vmatprep.subr.bf16.mxu0 0
      %1364 = vmatpush1.bf16.msra.mxu0 0
      %1365 = vmatprep.subr.bf16.mxu0 0
      %1366 = vmatpush1.bf16.msra.mxu0 0
      %1367 = vmatprep.subr.bf16.mxu0 0
      %1368 = vmatpush1.bf16.msra.mxu0 0
      %1369 = vmatprep.subr.bf16.mxu0 0
      %1370 = vmatpush1.bf16.msra.mxu0 0
      %1371 = vmatprep.subr.bf16.mxu0 0
      %1372 = vmatpush1.bf16.msra.mxu0 0
      %1373 = vmatprep.subr.bf16.mxu0 0
      %1374 = vmatpush1.bf16.msra.mxu0 0
      %1375 = vmatprep.subr.bf16.mxu0 0
      %1376 = vmatpush1.bf16.msra.mxu0 0
      %1377 = vmatprep.subr.bf16.mxu0 0
      %1378 = vmatpush1.bf16.msra.mxu0 %v1361
      %1379 = vmatprep.subr.bf16.mxu0 0
      %1380 = vmatpush2.bf16.msra.mxu0 0
      %1381 = vmatprep.subr.bf16.mxu0 0
      %1382 = vmatpush2.bf16.msra.mxu0 0
      %1383 = vmatprep.subr.bf16.mxu0 0
      %1384 = vmatpush2.bf16.msra.mxu0 0
      %1385 = vmatprep.subr.bf16.mxu0 0
      %1386 = vmatpush2.bf16.msra.mxu0 0
      %1387 = vmatprep.subr.bf16.mxu0 0
      %1388 = vmatpush2.bf16.msra.mxu0 0
      %1389 = vmatprep.subr.bf16.mxu0 0
      %1390 = vmatpush2.bf16.msra.mxu0 0
      %1391 = vmatprep.subr.bf16.mxu0 0
      %1392 = vmatpush2.bf16.msra.mxu0 0
      %1393 = vmatprep.subr.bf16.mxu0 0
      %1394 = vmatpush2.bf16.msra.mxu0 0
      %1395 = vmatprep.mubr.bf16.mxu0 0
      %1396 = vmatmul.mubr.bf16.gmra.mxu0 %v1349
      %v1397 = vpop.f32.mrf.mxu0
      %v1398 = vadd.f32 0.0, %v1397
      %v1399 = vpop.f32.mrf.mxu0
      %v1400 = vpop.f32.mrf.mxu0
      %v1401 = vadd.f32 0.0, %v1400
      %v1402 = vpop.f32.mrf.mxu0
      %1403 = vmatprep.mubr.bf16.mxu0 0
      %1404 = vmatmul.mubr.bf16.gmra.mxu0 %v1352
      %v1405 = vpop.f32.mrf.mxu0
      %v1406 = vadd.f32 0.0, %v1405
      %v1407 = vpop.f32.mrf.mxu0
      %v1408 = vpop.f32.mrf.mxu0
      %v1409 = vadd.f32 0.0, %v1408
      %v1410 = vpop.f32.mrf.mxu0
      %1411 = vmatprep.mubr.bf16.mxu0 0
      %1412 = vmatmul.mubr.bf16.gmra.mxu0 %v1355
      %v1413 = vpop.f32.mrf.mxu0
      %v1414 = vadd.f32 0.0, %v1413
      %v1415 = vpop.f32.mrf.mxu0
      %v1416 = vpop.f32.mrf.mxu0
      %v1417 = vadd.f32 0.0, %v1416
      %v1418 = vpop.f32.mrf.mxu0
      %1419 = vmatprep.mubr.bf16.mxu0 0
      %1420 = vmatmul.mubr.bf16.gmra.mxu0 %v1358
      %v1421 = vpop.f32.mrf.mxu0
      %v1422 = vadd.f32 0.0, %v1421
      %v1423 = vpop.f32.mrf.mxu0
      %v1424 = vpop.f32.mrf.mxu0
      %v1425 = vadd.f32 0.0, %v1424
      %v1426 = vpop.f32.mrf.mxu0
      %1427 = vdwg.mxu0
      %v1428 = vadd.f32 %v1327, %v1398
      %v1429 = vadd.f32 %v1328, %v1401
      %v1430 = vadd.f32 %v1329, %v1406
      %v1431 = vadd.f32 %v1330, %v1409
      %v1432 = vadd.f32 %v1331, %v1414
      %v1433 = vadd.f32 %v1332, %v1417
      %v1434 = vadd.f32 %v1333, %v1422
      %v1435 = vadd.f32 %v1334, %v1425
      %v1436 = vld [vmem:[#allocation3 + $0x1] sm:$0xff]
      %v1437 = vld [vmem:[#allocation3 + $0x11] sm:$0xff]
      %v1438 = vld [vmem:[#allocation3 + $0x21] sm:$0xff]
      %v1439 = vld [vmem:[#allocation3 + $0x31] sm:$0xff]
      %v1440 = vld [vmem:[#allocation3 + $0x41] sm:$0xff]
      %v1441 = vld [vmem:[#allocation3 + $0x51] sm:$0xff]
      %v1442 = vld [vmem:[#allocation3 + $0x61] sm:$0xff]
      %v1443 = vld [vmem:[#allocation3 + $0x71] sm:$0xff]
      %v1444 = vpack.c.bf16 %v1437, %v1436
      %v1445 = vpack.c.bf16 %v1439, %v1438
      %v1446 = vpack.c.bf16 %v1441, %v1440
      %v1447 = vpack.c.bf16 %v1443, %v1442
      %s1448 = scalar_lea.vmem %s6, 4
      %v1449 = vld [vmem:[%s1448] sm:$0xf]
      %v1451 = vsel %vm284, %v1444, 0
      %v1454 = vsel %vm284, %v1445, 0
      %v1457 = vsel %vm284, %v1446, 0
      %v1460 = vsel %vm284, %v1447, 0
      %v1463 = vsel %vm398, %v1449, 0
      %1465 = vmatprep.subr.bf16.mxu0 0
      %1466 = vmatpush1.bf16.msra.mxu0 0
      %1467 = vmatprep.subr.bf16.mxu0 0
      %1468 = vmatpush1.bf16.msra.mxu0 0
      %1469 = vmatprep.subr.bf16.mxu0 0
      %1470 = vmatpush1.bf16.msra.mxu0 0
      %1471 = vmatprep.subr.bf16.mxu0 0
      %1472 = vmatpush1.bf16.msra.mxu0 0
      %1473 = vmatprep.subr.bf16.mxu0 0
      %1474 = vmatpush1.bf16.msra.mxu0 0
      %1475 = vmatprep.subr.bf16.mxu0 0
      %1476 = vmatpush1.bf16.msra.mxu0 0
      %1477 = vmatprep.subr.bf16.mxu0 0
      %1478 = vmatpush1.bf16.msra.mxu0 0
      %1479 = vmatprep.subr.bf16.mxu0 0
      %1480 = vmatpush1.bf16.msra.mxu0 %v1463
      %1481 = vmatprep.subr.bf16.mxu0 0
      %1482 = vmatpush2.bf16.msra.mxu0 0
      %1483 = vmatprep.subr.bf16.mxu0 0
      %1484 = vmatpush2.bf16.msra.mxu0 0
      %1485 = vmatprep.subr.bf16.mxu0 0
      %1486 = vmatpush2.bf16.msra.mxu0 0
      %1487 = vmatprep.subr.bf16.mxu0 0
      %1488 = vmatpush2.bf16.msra.mxu0 0
      %1489 = vmatprep.subr.bf16.mxu0 0
      %1490 = vmatpush2.bf16.msra.mxu0 0
      %1491 = vmatprep.subr.bf16.mxu0 0
      %1492 = vmatpush2.bf16.msra.mxu0 0
      %1493 = vmatprep.subr.bf16.mxu0 0
      %1494 = vmatpush2.bf16.msra.mxu0 0
      %1495 = vmatprep.subr.bf16.mxu0 0
      %1496 = vmatpush2.bf16.msra.mxu0 0
      %1497 = vmatprep.mubr.bf16.mxu0 0
      %1498 = vmatmul.mubr.bf16.gmra.mxu0 %v1451
      %v1499 = vpop.f32.mrf.mxu0
      %v1500 = vadd.f32 0.0, %v1499
      %v1501 = vpop.f32.mrf.mxu0
      %v1502 = vpop.f32.mrf.mxu0
      %v1503 = vadd.f32 0.0, %v1502
      %v1504 = vpop.f32.mrf.mxu0
      %1505 = vmatprep.mubr.bf16.mxu0 0
      %1506 = vmatmul.mubr.bf16.gmra.mxu0 %v1454
      %v1507 = vpop.f32.mrf.mxu0
      %v1508 = vadd.f32 0.0, %v1507
      %v1509 = vpop.f32.mrf.mxu0
      %v1510 = vpop.f32.mrf.mxu0
      %v1511 = vadd.f32 0.0, %v1510
      %v1512 = vpop.f32.mrf.mxu0
      %1513 = vmatprep.mubr.bf16.mxu0 0
      %1514 = vmatmul.mubr.bf16.gmra.mxu0 %v1457
      %v1515 = vpop.f32.mrf.mxu0
      %v1516 = vadd.f32 0.0, %v1515
      %v1517 = vpop.f32.mrf.mxu0
      %v1518 = vpop.f32.mrf.mxu0
      %v1519 = vadd.f32 0.0, %v1518
      %v1520 = vpop.f32.mrf.mxu0
      %1521 = vmatprep.mubr.bf16.mxu0 0
      %1522 = vmatmul.mubr.bf16.gmra.mxu0 %v1460
      %v1523 = vpop.f32.mrf.mxu0
      %v1524 = vadd.f32 0.0, %v1523
      %v1525 = vpop.f32.mrf.mxu0
      %v1526 = vpop.f32.mrf.mxu0
      %v1527 = vadd.f32 0.0, %v1526
      %v1528 = vpop.f32.mrf.mxu0
      %1529 = vdwg.mxu0
      %v1530 = vadd.f32 %v1428, %v1500
      %v1531 = vadd.f32 %v1429, %v1503
      %v1532 = vadd.f32 %v1430, %v1508
      %v1533 = vadd.f32 %v1431, %v1511
      %v1534 = vadd.f32 %v1432, %v1516
      %v1535 = vadd.f32 %v1433, %v1519
      %v1536 = vadd.f32 %v1434, %v1524
      %v1537 = vadd.f32 %v1435, %v1527
      %v1538 = vld [vmem:[#allocation3 + $0x2] sm:$0xff]
      %v1539 = vld [vmem:[#allocation3 + $0x12] sm:$0xff]
      %v1540 = vld [vmem:[#allocation3 + $0x22] sm:$0xff]
      %v1541 = vld [vmem:[#allocation3 + $0x32] sm:$0xff]
      %v1542 = vld [vmem:[#allocation3 + $0x42] sm:$0xff]
      %v1543 = vld [vmem:[#allocation3 + $0x52] sm:$0xff]
      %v1544 = vld [vmem:[#allocation3 + $0x62] sm:$0xff]
      %v1545 = vld [vmem:[#allocation3 + $0x72] sm:$0xff]
      %v1546 = vpack.c.bf16 %v1539, %v1538
      %v1547 = vpack.c.bf16 %v1541, %v1540
      %v1548 = vpack.c.bf16 %v1543, %v1542
      %v1549 = vpack.c.bf16 %v1545, %v1544
      %s1550 = scalar_lea.vmem %s6, 8
      %v1551 = vld [vmem:[%s1550] sm:$0xf]
      %v1553 = vsel %vm284, %v1546, 0
      %v1556 = vsel %vm284, %v1547, 0
      %v1559 = vsel %vm284, %v1548, 0
      %v1562 = vsel %vm284, %v1549, 0
      %v1565 = vsel %vm398, %v1551, 0
      %1567 = vmatprep.subr.bf16.mxu0 0
      %1568 = vmatpush1.bf16.msra.mxu0 0
      %1569 = vmatprep.subr.bf16.mxu0 0
      %1570 = vmatpush1.bf16.msra.mxu0 0
      %1571 = vmatprep.subr.bf16.mxu0 0
      %1572 = vmatpush1.bf16.msra.mxu0 0
      %1573 = vmatprep.subr.bf16.mxu0 0
      %1574 = vmatpush1.bf16.msra.mxu0 0
      %1575 = vmatprep.subr.bf16.mxu0 0
      %1576 = vmatpush1.bf16.msra.mxu0 0
      %1577 = vmatprep.subr.bf16.mxu0 0
      %1578 = vmatpush1.bf16.msra.mxu0 0
      %1579 = vmatprep.subr.bf16.mxu0 0
      %1580 = vmatpush1.bf16.msra.mxu0 0
      %1581 = vmatprep.subr.bf16.mxu0 0
      %1582 = vmatpush1.bf16.msra.mxu0 %v1565
      %1583 = vmatprep.subr.bf16.mxu0 0
      %1584 = vmatpush2.bf16.msra.mxu0 0
      %1585 = vmatprep.subr.bf16.mxu0 0
      %1586 = vmatpush2.bf16.msra.mxu0 0
      %1587 = vmatprep.subr.bf16.mxu0 0
      %1588 = vmatpush2.bf16.msra.mxu0 0
      %1589 = vmatprep.subr.bf16.mxu0 0
      %1590 = vmatpush2.bf16.msra.mxu0 0
      %1591 = vmatprep.subr.bf16.mxu0 0
      %1592 = vmatpush2.bf16.msra.mxu0 0
      %1593 = vmatprep.subr.bf16.mxu0 0
      %1594 = vmatpush2.bf16.msra.mxu0 0
      %1595 = vmatprep.subr.bf16.mxu0 0
      %1596 = vmatpush2.bf16.msra.mxu0 0
      %1597 = vmatprep.subr.bf16.mxu0 0
      %1598 = vmatpush2.bf16.msra.mxu0 0
      %1599 = vmatprep.mubr.bf16.mxu0 0
      %1600 = vmatmul.mubr.bf16.gmra.mxu0 %v1553
      %v1601 = vpop.f32.mrf.mxu0
      %v1602 = vadd.f32 0.0, %v1601
      %v1603 = vpop.f32.mrf.mxu0
      %v1604 = vpop.f32.mrf.mxu0
      %v1605 = vadd.f32 0.0, %v1604
      %v1606 = vpop.f32.mrf.mxu0
      %1607 = vmatprep.mubr.bf16.mxu0 0
      %1608 = vmatmul.mubr.bf16.gmra.mxu0 %v1556
      %v1609 = vpop.f32.mrf.mxu0
      %v1610 = vadd.f32 0.0, %v1609
      %v1611 = vpop.f32.mrf.mxu0
      %v1612 = vpop.f32.mrf.mxu0
      %v1613 = vadd.f32 0.0, %v1612
      %v1614 = vpop.f32.mrf.mxu0
      %1615 = vmatprep.mubr.bf16.mxu0 0
      %1616 = vmatmul.mubr.bf16.gmra.mxu0 %v1559
      %v1617 = vpop.f32.mrf.mxu0
      %v1618 = vadd.f32 0.0, %v1617
      %v1619 = vpop.f32.mrf.mxu0
      %v1620 = vpop.f32.mrf.mxu0
      %v1621 = vadd.f32 0.0, %v1620
      %v1622 = vpop.f32.mrf.mxu0
      %1623 = vmatprep.mubr.bf16.mxu0 0
      %1624 = vmatmul.mubr.bf16.gmra.mxu0 %v1562
      %v1625 = vpop.f32.mrf.mxu0
      %v1626 = vadd.f32 0.0, %v1625
      %v1627 = vpop.f32.mrf.mxu0
      %v1628 = vpop.f32.mrf.mxu0
      %v1629 = vadd.f32 0.0, %v1628
      %v1630 = vpop.f32.mrf.mxu0
      %1631 = vdwg.mxu0
      %v1632 = vadd.f32 %v1530, %v1602
      %v1633 = vadd.f32 %v1531, %v1605
      %v1634 = vadd.f32 %v1532, %v1610
      %v1635 = vadd.f32 %v1533, %v1613
      %v1636 = vadd.f32 %v1534, %v1618
      %v1637 = vadd.f32 %v1535, %v1621
      %v1638 = vadd.f32 %v1536, %v1626
      %v1639 = vadd.f32 %v1537, %v1629
      %v1640 = vld [vmem:[%s1318] sm:$0xff]
      %v1641 = vld [vmem:[%s1318 + $0x10] sm:$0xff]
      %v1642 = vld [vmem:[%s1318 + $0x20] sm:$0xff]
      %v1643 = vld [vmem:[%s1318 + $0x30] sm:$0xff]
      %v1644 = vld [vmem:[%s1318 + $0x40] sm:$0xff]
      %v1645 = vld [vmem:[%s1318 + $0x50] sm:$0xff]
      %v1646 = vld [vmem:[%s1318 + $0x60] sm:$0xff]
      %v1647 = vld [vmem:[%s1318 + $0x70] sm:$0xff]
      %v1648 = vpack.c.bf16 %v1641, %v1640
      %v1649 = vpack.c.bf16 %v1643, %v1642
      %v1650 = vpack.c.bf16 %v1645, %v1644
      %v1651 = vpack.c.bf16 %v1647, %v1646
      %s1652 = scalar_lea.vmem %s6, 12
      %v1653 = vld [vmem:[%s1652] sm:$0xf]
      %v1655 = vsel %vm284, %v1648, 0
      %v1658 = vsel %vm284, %v1649, 0
      %v1661 = vsel %vm284, %v1650, 0
      %v1664 = vsel %vm284, %v1651, 0
      %v1667 = vsel %vm398, %v1653, 0
      %1669 = vmatprep.subr.bf16.mxu0 0
      %1670 = vmatpush1.bf16.msra.mxu0 0
      %1671 = vmatprep.subr.bf16.mxu0 0
      %1672 = vmatpush1.bf16.msra.mxu0 0
      %1673 = vmatprep.subr.bf16.mxu0 0
      %1674 = vmatpush1.bf16.msra.mxu0 0
      %1675 = vmatprep.subr.bf16.mxu0 0
      %1676 = vmatpush1.bf16.msra.mxu0 0
      %1677 = vmatprep.subr.bf16.mxu0 0
      %1678 = vmatpush1.bf16.msra.mxu0 0
      %1679 = vmatprep.subr.bf16.mxu0 0
      %1680 = vmatpush1.bf16.msra.mxu0 0
      %1681 = vmatprep.subr.bf16.mxu0 0
      %1682 = vmatpush1.bf16.msra.mxu0 0
      %1683 = vmatprep.subr.bf16.mxu0 0
      %1684 = vmatpush1.bf16.msra.mxu0 %v1667
      %1685 = vmatprep.subr.bf16.mxu0 0
      %1686 = vmatpush2.bf16.msra.mxu0 0
      %1687 = vmatprep.subr.bf16.mxu0 0
      %1688 = vmatpush2.bf16.msra.mxu0 0
      %1689 = vmatprep.subr.bf16.mxu0 0
      %1690 = vmatpush2.bf16.msra.mxu0 0
      %1691 = vmatprep.subr.bf16.mxu0 0
      %1692 = vmatpush2.bf16.msra.mxu0 0
      %1693 = vmatprep.subr.bf16.mxu0 0
      %1694 = vmatpush2.bf16.msra.mxu0 0
      %1695 = vmatprep.subr.bf16.mxu0 0
      %1696 = vmatpush2.bf16.msra.mxu0 0
      %1697 = vmatprep.subr.bf16.mxu0 0
      %1698 = vmatpush2.bf16.msra.mxu0 0
      %1699 = vmatprep.subr.bf16.mxu0 0
      %1700 = vmatpush2.bf16.msra.mxu0 0
      %1701 = vmatprep.mubr.bf16.mxu0 0
      %1702 = vmatmul.mubr.bf16.gmra.mxu0 %v1655
      %v1703 = vpop.f32.mrf.mxu0
      %v1704 = vadd.f32 0.0, %v1703
      %v1705 = vpop.f32.mrf.mxu0
      %v1706 = vpop.f32.mrf.mxu0
      %v1707 = vadd.f32 0.0, %v1706
      %v1708 = vpop.f32.mrf.mxu0
      %1709 = vmatprep.mubr.bf16.mxu0 0
      %1710 = vmatmul.mubr.bf16.gmra.mxu0 %v1658
      %v1711 = vpop.f32.mrf.mxu0
      %v1712 = vadd.f32 0.0, %v1711
      %v1713 = vpop.f32.mrf.mxu0
      %v1714 = vpop.f32.mrf.mxu0
      %v1715 = vadd.f32 0.0, %v1714
      %v1716 = vpop.f32.mrf.mxu0
      %1717 = vmatprep.mubr.bf16.mxu0 0
      %1718 = vmatmul.mubr.bf16.gmra.mxu0 %v1661
      %v1719 = vpop.f32.mrf.mxu0
      %v1720 = vadd.f32 0.0, %v1719
      %v1721 = vpop.f32.mrf.mxu0
      %v1722 = vpop.f32.mrf.mxu0
      %v1723 = vadd.f32 0.0, %v1722
      %v1724 = vpop.f32.mrf.mxu0
      %1725 = vmatprep.mubr.bf16.mxu0 0
      %1726 = vmatmul.mubr.bf16.gmra.mxu0 %v1664
      %v1727 = vpop.f32.mrf.mxu0
      %v1728 = vadd.f32 0.0, %v1727
      %v1729 = vpop.f32.mrf.mxu0
      %v1730 = vpop.f32.mrf.mxu0
      %v1731 = vadd.f32 0.0, %v1730
      %v1732 = vpop.f32.mrf.mxu0
      %1733 = vdwg.mxu0
      %v1734 = vadd.f32 %v1632, %v1704
      %v1735 = vadd.f32 %v1633, %v1707
      %v1736 = vadd.f32 %v1634, %v1712
      %v1737 = vadd.f32 %v1635, %v1715
      %v1738 = vadd.f32 %v1636, %v1720
      %v1739 = vadd.f32 %v1637, %v1723
      %v1740 = vadd.f32 %v1638, %v1728
      %v1741 = vadd.f32 %v1639, %v1731
      %v1742 = vld [vmem:[%s1318 + $0x1] sm:$0xff]
      %v1743 = vld [vmem:[%s1318 + $0x11] sm:$0xff]
      %v1744 = vld [vmem:[%s1318 + $0x21] sm:$0xff]
      %v1745 = vld [vmem:[%s1318 + $0x31] sm:$0xff]
      %v1746 = vld [vmem:[%s1318 + $0x41] sm:$0xff]
      %v1747 = vld [vmem:[%s1318 + $0x51] sm:$0xff]
      %v1748 = vld [vmem:[%s1318 + $0x61] sm:$0xff]
      %v1749 = vld [vmem:[%s1318 + $0x71] sm:$0xff]
      %v1750 = vpack.c.bf16 %v1743, %v1742
      %v1751 = vpack.c.bf16 %v1745, %v1744
      %v1752 = vpack.c.bf16 %v1747, %v1746
      %v1753 = vpack.c.bf16 %v1749, %v1748
      %s1754 = scalar_lea.vmem %s6, 16
      %v1755 = vld [vmem:[%s1754] sm:$0xf]
      %v1757 = vsel %vm284, %v1750, 0
      %v1760 = vsel %vm284, %v1751, 0
      %v1763 = vsel %vm284, %v1752, 0
      %v1766 = vsel %vm284, %v1753, 0
      %v1769 = vsel %vm398, %v1755, 0
      %1771 = vmatprep.subr.bf16.mxu0 0
      %1772 = vmatpush1.bf16.msra.mxu0 0
      %1773 = vmatprep.subr.bf16.mxu0 0
      %1774 = vmatpush1.bf16.msra.mxu0 0
      %1775 = vmatprep.subr.bf16.mxu0 0
      %1776 = vmatpush1.bf16.msra.mxu0 0
      %1777 = vmatprep.subr.bf16.mxu0 0
      %1778 = vmatpush1.bf16.msra.mxu0 0
      %1779 = vmatprep.subr.bf16.mxu0 0
      %1780 = vmatpush1.bf16.msra.mxu0 0
      %1781 = vmatprep.subr.bf16.mxu0 0
      %1782 = vmatpush1.bf16.msra.mxu0 0
      %1783 = vmatprep.subr.bf16.mxu0 0
      %1784 = vmatpush1.bf16.msra.mxu0 0
      %1785 = vmatprep.subr.bf16.mxu0 0
      %1786 = vmatpush1.bf16.msra.mxu0 %v1769
      %1787 = vmatprep.subr.bf16.mxu0 0
      %1788 = vmatpush2.bf16.msra.mxu0 0
      %1789 = vmatprep.subr.bf16.mxu0 0
      %1790 = vmatpush2.bf16.msra.mxu0 0
      %1791 = vmatprep.subr.bf16.mxu0 0
      %1792 = vmatpush2.bf16.msra.mxu0 0
      %1793 = vmatprep.subr.bf16.mxu0 0
      %1794 = vmatpush2.bf16.msra.mxu0 0
      %1795 = vmatprep.subr.bf16.mxu0 0
      %1796 = vmatpush2.bf16.msra.mxu0 0
      %1797 = vmatprep.subr.bf16.mxu0 0
      %1798 = vmatpush2.bf16.msra.mxu0 0
      %1799 = vmatprep.subr.bf16.mxu0 0
      %1800 = vmatpush2.bf16.msra.mxu0 0
      %1801 = vmatprep.subr.bf16.mxu0 0
      %1802 = vmatpush2.bf16.msra.mxu0 0
      %1803 = vmatprep.mubr.bf16.mxu0 0
      %1804 = vmatmul.mubr.bf16.gmra.mxu0 %v1757
      %v1805 = vpop.f32.mrf.mxu0
      %v1806 = vadd.f32 0.0, %v1805
      %v1807 = vpop.f32.mrf.mxu0
      %v1808 = vpop.f32.mrf.mxu0
      %v1809 = vadd.f32 0.0, %v1808
      %v1810 = vpop.f32.mrf.mxu0
      %1811 = vmatprep.mubr.bf16.mxu0 0
      %1812 = vmatmul.mubr.bf16.gmra.mxu0 %v1760
      %v1813 = vpop.f32.mrf.mxu0
      %v1814 = vadd.f32 0.0, %v1813
      %v1815 = vpop.f32.mrf.mxu0
      %v1816 = vpop.f32.mrf.mxu0
      %v1817 = vadd.f32 0.0, %v1816
      %v1818 = vpop.f32.mrf.mxu0
      %1819 = vmatprep.mubr.bf16.mxu0 0
      %1820 = vmatmul.mubr.bf16.gmra.mxu0 %v1763
      %v1821 = vpop.f32.mrf.mxu0
      %v1822 = vadd.f32 0.0, %v1821
      %v1823 = vpop.f32.mrf.mxu0
      %v1824 = vpop.f32.mrf.mxu0
      %v1825 = vadd.f32 0.0, %v1824
      %v1826 = vpop.f32.mrf.mxu0
      %1827 = vmatprep.mubr.bf16.mxu0 0
      %1828 = vmatmul.mubr.bf16.gmra.mxu0 %v1766
      %v1829 = vpop.f32.mrf.mxu0
      %v1830 = vadd.f32 0.0, %v1829
      %v1831 = vpop.f32.mrf.mxu0
      %v1832 = vpop.f32.mrf.mxu0
      %v1833 = vadd.f32 0.0, %v1832
      %v1834 = vpop.f32.mrf.mxu0
      %1835 = vdwg.mxu0
      %v1836 = vadd.f32 %v1734, %v1806
      %v1837 = vadd.f32 %v1735, %v1809
      %v1838 = vadd.f32 %v1736, %v1814
      %v1839 = vadd.f32 %v1737, %v1817
      %v1840 = vadd.f32 %v1738, %v1822
      %v1841 = vadd.f32 %v1739, %v1825
      %v1842 = vadd.f32 %v1740, %v1830
      %v1843 = vadd.f32 %v1741, %v1833
      %v1844 = vld [vmem:[%s1318 + $0x2] sm:$0xff]
      %v1845 = vld [vmem:[%s1318 + $0x12] sm:$0xff]
      %v1846 = vld [vmem:[%s1318 + $0x22] sm:$0xff]
      %v1847 = vld [vmem:[%s1318 + $0x32] sm:$0xff]
      %v1848 = vld [vmem:[%s1318 + $0x42] sm:$0xff]
      %v1849 = vld [vmem:[%s1318 + $0x52] sm:$0xff]
      %v1850 = vld [vmem:[%s1318 + $0x62] sm:$0xff]
      %v1851 = vld [vmem:[%s1318 + $0x72] sm:$0xff]
      %v1852 = vpack.c.bf16 %v1845, %v1844
      %v1853 = vpack.c.bf16 %v1847, %v1846
      %v1854 = vpack.c.bf16 %v1849, %v1848
      %v1855 = vpack.c.bf16 %v1851, %v1850
      %s1856 = scalar_lea.vmem %s6, 20
      %v1857 = vld [vmem:[%s1856] sm:$0xf]
      %v1859 = vsel %vm284, %v1852, 0
      %v1862 = vsel %vm284, %v1853, 0
      %v1865 = vsel %vm284, %v1854, 0
      %v1868 = vsel %vm284, %v1855, 0
      %v1871 = vsel %vm398, %v1857, 0
      %1873 = vmatprep.subr.bf16.mxu0 0
      %1874 = vmatpush1.bf16.msra.mxu0 0
      %1875 = vmatprep.subr.bf16.mxu0 0
      %1876 = vmatpush1.bf16.msra.mxu0 0
      %1877 = vmatprep.subr.bf16.mxu0 0
      %1878 = vmatpush1.bf16.msra.mxu0 0
      %1879 = vmatprep.subr.bf16.mxu0 0
      %1880 = vmatpush1.bf16.msra.mxu0 0
      %1881 = vmatprep.subr.bf16.mxu0 0
      %1882 = vmatpush1.bf16.msra.mxu0 0
      %1883 = vmatprep.subr.bf16.mxu0 0
      %1884 = vmatpush1.bf16.msra.mxu0 0
      %1885 = vmatprep.subr.bf16.mxu0 0
      %1886 = vmatpush1.bf16.msra.mxu0 0
      %1887 = vmatprep.subr.bf16.mxu0 0
      %1888 = vmatpush1.bf16.msra.mxu0 %v1871
      %1889 = vmatprep.subr.bf16.mxu0 0
      %1890 = vmatpush2.bf16.msra.mxu0 0
      %1891 = vmatprep.subr.bf16.mxu0 0
      %1892 = vmatpush2.bf16.msra.mxu0 0
      %1893 = vmatprep.subr.bf16.mxu0 0
      %1894 = vmatpush2.bf16.msra.mxu0 0
      %1895 = vmatprep.subr.bf16.mxu0 0
      %1896 = vmatpush2.bf16.msra.mxu0 0
      %1897 = vmatprep.subr.bf16.mxu0 0
      %1898 = vmatpush2.bf16.msra.mxu0 0
      %1899 = vmatprep.subr.bf16.mxu0 0
      %1900 = vmatpush2.bf16.msra.mxu0 0
      %1901 = vmatprep.subr.bf16.mxu0 0
      %1902 = vmatpush2.bf16.msra.mxu0 0
      %1903 = vmatprep.subr.bf16.mxu0 0
      %1904 = vmatpush2.bf16.msra.mxu0 0
      %1905 = vmatprep.mubr.bf16.mxu0 0
      %1906 = vmatmul.mubr.bf16.gmra.mxu0 %v1859
      %v1907 = vpop.f32.mrf.mxu0
      %v1908 = vadd.f32 0.0, %v1907
      %v1909 = vpop.f32.mrf.mxu0
      %v1910 = vpop.f32.mrf.mxu0
      %v1911 = vadd.f32 0.0, %v1910
      %v1912 = vpop.f32.mrf.mxu0
      %1913 = vmatprep.mubr.bf16.mxu0 0
      %1914 = vmatmul.mubr.bf16.gmra.mxu0 %v1862
      %v1915 = vpop.f32.mrf.mxu0
      %v1916 = vadd.f32 0.0, %v1915
      %v1917 = vpop.f32.mrf.mxu0
      %v1918 = vpop.f32.mrf.mxu0
      %v1919 = vadd.f32 0.0, %v1918
      %v1920 = vpop.f32.mrf.mxu0
      %1921 = vmatprep.mubr.bf16.mxu0 0
      %1922 = vmatmul.mubr.bf16.gmra.mxu0 %v1865
      %v1923 = vpop.f32.mrf.mxu0
      %v1924 = vadd.f32 0.0, %v1923
      %v1925 = vpop.f32.mrf.mxu0
      %v1926 = vpop.f32.mrf.mxu0
      %v1927 = vadd.f32 0.0, %v1926
      %v1928 = vpop.f32.mrf.mxu0
      %1929 = vmatprep.mubr.bf16.mxu0 0
      %1930 = vmatmul.mubr.bf16.gmra.mxu0 %v1868
      %v1931 = vpop.f32.mrf.mxu0
      %v1932 = vadd.f32 0.0, %v1931
      %v1933 = vpop.f32.mrf.mxu0
      %v1934 = vpop.f32.mrf.mxu0
      %v1935 = vadd.f32 0.0, %v1934
      %v1936 = vpop.f32.mrf.mxu0
      %1937 = vdwg.mxu0
      %v1938 = vadd.f32 %v1836, %v1908
      %v1939 = vadd.f32 %v1837, %v1911
      %v1940 = vadd.f32 %v1838, %v1916
      %v1941 = vadd.f32 %v1839, %v1919
      %v1942 = vadd.f32 %v1840, %v1924
      %v1943 = vadd.f32 %v1841, %v1927
      %v1944 = vadd.f32 %v1842, %v1932
      %v1945 = vadd.f32 %v1843, %v1935
      %s1946 = scalar_lea.vmem [#allocation3], 32
      %v1947 = vld [vmem:[%s1946] sm:$0xff]
      %v1948 = vld [vmem:[%s1946 + $0x10] sm:$0xff]
      %v1949 = vld [vmem:[%s1946 + $0x20] sm:$0xff]
      %v1950 = vld [vmem:[%s1946 + $0x30] sm:$0xff]
      %v1951 = vld [vmem:[%s1946 + $0x40] sm:$0xff]
      %v1952 = vld [vmem:[%s1946 + $0x50] sm:$0xff]
      %v1953 = vld [vmem:[%s1946 + $0x60] sm:$0xff]
      %v1954 = vld [vmem:[%s1946 + $0x70] sm:$0xff]
      %v1955 = vpack.c.bf16 %v1948, %v1947
      %v1956 = vpack.c.bf16 %v1950, %v1949
      %v1957 = vpack.c.bf16 %v1952, %v1951
      %v1958 = vpack.c.bf16 %v1954, %v1953
      %s1959 = scalar_lea.vmem %s6, 24
      %v1960 = vld [vmem:[%s1959] sm:$0xf]
      %v1962 = vsel %vm284, %v1955, 0
      %v1965 = vsel %vm284, %v1956, 0
      %v1968 = vsel %vm284, %v1957, 0
      %v1971 = vsel %vm284, %v1958, 0
      %v1974 = vsel %vm398, %v1960, 0
      %1976 = vmatprep.subr.bf16.mxu0 0
      %1977 = vmatpush1.bf16.msra.mxu0 0
      %1978 = vmatprep.subr.bf16.mxu0 0
      %1979 = vmatpush1.bf16.msra.mxu0 0
      %1980 = vmatprep.subr.bf16.mxu0 0
      %1981 = vmatpush1.bf16.msra.mxu0 0
      %1982 = vmatprep.subr.bf16.mxu0 0
      %1983 = vmatpush1.bf16.msra.mxu0 0
      %1984 = vmatprep.subr.bf16.mxu0 0
      %1985 = vmatpush1.bf16.msra.mxu0 0
      %1986 = vmatprep.subr.bf16.mxu0 0
      %1987 = vmatpush1.bf16.msra.mxu0 0
      %1988 = vmatprep.subr.bf16.mxu0 0
      %1989 = vmatpush1.bf16.msra.mxu0 0
      %1990 = vmatprep.subr.bf16.mxu0 0
      %1991 = vmatpush1.bf16.msra.mxu0 %v1974
      %1992 = vmatprep.subr.bf16.mxu0 0
      %1993 = vmatpush2.bf16.msra.mxu0 0
      %1994 = vmatprep.subr.bf16.mxu0 0
      %1995 = vmatpush2.bf16.msra.mxu0 0
      %1996 = vmatprep.subr.bf16.mxu0 0
      %1997 = vmatpush2.bf16.msra.mxu0 0
      %1998 = vmatprep.subr.bf16.mxu0 0
      %1999 = vmatpush2.bf16.msra.mxu0 0
      %2000 = vmatprep.subr.bf16.mxu0 0
      %2001 = vmatpush2.bf16.msra.mxu0 0
      %2002 = vmatprep.subr.bf16.mxu0 0
      %2003 = vmatpush2.bf16.msra.mxu0 0
      %2004 = vmatprep.subr.bf16.mxu0 0
      %2005 = vmatpush2.bf16.msra.mxu0 0
      %2006 = vmatprep.subr.bf16.mxu0 0
      %2007 = vmatpush2.bf16.msra.mxu0 0
      %2008 = vmatprep.mubr.bf16.mxu0 0
      %2009 = vmatmul.mubr.bf16.gmra.mxu0 %v1962
      %v2010 = vpop.f32.mrf.mxu0
      %v2011 = vadd.f32 0.0, %v2010
      %v2012 = vpop.f32.mrf.mxu0
      %v2013 = vpop.f32.mrf.mxu0
      %v2014 = vadd.f32 0.0, %v2013
      %v2015 = vpop.f32.mrf.mxu0
      %2016 = vmatprep.mubr.bf16.mxu0 0
      %2017 = vmatmul.mubr.bf16.gmra.mxu0 %v1965
      %v2018 = vpop.f32.mrf.mxu0
      %v2019 = vadd.f32 0.0, %v2018
      %v2020 = vpop.f32.mrf.mxu0
      %v2021 = vpop.f32.mrf.mxu0
      %v2022 = vadd.f32 0.0, %v2021
      %v2023 = vpop.f32.mrf.mxu0
      %2024 = vmatprep.mubr.bf16.mxu0 0
      %2025 = vmatmul.mubr.bf16.gmra.mxu0 %v1968
      %v2026 = vpop.f32.mrf.mxu0
      %v2027 = vadd.f32 0.0, %v2026
      %v2028 = vpop.f32.mrf.mxu0
      %v2029 = vpop.f32.mrf.mxu0
      %v2030 = vadd.f32 0.0, %v2029
      %v2031 = vpop.f32.mrf.mxu0
      %2032 = vmatprep.mubr.bf16.mxu0 0
      %2033 = vmatmul.mubr.bf16.gmra.mxu0 %v1971
      %v2034 = vpop.f32.mrf.mxu0
      %v2035 = vadd.f32 0.0, %v2034
      %v2036 = vpop.f32.mrf.mxu0
      %v2037 = vpop.f32.mrf.mxu0
      %v2038 = vadd.f32 0.0, %v2037
      %v2039 = vpop.f32.mrf.mxu0
      %2040 = vdwg.mxu0
      %v2041 = vadd.f32 %v1938, %v2011
      %v2042 = vadd.f32 %v1939, %v2014
      %v2043 = vadd.f32 %v1940, %v2019
      %v2044 = vadd.f32 %v1941, %v2022
      %v2045 = vadd.f32 %v1942, %v2027
      %v2046 = vadd.f32 %v1943, %v2030
      %v2047 = vadd.f32 %v1944, %v2035
      %v2048 = vadd.f32 %v1945, %v2038
      %v2049 = vld [vmem:[%s1946 + $0x1] sm:$0xff]
      %v2050 = vld [vmem:[%s1946 + $0x11] sm:$0xff]
      %v2051 = vld [vmem:[%s1946 + $0x21] sm:$0xff]
      %v2052 = vld [vmem:[%s1946 + $0x31] sm:$0xff]
      %v2053 = vld [vmem:[%s1946 + $0x41] sm:$0xff]
      %v2054 = vld [vmem:[%s1946 + $0x51] sm:$0xff]
      %v2055 = vld [vmem:[%s1946 + $0x61] sm:$0xff]
      %v2056 = vld [vmem:[%s1946 + $0x71] sm:$0xff]
      %v2057 = vpack.c.bf16 %v2050, %v2049
      %v2058 = vpack.c.bf16 %v2052, %v2051
      %v2059 = vpack.c.bf16 %v2054, %v2053
      %v2060 = vpack.c.bf16 %v2056, %v2055
      %s2061 = scalar_lea.vmem %s6, 28
      %v2062 = vld [vmem:[%s2061] sm:$0xf]
      %v2064 = vsel %vm284, %v2057, 0
      %v2067 = vsel %vm284, %v2058, 0
      %v2070 = vsel %vm284, %v2059, 0
      %v2073 = vsel %vm284, %v2060, 0
      %v2076 = vsel %vm398, %v2062, 0
      %2078 = vmatprep.subr.bf16.mxu0 0
      %2079 = vmatpush1.bf16.msra.mxu0 0
      %2080 = vmatprep.subr.bf16.mxu0 0
      %2081 = vmatpush1.bf16.msra.mxu0 0
      %2082 = vmatprep.subr.bf16.mxu0 0
      %2083 = vmatpush1.bf16.msra.mxu0 0
      %2084 = vmatprep.subr.bf16.mxu0 0
      %2085 = vmatpush1.bf16.msra.mxu0 0
      %2086 = vmatprep.subr.bf16.mxu0 0
      %2087 = vmatpush1.bf16.msra.mxu0 0
      %2088 = vmatprep.subr.bf16.mxu0 0
      %2089 = vmatpush1.bf16.msra.mxu0 0
      %2090 = vmatprep.subr.bf16.mxu0 0
      %2091 = vmatpush1.bf16.msra.mxu0 0
      %2092 = vmatprep.subr.bf16.mxu0 0
      %2093 = vmatpush1.bf16.msra.mxu0 %v2076
      %2094 = vmatprep.subr.bf16.mxu0 0
      %2095 = vmatpush2.bf16.msra.mxu0 0
      %2096 = vmatprep.subr.bf16.mxu0 0
      %2097 = vmatpush2.bf16.msra.mxu0 0
      %2098 = vmatprep.subr.bf16.mxu0 0
      %2099 = vmatpush2.bf16.msra.mxu0 0
      %2100 = vmatprep.subr.bf16.mxu0 0
      %2101 = vmatpush2.bf16.msra.mxu0 0
      %2102 = vmatprep.subr.bf16.mxu0 0
      %2103 = vmatpush2.bf16.msra.mxu0 0
      %2104 = vmatprep.subr.bf16.mxu0 0
      %2105 = vmatpush2.bf16.msra.mxu0 0
      %2106 = vmatprep.subr.bf16.mxu0 0
      %2107 = vmatpush2.bf16.msra.mxu0 0
      %2108 = vmatprep.subr.bf16.mxu0 0
      %2109 = vmatpush2.bf16.msra.mxu0 0
      %2110 = vmatprep.mubr.bf16.mxu0 0
      %2111 = vmatmul.mubr.bf16.gmra.mxu0 %v2064
      %v2112 = vpop.f32.mrf.mxu0
      %v2113 = vadd.f32 0.0, %v2112
      %v2114 = vpop.f32.mrf.mxu0
      %v2115 = vpop.f32.mrf.mxu0
      %v2116 = vadd.f32 0.0, %v2115
      %v2117 = vpop.f32.mrf.mxu0
      %2118 = vmatprep.mubr.bf16.mxu0 0
      %2119 = vmatmul.mubr.bf16.gmra.mxu0 %v2067
      %v2120 = vpop.f32.mrf.mxu0
      %v2121 = vadd.f32 0.0, %v2120
      %v2122 = vpop.f32.mrf.mxu0
      %v2123 = vpop.f32.mrf.mxu0
      %v2124 = vadd.f32 0.0, %v2123
      %v2125 = vpop.f32.mrf.mxu0
      %2126 = vmatprep.mubr.bf16.mxu0 0
      %2127 = vmatmul.mubr.bf16.gmra.mxu0 %v2070
      %v2128 = vpop.f32.mrf.mxu0
      %v2129 = vadd.f32 0.0, %v2128
      %v2130 = vpop.f32.mrf.mxu0
      %v2131 = vpop.f32.mrf.mxu0
      %v2132 = vadd.f32 0.0, %v2131
      %v2133 = vpop.f32.mrf.mxu0
      %2134 = vmatprep.mubr.bf16.mxu0 0
      %2135 = vmatmul.mubr.bf16.gmra.mxu0 %v2073
      %v2136 = vpop.f32.mrf.mxu0
      %v2137 = vadd.f32 0.0, %v2136
      %v2138 = vpop.f32.mrf.mxu0
      %v2139 = vpop.f32.mrf.mxu0
      %v2140 = vadd.f32 0.0, %v2139
      %v2141 = vpop.f32.mrf.mxu0
      %2142 = vdwg.mxu0
      %v2143 = vadd.f32 %v2041, %v2113
      %v2144 = vadd.f32 %v2042, %v2116
      %v2145 = vadd.f32 %v2043, %v2121
      %v2146 = vadd.f32 %v2044, %v2124
      %v2147 = vadd.f32 %v2045, %v2129
      %v2148 = vadd.f32 %v2046, %v2132
      %v2149 = vadd.f32 %v2047, %v2137
      %v2150 = vadd.f32 %v2048, %v2140
      %v2151 = vld [vmem:[%s1946 + $0x2] sm:$0xff]
      %v2152 = vld [vmem:[%s1946 + $0x12] sm:$0xff]
      %v2153 = vld [vmem:[%s1946 + $0x22] sm:$0xff]
      %v2154 = vld [vmem:[%s1946 + $0x32] sm:$0xff]
      %v2155 = vld [vmem:[%s1946 + $0x42] sm:$0xff]
      %v2156 = vld [vmem:[%s1946 + $0x52] sm:$0xff]
      %v2157 = vld [vmem:[%s1946 + $0x62] sm:$0xff]
      %v2158 = vld [vmem:[%s1946 + $0x72] sm:$0xff]
      %v2159 = vpack.c.bf16 %v2152, %v2151
      %v2160 = vpack.c.bf16 %v2154, %v2153
      %v2161 = vpack.c.bf16 %v2156, %v2155
      %v2162 = vpack.c.bf16 %v2158, %v2157
      %s2163 = scalar_lea.vmem %s6, 32
      %v2164 = vld [vmem:[%s2163] sm:$0xf]
      %v2166 = vsel %vm284, %v2159, 0
      %v2169 = vsel %vm284, %v2160, 0
      %v2172 = vsel %vm284, %v2161, 0
      %v2175 = vsel %vm284, %v2162, 0
      %v2178 = vsel %vm398, %v2164, 0
      %2180 = vmatprep.subr.bf16.mxu0 0
      %2181 = vmatpush1.bf16.msra.mxu0 0
      %2182 = vmatprep.subr.bf16.mxu0 0
      %2183 = vmatpush1.bf16.msra.mxu0 0
      %2184 = vmatprep.subr.bf16.mxu0 0
      %2185 = vmatpush1.bf16.msra.mxu0 0
      %2186 = vmatprep.subr.bf16.mxu0 0
      %2187 = vmatpush1.bf16.msra.mxu0 0
      %2188 = vmatprep.subr.bf16.mxu0 0
      %2189 = vmatpush1.bf16.msra.mxu0 0
      %2190 = vmatprep.subr.bf16.mxu0 0
      %2191 = vmatpush1.bf16.msra.mxu0 0
      %2192 = vmatprep.subr.bf16.mxu0 0
      %2193 = vmatpush1.bf16.msra.mxu0 0
      %2194 = vmatprep.subr.bf16.mxu0 0
      %2195 = vmatpush1.bf16.msra.mxu0 %v2178
      %2196 = vmatprep.subr.bf16.mxu0 0
      %2197 = vmatpush2.bf16.msra.mxu0 0
      %2198 = vmatprep.subr.bf16.mxu0 0
      %2199 = vmatpush2.bf16.msra.mxu0 0
      %2200 = vmatprep.subr.bf16.mxu0 0
      %2201 = vmatpush2.bf16.msra.mxu0 0
      %2202 = vmatprep.subr.bf16.mxu0 0
      %2203 = vmatpush2.bf16.msra.mxu0 0
      %2204 = vmatprep.subr.bf16.mxu0 0
      %2205 = vmatpush2.bf16.msra.mxu0 0
      %2206 = vmatprep.subr.bf16.mxu0 0
      %2207 = vmatpush2.bf16.msra.mxu0 0
      %2208 = vmatprep.subr.bf16.mxu0 0
      %2209 = vmatpush2.bf16.msra.mxu0 0
      %2210 = vmatprep.subr.bf16.mxu0 0
      %2211 = vmatpush2.bf16.msra.mxu0 0
      %2212 = vmatprep.mubr.bf16.mxu0 0
      %2213 = vmatmul.mubr.bf16.gmra.mxu0 %v2166
      %v2214 = vpop.f32.mrf.mxu0
      %v2215 = vadd.f32 0.0, %v2214
      %v2216 = vpop.f32.mrf.mxu0
      %v2217 = vpop.f32.mrf.mxu0
      %v2218 = vadd.f32 0.0, %v2217
      %v2219 = vpop.f32.mrf.mxu0
      %2220 = vmatprep.mubr.bf16.mxu0 0
      %2221 = vmatmul.mubr.bf16.gmra.mxu0 %v2169
      %v2222 = vpop.f32.mrf.mxu0
      %v2223 = vadd.f32 0.0, %v2222
      %v2224 = vpop.f32.mrf.mxu0
      %v2225 = vpop.f32.mrf.mxu0
      %v2226 = vadd.f32 0.0, %v2225
      %v2227 = vpop.f32.mrf.mxu0
      %2228 = vmatprep.mubr.bf16.mxu0 0
      %2229 = vmatmul.mubr.bf16.gmra.mxu0 %v2172
      %v2230 = vpop.f32.mrf.mxu0
      %v2231 = vadd.f32 0.0, %v2230
      %v2232 = vpop.f32.mrf.mxu0
      %v2233 = vpop.f32.mrf.mxu0
      %v2234 = vadd.f32 0.0, %v2233
      %v2235 = vpop.f32.mrf.mxu0
      %2236 = vmatprep.mubr.bf16.mxu0 0
      %2237 = vmatmul.mubr.bf16.gmra.mxu0 %v2175
      %v2238 = vpop.f32.mrf.mxu0
      %v2239 = vadd.f32 0.0, %v2238
      %v2240 = vpop.f32.mrf.mxu0
      %v2241 = vpop.f32.mrf.mxu0
      %v2242 = vadd.f32 0.0, %v2241
      %v2243 = vpop.f32.mrf.mxu0
      %2244 = vdwg.mxu0
      %v2245 = vadd.f32 %v2143, %v2215
      %v2246 = vadd.f32 %v2144, %v2218
      %v2247 = vadd.f32 %v2145, %v2223
      %v2248 = vadd.f32 %v2146, %v2226
      %v2249 = vadd.f32 %v2147, %v2231
      %v2250 = vadd.f32 %v2148, %v2234
      %v2251 = vadd.f32 %v2149, %v2239
      %v2252 = vadd.f32 %v2150, %v2242
      %2253 = vst.msk [vmem:[%s278] sm:$0xff] %vm284, %v2245
      %2254 = vst.msk [vmem:[%s278 + $0x8] sm:$0xff] %vm284, %v2246
      %2255 = vst.msk [vmem:[%s278 + $0x10] sm:$0xff] %vm284, %v2247
      %2256 = vst.msk [vmem:[%s278 + $0x18] sm:$0xff] %vm284, %v2248
      %2257 = vst.msk [vmem:[%s278 + $0x20] sm:$0xff] %vm284, %v2249
      %2258 = vst.msk [vmem:[%s278 + $0x28] sm:$0xff] %vm284, %v2250
      %2259 = vst.msk [vmem:[%s278 + $0x30] sm:$0xff] %vm284, %v2251
      %2260 = vst.msk [vmem:[%s278 + $0x38] sm:$0xff] %vm284, %v2252
      %p2261 = scmp.lt.s32.totalorder %s18, 1
      %s2262 = scalar_select %p2261, %s18, 1
      %s2263 = smul.addr %s2262, 8
      %s2264 = smul.addr %s2263, 8
      %s2265 = scalar_lea.vmem %s7, %s2264
      // Predicated region
      $region49: #{_lambda_.3} parent=47 // pred_check
        %p2266 = pneg %p188
      $region50: #{_lambda_.3} parent=47 // pred_check_branch
        %2268 = sbr.rel (%p2266) target = $region52
      $region51: #{_lambda_.3} parent=47 // pred_region
        _
      $region52: #{_lambda_.3} parent=47 // pred_fallthru
        _
    $region48: #{_lambda_.3} parent=5 // pred_fallthru
      _
    %p2269 = scmp.le.s32.totalorder 2, %s13
    // Predicated region
    $region53: #{_lambda_.3} parent=5 // pred_check
      %p2270 = pneg %p2269
    $region54: #{_lambda_.3} parent=5 // pred_check_branch
      %2272 = sbr.rel (%p2270) target = $region56
    $region55: #{_lambda_.3} parent=5 // pred_region
      %s2273 = ssub.s32 %s13, 2
      // Predicated region
      $region57: #{_lambda_.3} parent=55 // pred_check
        %p2274 = pneg %p194
      $region58: #{_lambda_.3} parent=55 // pred_check_branch
        %2276 = sbr.rel (%p2274) target = $region60
      $region59: #{_lambda_.3} parent=55 // pred_region
        %p2277 = scmp.lt.s32.totalorder %s19, 1
        %s2278 = scalar_select %p2277, %s19, 1
        %s2279 = smul.addr %s2278, 8
        %s2280 = smul.addr %s2279, 8
        %s2281 = scalar_lea.vmem %s7, %s2280
      $region60: #{_lambda_.3} parent=55 // pred_fallthru
        _
    $region56: #{_lambda_.3} parent=5 // pred_fallthru
      _
  $region6: #{_lambda_.3} parent=0 // loop_footer
    %s17 = sadd.s32 1, %s13
  $region7: #{_lambda_.3} parent=0 // loop_footer_branch
    %12 = sbr.rel target = $region3
  $region8: #{_lambda_.3} parent=0 // loop_exit
    _

// kernel: _lambda_.2
$region0: #{_lambda_.2}
  #allocation0 [shape = 'u32[]', space=smem, size = 0x4, offset = 0x4, fixed_abs, tag = 'smem constant byte address 0x4 - core index']
  #allocation1 [shape = 'u32[144,128]{1,0:T(1,128)}', space=vmem, size = 0x12000, scoped, tag = 'internal scratch']
  #allocation2 [shape = 'f32[4,9,9,4]{3,2,1,0:T(8,128)}', space=vmem, size = 0x48000, scoped, tag = 'scratch operand']
  #allocation3 [shape = 'f32[10,10,8]{2,1,0:T(8,128)}', space=vmem, size = 0x14000, scoped, tag = 'scratch operand']
  %s0 = inlined_call_operand.vmem [shape: f32[2,32,8,4], index: 0, kind: input, shape index: {}]
  %s1 = inlined_call_operand.vmem [shape: f32[1,4], index: 1, kind: input, shape index: {}]
  %s2 = inlined_call_operand.vmem [shape: f32[1,4], index: 2, kind: input, shape index: {}]
  %s3 = inlined_call_operand.vmem [shape: bf16[9,4,8], index: 3, kind: input, shape index: {}]
  %s4 = inlined_call_operand.vmem [shape: f32[1,8], index: 4, kind: input, shape index: {}]
  %s5 = inlined_call_operand.vmem [shape: f32[1,8], index: 5, kind: input, shape index: {}]
  %s6 = inlined_call_operand.vmem [shape: bf16[9,8,8], index: 6, kind: input, shape index: {}]
  %s7 = inlined_call_operand.vmem [shape: bf16[4,8], index: 7, kind: input, shape index: {}]
  %s8 = inlined_call_operand.vmem [shape: f32[2,64,8], index: 8, kind: output, shape index: {}]
  %s9 = sld [smem:[#allocation0]]
  $region65: #{_lambda_.2} parent=0
    _
  %s11 = ssub.s32 1, %s9
  %s12 = scalar_select 0, %s11, %s9
  loop: start=0, step=1, limit=4
  $region2: #{_lambda_.2} parent=0 // loop_pre_header
    _
  $region3: #{_lambda_.2} parent=0 // loop_header
    %s14 = sphi 0, %s18
    %p15 = scmp.ge.s32.totalorder %s14, 4
    %s24 = sphi 0, %s26
    %s27 = sphi 0, %s24
    %s28 = sphi 0, %s27
    %s44 = sphi 0, %s28
    %s48 = sphi 0, %s48
    %s50 = sphi 0, %s48
    %s51 = sphi 0, %s50
    %s65 = sphi 0, %s51
    %s69 = sphi 0, %s69
    %s71 = sphi 0, %s69
    %s72 = sphi 0, %s71
    %s86 = sphi 0, %s72
    %s90 = sphi 0, %s90
    %s92 = sphi 0, %s90
    %s93 = sphi 0, %s92
    %s107 = sphi 0, %s93
    %s111 = sphi 0, %s111
    %s113 = sphi 0, %s111
    %s114 = sphi 0, %s113
    %s128 = sphi 0, %s114
    %s132 = sphi 0, %s132
    %s134 = sphi 0, %s132
    %s135 = sphi 0, %s134
    %s149 = sphi 0, %s135
    %s153 = sphi 0, %s153
    %s155 = sphi 0, %s153
    %s156 = sphi 0, %s155
    %s170 = sphi 0, %s156
    %s174 = sphi 0, %s174
    %s176 = sphi 0, %s174
    %s177 = sphi 0, %s176
    %s191 = sphi 0, %s177
    %s197 = sphi 0, %s199
    %s200 = sphi 0, %s197
    %s201 = sphi 0, %s200
    %s217 = sphi 0, %s201
  $region4: #{_lambda_.2} parent=0 // loop_header_branch
    %17 = sbr.rel (%p15) target = $region8
  $region5: #{_lambda_.2} parent=0 // loop_body
    %s19 = ssub.s32 %s14, 1
    %s20 = ssub.s32 %s14, 2
    %s21 = sadd.s32 %s14, 1
    %s22 = ssub.s32 %s14, %s21
    %p23 = scmp.eq.s32.totalorder %s22, 0
    %s25 = sadd.s32 %s24, 1
    %s26 = scalar_select %p23, %s24, %s25
    %p29 = pneg %p23
    %p30 = scmp.eq.s32.totalorder %s14, 1
    %p31 = por %p29, %p30
    %p32 = scmp.ne.s32.totalorder %s24, %s27
    %p33 = scmp.eq.s32.totalorder %s14, 0
    %p34 = por %p32, %p33
    %p35 = scmp.ne.s32.totalorder %s24, %s27
    %p36 = scmp.eq.s32.totalorder %s19, 1
    %p37 = por %p35, %p36
    %p38 = scmp.ne.s32.totalorder %s27, %s28
    %p39 = scmp.eq.s32.totalorder %s19, 0
    %p40 = por %p38, %p39
    %p41 = scmp.ne.s32.totalorder %s27, %s28
    %p42 = scmp.eq.s32.totalorder %s20, 1
    %p43 = por %p41, %p42
    %p45 = scmp.ne.s32.totalorder %s28, %s44
    %p46 = scmp.eq.s32.totalorder %s20, 0
    %p47 = por %p45, %p46
    %s49 = sadd.s32 %s48, 1
    %p52 = scmp.eq.s32.totalorder %s14, 1
    %p53 = scmp.ne.s32.totalorder %s48, %s50
    %p54 = scmp.eq.s32.totalorder %s14, 0
    %p55 = por %p53, %p54
    %p56 = scmp.ne.s32.totalorder %s48, %s50
    %p57 = scmp.eq.s32.totalorder %s19, 1
    %p58 = por %p56, %p57
    %p59 = scmp.ne.s32.totalorder %s50, %s51
    %p60 = scmp.eq.s32.totalorder %s19, 0
    %p61 = por %p59, %p60
    %p62 = scmp.ne.s32.totalorder %s50, %s51
    %p63 = scmp.eq.s32.totalorder %s20, 1
    %p64 = por %p62, %p63
    %p66 = scmp.ne.s32.totalorder %s51, %s65
    %p67 = scmp.eq.s32.totalorder %s20, 0
    %p68 = por %p66, %p67
    %s70 = sadd.s32 %s69, 1
    %p73 = scmp.eq.s32.totalorder %s14, 1
    %p74 = scmp.ne.s32.totalorder %s69, %s71
    %p75 = scmp.eq.s32.totalorder %s14, 0
    %p76 = por %p74, %p75
    %p77 = scmp.ne.s32.totalorder %s69, %s71
    %p78 = scmp.eq.s32.totalorder %s19, 1
    %p79 = por %p77, %p78
    %p80 = scmp.ne.s32.totalorder %s71, %s72
    %p81 = scmp.eq.s32.totalorder %s19, 0
    %p82 = por %p80, %p81
    %p83 = scmp.ne.s32.totalorder %s71, %s72
    %p84 = scmp.eq.s32.totalorder %s20, 1
    %p85 = por %p83, %p84
    %p87 = scmp.ne.s32.totalorder %s72, %s86
    %p88 = scmp.eq.s32.totalorder %s20, 0
    %p89 = por %p87, %p88
    %s91 = sadd.s32 %s90, 1
    %p94 = scmp.eq.s32.totalorder %s14, 1
    %p95 = scmp.ne.s32.totalorder %s90, %s92
    %p96 = scmp.eq.s32.totalorder %s14, 0
    %p97 = por %p95, %p96
    %p98 = scmp.ne.s32.totalorder %s90, %s92
    %p99 = scmp.eq.s32.totalorder %s19, 1
    %p100 = por %p98, %p99
    %p101 = scmp.ne.s32.totalorder %s92, %s93
    %p102 = scmp.eq.s32.totalorder %s19, 0
    %p103 = por %p101, %p102
    %p104 = scmp.ne.s32.totalorder %s92, %s93
    %p105 = scmp.eq.s32.totalorder %s20, 1
    %p106 = por %p104, %p105
    %p108 = scmp.ne.s32.totalorder %s93, %s107
    %p109 = scmp.eq.s32.totalorder %s20, 0
    %p110 = por %p108, %p109
    %s112 = sadd.s32 %s111, 1
    %p115 = scmp.eq.s32.totalorder %s14, 1
    %p116 = scmp.ne.s32.totalorder %s111, %s113
    %p117 = scmp.eq.s32.totalorder %s14, 0
    %p118 = por %p116, %p117
    %p119 = scmp.ne.s32.totalorder %s111, %s113
    %p120 = scmp.eq.s32.totalorder %s19, 1
    %p121 = por %p119, %p120
    %p122 = scmp.ne.s32.totalorder %s113, %s114
    %p123 = scmp.eq.s32.totalorder %s19, 0
    %p124 = por %p122, %p123
    %p125 = scmp.ne.s32.totalorder %s113, %s114
    %p126 = scmp.eq.s32.totalorder %s20, 1
    %p127 = por %p125, %p126
    %p129 = scmp.ne.s32.totalorder %s114, %s128
    %p130 = scmp.eq.s32.totalorder %s20, 0
    %p131 = por %p129, %p130
    %s133 = sadd.s32 %s132, 1
    %p136 = scmp.eq.s32.totalorder %s14, 1
    %p137 = scmp.ne.s32.totalorder %s132, %s134
    %p138 = scmp.eq.s32.totalorder %s14, 0
    %p139 = por %p137, %p138
    %p140 = scmp.ne.s32.totalorder %s132, %s134
    %p141 = scmp.eq.s32.totalorder %s19, 1
    %p142 = por %p140, %p141
    %p143 = scmp.ne.s32.totalorder %s134, %s135
    %p144 = scmp.eq.s32.totalorder %s19, 0
    %p145 = por %p143, %p144
    %p146 = scmp.ne.s32.totalorder %s134, %s135
    %p147 = scmp.eq.s32.totalorder %s20, 1
    %p148 = por %p146, %p147
    %p150 = scmp.ne.s32.totalorder %s135, %s149
    %p151 = scmp.eq.s32.totalorder %s20, 0
    %p152 = por %p150, %p151
    %s154 = sadd.s32 %s153, 1
    %p157 = scmp.eq.s32.totalorder %s14, 1
    %p158 = scmp.ne.s32.totalorder %s153, %s155
    %p159 = scmp.eq.s32.totalorder %s14, 0
    %p160 = por %p158, %p159
    %p161 = scmp.ne.s32.totalorder %s153, %s155
    %p162 = scmp.eq.s32.totalorder %s19, 1
    %p163 = por %p161, %p162
    %p164 = scmp.ne.s32.totalorder %s155, %s156
    %p165 = scmp.eq.s32.totalorder %s19, 0
    %p166 = por %p164, %p165
    %p167 = scmp.ne.s32.totalorder %s155, %s156
    %p168 = scmp.eq.s32.totalorder %s20, 1
    %p169 = por %p167, %p168
    %p171 = scmp.ne.s32.totalorder %s156, %s170
    %p172 = scmp.eq.s32.totalorder %s20, 0
    %p173 = por %p171, %p172
    %s175 = sadd.s32 %s174, 1
    %p178 = scmp.eq.s32.totalorder %s14, 1
    %p179 = scmp.ne.s32.totalorder %s174, %s176
    %p180 = scmp.eq.s32.totalorder %s14, 0
    %p181 = por %p179, %p180
    %p182 = scmp.ne.s32.totalorder %s174, %s176
    %p183 = scmp.eq.s32.totalorder %s19, 1
    %p184 = por %p182, %p183
    %p185 = scmp.ne.s32.totalorder %s176, %s177
    %p186 = scmp.eq.s32.totalorder %s19, 0
    %p187 = por %p185, %p186
    %p188 = scmp.ne.s32.totalorder %s176, %s177
    %p189 = scmp.eq.s32.totalorder %s20, 1
    %p190 = por %p188, %p189
    %p192 = scmp.ne.s32.totalorder %s177, %s191
    %p193 = scmp.eq.s32.totalorder %s20, 0
    %p194 = por %p192, %p193
    %s195 = ssub.s32 %s14, %s21
    %p196 = scmp.eq.s32.totalorder %s195, 0
    %s198 = sadd.s32 %s197, 1
    %s199 = scalar_select %p196, %s197, %s198
    %p202 = pneg %p196
    %p203 = scmp.eq.s32.totalorder %s14, 1
    %p204 = por %p202, %p203
    %p205 = scmp.ne.s32.totalorder %s197, %s200
    %p206 = scmp.eq.s32.totalorder %s14, 0
    %p207 = por %p205, %p206
    %p208 = scmp.ne.s32.totalorder %s197, %s200
    %p209 = scmp.eq.s32.totalorder %s19, 1
    %p210 = por %p208, %p209
    %p211 = scmp.ne.s32.totalorder %s200, %s201
    %p212 = scmp.eq.s32.totalorder %s19, 0
    %p213 = por %p211, %p212
    %p214 = scmp.ne.s32.totalorder %s200, %s201
    %p215 = scmp.eq.s32.totalorder %s20, 1
    %p216 = por %p214, %p215
    %p218 = scmp.ne.s32.totalorder %s201, %s217
    %p219 = scmp.eq.s32.totalorder %s20, 0
    %p220 = por %p218, %p219
    %p221 = scmp.le.s32.totalorder 1, %s14
    %p222 = scmp.lt.s32.totalorder %s14, 3
    %p223 = pnand %p221, %p222
    %p224 = pneg %p223
    // Predicated region
    $region9: #{_lambda_.2} parent=5 // pred_check
      _
    $region10: #{_lambda_.2} parent=5 // pred_check_branch
      %226 = sbr.rel (%p223) target = $region12
    $region11: #{_lambda_.2} parent=5 // pred_region
      %s227 = ssub.s32 %s14, 1
      // Predicated region
      $region13: #{_lambda_.2} parent=11 // pred_check
        %p228 = pneg %p61
      $region14: #{_lambda_.2} parent=11 // pred_check_branch
        %230 = sbr.rel (%p228) target = $region16
      $region15: #{_lambda_.2} parent=11 // pred_region
        _
      $region16: #{_lambda_.2} parent=11 // pred_fallthru
        _
      // Predicated region
      $region17: #{_lambda_.2} parent=11 // pred_check
        %p231 = pneg %p82
      $region18: #{_lambda_.2} parent=11 // pred_check_branch
        %233 = sbr.rel (%p231) target = $region20
      $region19: #{_lambda_.2} parent=11 // pred_region
        _
      $region20: #{_lambda_.2} parent=11 // pred_fallthru
        _
      // Predicated region
      $region21: #{_lambda_.2} parent=11 // pred_check
        %p234 = pneg %p103
      $region22: #{_lambda_.2} parent=11 // pred_check_branch
        %236 = sbr.rel (%p234) target = $region24
      $region23: #{_lambda_.2} parent=11 // pred_region
        _
      $region24: #{_lambda_.2} parent=11 // pred_fallthru
        _
      // Predicated region
      $region25: #{_lambda_.2} parent=11 // pred_check
        %p237 = pneg %p124
      $region26: #{_lambda_.2} parent=11 // pred_check_branch
        %239 = sbr.rel (%p237) target = $region28
      $region27: #{_lambda_.2} parent=11 // pred_region
        _
      $region28: #{_lambda_.2} parent=11 // pred_fallthru
        _
      // Predicated region
      $region29: #{_lambda_.2} parent=11 // pred_check
        %p240 = pneg %p145
      $region30: #{_lambda_.2} parent=11 // pred_check_branch
        %242 = sbr.rel (%p240) target = $region32
      $region31: #{_lambda_.2} parent=11 // pred_region
        _
      $region32: #{_lambda_.2} parent=11 // pred_fallthru
        _
      // Predicated region
      $region33: #{_lambda_.2} parent=11 // pred_check
        %p243 = pneg %p166
      $region34: #{_lambda_.2} parent=11 // pred_check_branch
        %245 = sbr.rel (%p243) target = $region36
      $region35: #{_lambda_.2} parent=11 // pred_region
        _
      $region36: #{_lambda_.2} parent=11 // pred_fallthru
        _
      // Predicated region
      $region37: #{_lambda_.2} parent=11 // pred_check
        %p246 = pneg %p187
      $region38: #{_lambda_.2} parent=11 // pred_check_branch
        %248 = sbr.rel (%p246) target = $region40
      $region39: #{_lambda_.2} parent=11 // pred_region
        _
      $region40: #{_lambda_.2} parent=11 // pred_fallthru
        _
    $region12: #{_lambda_.2} parent=5 // pred_fallthru
      _
    %p249 = scmp.lt.s32.totalorder %s14, 2
    // Predicated region
    $region41: #{_lambda_.2} parent=5 // pred_check
      %p250 = pneg %p249
    $region42: #{_lambda_.2} parent=5 // pred_check_branch
      %252 = sbr.rel (%p250) target = $region44
    $region43: #{_lambda_.2} parent=5 // pred_region
      // Predicated region
      $region45: #{_lambda_.2} parent=43 // pred_check
        %p253 = pneg %p34
      $region46: #{_lambda_.2} parent=43 // pred_check_branch
        %255 = sbr.rel (%p253) target = $region48
      $region47: #{_lambda_.2} parent=43 // pred_region
        %p256 = scmp.lt.s32.totalorder %s14, 1
        %s257 = scalar_select %p256, %s14, 1
        %s258 = smul.addr %s257, 32
        %s259 = smul.addr %s258, 8
        %s260 = scalar_lea.vmem %s0, %s259
      $region48: #{_lambda_.2} parent=43 // pred_fallthru
        _
    $region44: #{_lambda_.2} parent=5 // pred_fallthru
      _
    %p261 = scmp.le.s32.totalorder 1, %s14
    %p262 = scmp.lt.s32.totalorder %s14, 3
    %p263 = pnand %p261, %p262
    %p264 = pneg %p263
    // Predicated region
    $region49: #{_lambda_.2} parent=5 // pred_check
      _
    $region50: #{_lambda_.2} parent=5 // pred_check_branch
      %266 = sbr.rel (%p263) target = $region52
    $region51: #{_lambda_.2} parent=5 // pred_region
      %s267 = ssub.s32 %s14, 1
      %p268 = scmp.lt.s32.totalorder %s19, 1
      %s269 = scalar_select %p268, %s19, 1
      %s270 = smul.addr %s269, 32
      %s271 = smul.addr %s270, 8
      %s272 = scalar_lea.vmem %s0, %s271
      %p273 = pneg %p40
      %p274 = pneg %p37
      %p275 = pneg %p61
      %p276 = pneg %p58
      %p277 = pneg %p82
      %p278 = pneg %p79
      %p279 = pneg %p103
      %p280 = pneg %p100
      %p281 = pneg %p124
      %p282 = pneg %p121
      %p283 = pneg %p145
      %p284 = pneg %p142
      %p285 = pneg %p166
      %p286 = pneg %p163
      %p287 = pneg %p187
      %p288 = pneg %p184
      %p289 = pneg %p213
      %p290 = pneg %p210
      %p291 = scmp.lt.s32.totalorder %s19, 1
      %s292 = scalar_select %p291, %s19, 1
      %s293 = smul.addr %s292, 8
      %s294 = smul.addr %s293, 8
      %s295 = scalar_lea.vmem %s8, %s294
      %p296 = scmp.lt.s32.totalorder %s19, 1
      %s297 = scalar_select %p296, %s19, 1
      %s298 = smul.addr %s297, 32
      %s299 = smul.addr %s298, 8
      %s300 = scalar_lea.vmem %s0, %s299
      %p301 = scmp.lt.s32.totalorder %s19, 1
      %s302 = scalar_select %p301, %s19, 1
      %s303 = smul.addr %s302, 8
      %s304 = smul.addr %s303, 8
      %s305 = scalar_lea.vmem %s8, %s304
      %v307 = vld [vmem:[%s1] sm:$0x1]
      %v308 = vld [vmem:[%s2] sm:$0x1]
      %v309 = vld [vmem:[%s4] sm:$0x1]
      %v310 = vld [vmem:[%s5] sm:$0x1]
      %vm311 = vcmask 31744
      %312 = vst.msk [vmem:[#allocation2] sm:$0xff] %vm311, 0.0
      %vm313 = vcmask 24576
      %314 = vst.msk [vmem:[#allocation2 + $0x8] sm:$0x1] %vm313, 0.0
      %315 = vst.msk [vmem:[#allocation2 + $0x10] sm:$0xff] %vm311, 0.0
      %316 = vst.msk [vmem:[#allocation2 + $0x18] sm:$0x1] %vm313, 0.0
      %317 = vst.msk [vmem:[#allocation2 + $0x20] sm:$0xff] %vm311, 0.0
      %318 = vst.msk [vmem:[#allocation2 + $0x28] sm:$0x1] %vm313, 0.0
      %319 = vst.msk [vmem:[#allocation2 + $0x30] sm:$0xff] %vm311, 0.0
      %320 = vst.msk [vmem:[#allocation2 + $0x38] sm:$0x1] %vm313, 0.0
      %321 = vst.msk [vmem:[#allocation2 + $0x40] sm:$0xff] %vm311, 0.0
      %322 = vst.msk [vmem:[#allocation2 + $0x48] sm:$0x1] %vm313, 0.0
      %323 = vst.msk [vmem:[#allocation2 + $0x50] sm:$0xff] %vm311, 0.0
      %324 = vst.msk [vmem:[#allocation2 + $0x58] sm:$0x1] %vm313, 0.0
      %325 = vst.msk [vmem:[#allocation2 + $0x60] sm:$0xff] %vm311, 0.0
      %326 = vst.msk [vmem:[#allocation2 + $0x68] sm:$0x1] %vm313, 0.0
      %327 = vst.msk [vmem:[#allocation2 + $0x70] sm:$0xff] %vm311, 0.0
      %328 = vst.msk [vmem:[#allocation2 + $0x78] sm:$0x1] %vm313, 0.0
      %329 = vst.msk [vmem:[#allocation2 + $0x80] sm:$0xff] %vm311, 0.0
      %330 = vst.msk [vmem:[#allocation2 + $0x88] sm:$0x1] %vm313, 0.0
      %331 = vst.msk [vmem:[#allocation2 + $0x90] sm:$0xff] %vm311, 0.0
      %332 = vst.msk [vmem:[#allocation2 + $0x98] sm:$0x1] %vm313, 0.0
      %333 = vst.msk [vmem:[#allocation2 + $0xa0] sm:$0xff] %vm311, 0.0
      %334 = vst.msk [vmem:[#allocation2 + $0xa8] sm:$0x1] %vm313, 0.0
      %335 = vst.msk [vmem:[#allocation2 + $0xb0] sm:$0xff] %vm311, 0.0
      %336 = vst.msk [vmem:[#allocation2 + $0xb8] sm:$0x1] %vm313, 0.0
      %337 = vst.msk [vmem:[#allocation2 + $0xc0] sm:$0xff] %vm311, 0.0
      %338 = vst.msk [vmem:[#allocation2 + $0xc8] sm:$0x1] %vm313, 0.0
      %339 = vst.msk [vmem:[#allocation2 + $0xd0] sm:$0xff] %vm311, 0.0
      %340 = vst.msk [vmem:[#allocation2 + $0xd8] sm:$0x1] %vm313, 0.0
      %341 = vst.msk [vmem:[#allocation2 + $0xe0] sm:$0xff] %vm311, 0.0
      %342 = vst.msk [vmem:[#allocation2 + $0xe8] sm:$0x1] %vm313, 0.0
      %343 = vst.msk [vmem:[#allocation2 + $0xf0] sm:$0xff] %vm311, 0.0
      %344 = vst.msk [vmem:[#allocation2 + $0xf8] sm:$0x1] %vm313, 0.0
      %345 = vst.msk [vmem:[#allocation2 + $0x100] sm:$0xff] %vm311, 0.0
      %346 = vst.msk [vmem:[#allocation2 + $0x108] sm:$0x1] %vm313, 0.0
      %347 = vst.msk [vmem:[#allocation2 + $0x110] sm:$0xff] %vm311, 0.0
      %348 = vst.msk [vmem:[#allocation2 + $0x118] sm:$0x1] %vm313, 0.0
      %349 = vst.msk [vmem:[#allocation2 + $0x120] sm:$0xff] %vm311, 0.0
      %350 = vst.msk [vmem:[#allocation2 + $0x128] sm:$0x1] %vm313, 0.0
      %351 = vst.msk [vmem:[#allocation2 + $0x130] sm:$0xff] %vm311, 0.0
      %352 = vst.msk [vmem:[#allocation2 + $0x138] sm:$0x1] %vm313, 0.0
      %353 = vst.msk [vmem:[#allocation2 + $0x140] sm:$0xff] %vm311, 0.0
      %354 = vst.msk [vmem:[#allocation2 + $0x148] sm:$0x1] %vm313, 0.0
      %355 = vst.msk [vmem:[#allocation2 + $0x150] sm:$0xff] %vm311, 0.0
      %356 = vst.msk [vmem:[#allocation2 + $0x158] sm:$0x1] %vm313, 0.0
      %357 = vst.msk [vmem:[#allocation2 + $0x160] sm:$0xff] %vm311, 0.0
      %358 = vst.msk [vmem:[#allocation2 + $0x168] sm:$0x1] %vm313, 0.0
      %359 = vst.msk [vmem:[#allocation2 + $0x170] sm:$0xff] %vm311, 0.0
      %360 = vst.msk [vmem:[#allocation2 + $0x178] sm:$0x1] %vm313, 0.0
      %361 = vst.msk [vmem:[#allocation2 + $0x180] sm:$0xff] %vm311, 0.0
      %362 = vst.msk [vmem:[#allocation2 + $0x188] sm:$0x1] %vm313, 0.0
      %363 = vst.msk [vmem:[#allocation2 + $0x190] sm:$0xff] %vm311, 0.0
      %364 = vst.msk [vmem:[#allocation2 + $0x198] sm:$0x1] %vm313, 0.0
      %365 = vst.msk [vmem:[#allocation2 + $0x1a0] sm:$0xff] %vm311, 0.0
      %366 = vst.msk [vmem:[#allocation2 + $0x1a8] sm:$0x1] %vm313, 0.0
      %367 = vst.msk [vmem:[#allocation2 + $0x1b0] sm:$0xff] %vm311, 0.0
      %368 = vst.msk [vmem:[#allocation2 + $0x1b8] sm:$0x1] %vm313, 0.0
      %369 = vst.msk [vmem:[#allocation2 + $0x1c0] sm:$0xff] %vm311, 0.0
      %370 = vst.msk [vmem:[#allocation2 + $0x1c8] sm:$0x1] %vm313, 0.0
      %371 = vst.msk [vmem:[#allocation2 + $0x1d0] sm:$0xff] %vm311, 0.0
      %372 = vst.msk [vmem:[#allocation2 + $0x1d8] sm:$0x1] %vm313, 0.0
      %373 = vst.msk [vmem:[#allocation2 + $0x1e0] sm:$0xff] %vm311, 0.0
      %374 = vst.msk [vmem:[#allocation2 + $0x1e8] sm:$0x1] %vm313, 0.0
      %375 = vst.msk [vmem:[#allocation2 + $0x1f0] sm:$0xff] %vm311, 0.0
      %376 = vst.msk [vmem:[#allocation2 + $0x1f8] sm:$0x1] %vm313, 0.0
      %377 = vst.msk [vmem:[#allocation2 + $0x200] sm:$0xff] %vm311, 0.0
      %378 = vst.msk [vmem:[#allocation2 + $0x208] sm:$0x1] %vm313, 0.0
      %379 = vst.msk [vmem:[#allocation2 + $0x210] sm:$0xff] %vm311, 0.0
      %380 = vst.msk [vmem:[#allocation2 + $0x218] sm:$0x1] %vm313, 0.0
      %381 = vst.msk [vmem:[#allocation2 + $0x220] sm:$0xff] %vm311, 0.0
      %382 = vst.msk [vmem:[#allocation2 + $0x228] sm:$0x1] %vm313, 0.0
      %383 = vst.msk [vmem:[#allocation2 + $0x230] sm:$0xff] %vm311, 0.0
      %384 = vst.msk [vmem:[#allocation2 + $0x238] sm:$0x1] %vm313, 0.0
      %v385 = vld [vmem:[%s300] sm:$0xff]
      %v386 = vld [vmem:[%s300 + $0x8] sm:$0xff]
      %v387 = vld [vmem:[%s300 + $0x10] sm:$0xff]
      %v388 = vld [vmem:[%s300 + $0x18] sm:$0xff]
      %v389 = vld [vmem:[%s300 + $0x20] sm:$0xff]
      %v390 = vld [vmem:[%s300 + $0x28] sm:$0xff]
      %v391 = vld [vmem:[%s300 + $0x30] sm:$0xff]
      %v392 = vld [vmem:[%s300 + $0x38] sm:$0xff]
      %v394 = vlaneseq
      %v395 = vshrl.u32 %v394, 7
      %v396 = vsub.s32 0, %v395
      %v397 = vrot.slane %v307, %v396
      %v399 = vmul.f32 %v385, %v397
      %v400 = vmul.f32 %v386, %v397
      %v401 = vmul.f32 %v387, %v397
      %v402 = vmul.f32 %v388, %v397
      %v403 = vmul.f32 %v389, %v397
      %v404 = vmul.f32 %v390, %v397
      %v405 = vmul.f32 %v391, %v397
      %v406 = vmul.f32 %v392, %v397
      %v408 = vlaneseq
      %v409 = vshrl.u32 %v408, 7
      %v410 = vsub.s32 0, %v409
      %v411 = vrot.slane %v308, %v410
      %v413 = vadd.f32 %v399, %v411
      %v414 = vadd.f32 %v400, %v411
      %v415 = vadd.f32 %v401, %v411
      %v416 = vadd.f32 %v402, %v411
      %v417 = vadd.f32 %v403, %v411
      %v418 = vadd.f32 %v404, %v411
      %v419 = vadd.f32 %v405, %v411
      %v420 = vadd.f32 %v406, %v411
      %v421 = vmax.f32 %v413, 0.0
      %v422 = vmax.f32 %v414, 0.0
      %v423 = vmax.f32 %v415, 0.0
      %v424 = vmax.f32 %v416, 0.0
      %v425 = vmax.f32 %v417, 0.0
      %v426 = vmax.f32 %v418, 0.0
      %v427 = vmax.f32 %v419, 0.0
      %v428 = vmax.f32 %v420, 0.0
      %s429 = scalar_lea.vmem [#allocation2], 16
      %430 = vst.msk [vmem:[%s429 + $0x1] sm:$0xff] %vm311, %v421
      %431 = vst.msk [vmem:[%s429 + $0x11] sm:$0xff] %vm311, %v422
      %432 = vst.msk [vmem:[%s429 + $0x21] sm:$0xff] %vm311, %v423
      %433 = vst.msk [vmem:[%s429 + $0x31] sm:$0xff] %vm311, %v424
      %434 = vst.msk [vmem:[%s429 + $0x41] sm:$0xff] %vm311, %v425
      %435 = vst.msk [vmem:[%s429 + $0x51] sm:$0xff] %vm311, %v426
      %436 = vst.msk [vmem:[%s429 + $0x61] sm:$0xff] %vm311, %v427
      %437 = vst.msk [vmem:[%s429 + $0x71] sm:$0xff] %vm311, %v428
      %s438 = scalar_lea.vmem %s300, 64
      %v439 = vld [vmem:[%s438] sm:$0xff]
      %v440 = vld [vmem:[%s438 + $0x8] sm:$0xff]
      %v441 = vld [vmem:[%s438 + $0x10] sm:$0xff]
      %v442 = vld [vmem:[%s438 + $0x18] sm:$0xff]
      %v443 = vld [vmem:[%s438 + $0x20] sm:$0xff]
      %v444 = vld [vmem:[%s438 + $0x28] sm:$0xff]
      %v445 = vld [vmem:[%s438 + $0x30] sm:$0xff]
      %v446 = vld [vmem:[%s438 + $0x38] sm:$0xff]
      %v447 = vmul.f32 %v439, %v397
      %v448 = vmul.f32 %v440, %v397
      %v449 = vmul.f32 %v441, %v397
      %v450 = vmul.f32 %v442, %v397
      %v451 = vmul.f32 %v443, %v397
      %v452 = vmul.f32 %v444, %v397
      %v453 = vmul.f32 %v445, %v397
      %v454 = vmul.f32 %v446, %v397
      %v455 = vadd.f32 %v447, %v411
      %v456 = vadd.f32 %v448, %v411
      %v457 = vadd.f32 %v449, %v411
      %v458 = vadd.f32 %v450, %v411
      %v459 = vadd.f32 %v451, %v411
      %v460 = vadd.f32 %v452, %v411
      %v461 = vadd.f32 %v453, %v411
      %v462 = vadd.f32 %v454, %v411
      %v463 = vmax.f32 %v455, 0.0
      %v464 = vmax.f32 %v456, 0.0
      %v465 = vmax.f32 %v457, 0.0
      %v466 = vmax.f32 %v458, 0.0
      %v467 = vmax.f32 %v459, 0.0
      %v468 = vmax.f32 %v460, 0.0
      %v469 = vmax.f32 %v461, 0.0
      %v470 = vmax.f32 %v462, 0.0
      %s471 = scalar_lea.vmem [#allocation2], 160
      %472 = vst.msk [vmem:[%s471 + $0x1] sm:$0xff] %vm311, %v463
      %473 = vst.msk [vmem:[%s471 + $0x11] sm:$0xff] %vm311, %v464
      %474 = vst.msk [vmem:[%s471 + $0x21] sm:$0xff] %vm311, %v465
      %475 = vst.msk [vmem:[%s471 + $0x31] sm:$0xff] %vm311, %v466
      %476 = vst.msk [vmem:[%s471 + $0x41] sm:$0xff] %vm311, %v467
      %477 = vst.msk [vmem:[%s471 + $0x51] sm:$0xff] %vm311, %v468
      %478 = vst.msk [vmem:[%s471 + $0x61] sm:$0xff] %vm311, %v469
      %479 = vst.msk [vmem:[%s471 + $0x71] sm:$0xff] %vm311, %v470
      %s480 = scalar_lea.vmem %s300, 128
      %v481 = vld [vmem:[%s480] sm:$0xff]
      %v482 = vld [vmem:[%s480 + $0x8] sm:$0xff]
      %v483 = vld [vmem:[%s480 + $0x10] sm:$0xff]
      %v484 = vld [vmem:[%s480 + $0x18] sm:$0xff]
      %v485 = vld [vmem:[%s480 + $0x20] sm:$0xff]
      %v486 = vld [vmem:[%s480 + $0x28] sm:$0xff]
      %v487 = vld [vmem:[%s480 + $0x30] sm:$0xff]
      %v488 = vld [vmem:[%s480 + $0x38] sm:$0xff]
      %v489 = vmul.f32 %v481, %v397
      %v490 = vmul.f32 %v482, %v397
      %v491 = vmul.f32 %v483, %v397
      %v492 = vmul.f32 %v484, %v397
      %v493 = vmul.f32 %v485, %v397
      %v494 = vmul.f32 %v486, %v397
      %v495 = vmul.f32 %v487, %v397
      %v496 = vmul.f32 %v488, %v397
      %v497 = vadd.f32 %v489, %v411
      %v498 = vadd.f32 %v490, %v411
      %v499 = vadd.f32 %v491, %v411
      %v500 = vadd.f32 %v492, %v411
      %v501 = vadd.f32 %v493, %v411
      %v502 = vadd.f32 %v494, %v411
      %v503 = vadd.f32 %v495, %v411
      %v504 = vadd.f32 %v496, %v411
      %v505 = vmax.f32 %v497, 0.0
      %v506 = vmax.f32 %v498, 0.0
      %v507 = vmax.f32 %v499, 0.0
      %v508 = vmax.f32 %v500, 0.0
      %v509 = vmax.f32 %v501, 0.0
      %v510 = vmax.f32 %v502, 0.0
      %v511 = vmax.f32 %v503, 0.0
      %v512 = vmax.f32 %v504, 0.0
      %s513 = scalar_lea.vmem [#allocation2], 304
      %514 = vst.msk [vmem:[%s513 + $0x1] sm:$0xff] %vm311, %v505
      %515 = vst.msk [vmem:[%s513 + $0x11] sm:$0xff] %vm311, %v506
      %516 = vst.msk [vmem:[%s513 + $0x21] sm:$0xff] %vm311, %v507
      %517 = vst.msk [vmem:[%s513 + $0x31] sm:$0xff] %vm311, %v508
      %518 = vst.msk [vmem:[%s513 + $0x41] sm:$0xff] %vm311, %v509
      %519 = vst.msk [vmem:[%s513 + $0x51] sm:$0xff] %vm311, %v510
      %520 = vst.msk [vmem:[%s513 + $0x61] sm:$0xff] %vm311, %v511
      %521 = vst.msk [vmem:[%s513 + $0x71] sm:$0xff] %vm311, %v512
      %s522 = scalar_lea.vmem %s300, 192
      %v523 = vld [vmem:[%s522] sm:$0xff]
      %v524 = vld [vmem:[%s522 + $0x8] sm:$0xff]
      %v525 = vld [vmem:[%s522 + $0x10] sm:$0xff]
      %v526 = vld [vmem:[%s522 + $0x18] sm:$0xff]
      %v527 = vld [vmem:[%s522 + $0x20] sm:$0xff]
      %v528 = vld [vmem:[%s522 + $0x28] sm:$0xff]
      %v529 = vld [vmem:[%s522 + $0x30] sm:$0xff]
      %v530 = vld [vmem:[%s522 + $0x38] sm:$0xff]
      %v531 = vmul.f32 %v523, %v397
      %v532 = vmul.f32 %v524, %v397
      %v533 = vmul.f32 %v525, %v397
      %v534 = vmul.f32 %v526, %v397
      %v535 = vmul.f32 %v527, %v397
      %v536 = vmul.f32 %v528, %v397
      %v537 = vmul.f32 %v529, %v397
      %v538 = vmul.f32 %v530, %v397
      %v539 = vadd.f32 %v531, %v411
      %v540 = vadd.f32 %v532, %v411
      %v541 = vadd.f32 %v533, %v411
      %v542 = vadd.f32 %v534, %v411
      %v543 = vadd.f32 %v535, %v411
      %v544 = vadd.f32 %v536, %v411
      %v545 = vadd.f32 %v537, %v411
      %v546 = vadd.f32 %v538, %v411
      %v547 = vmax.f32 %v539, 0.0
      %v548 = vmax.f32 %v540, 0.0
      %v549 = vmax.f32 %v541, 0.0
      %v550 = vmax.f32 %v542, 0.0
      %v551 = vmax.f32 %v543, 0.0
      %v552 = vmax.f32 %v544, 0.0
      %v553 = vmax.f32 %v545, 0.0
      %v554 = vmax.f32 %v546, 0.0
      %s555 = scalar_lea.vmem [#allocation2], 448
      %556 = vst.msk [vmem:[%s555 + $0x1] sm:$0xff] %vm311, %v547
      %557 = vst.msk [vmem:[%s555 + $0x11] sm:$0xff] %vm311, %v548
      %558 = vst.msk [vmem:[%s555 + $0x21] sm:$0xff] %vm311, %v549
      %559 = vst.msk [vmem:[%s555 + $0x31] sm:$0xff] %vm311, %v550
      %560 = vst.msk [vmem:[%s555 + $0x41] sm:$0xff] %vm311, %v551
      %561 = vst.msk [vmem:[%s555 + $0x51] sm:$0xff] %vm311, %v552
      %562 = vst.msk [vmem:[%s555 + $0x61] sm:$0xff] %vm311, %v553
      %563 = vst.msk [vmem:[%s555 + $0x71] sm:$0xff] %vm311, %v554
      %s564 = scalar_lea.vmem [#allocation2], 432
      %v565 = vld [vmem:[%s564] sm:$0xff]
      %v566 = vld [vmem:[%s564 + $0x10] sm:$0xff]
      %v567 = vld [vmem:[%s564 + $0x20] sm:$0xff]
      %v568 = vld [vmem:[%s564 + $0x30] sm:$0xff]
      %v569 = vld [vmem:[%s564 + $0x40] sm:$0xff]
      %v570 = vld [vmem:[%s564 + $0x50] sm:$0xff]
      %v571 = vld [vmem:[%s564 + $0x60] sm:$0xff]
      %v572 = vld [vmem:[%s564 + $0x70] sm:$0xff]
      %v573 = vpack.c.bf16 %v566, %v565
      %v574 = vpack.c.bf16 %v568, %v567
      %v575 = vpack.c.bf16 %v570, %v569
      %v576 = vpack.c.bf16 %v572, %v571
      %v577 = vld [vmem:[%s3] sm:$0x3]
      %s578 = scalar_lea.vmem [#allocation2], 288
      %v579 = vld [vmem:[%s578 + $0x1] sm:$0xff]
      %v580 = vld [vmem:[%s578 + $0x11] sm:$0xff]
      %v581 = vld [vmem:[%s578 + $0x21] sm:$0xff]
      %v582 = vld [vmem:[%s578 + $0x31] sm:$0xff]
      %v583 = vld [vmem:[%s578 + $0x41] sm:$0xff]
      %v584 = vld [vmem:[%s578 + $0x51] sm:$0xff]
      %v585 = vld [vmem:[%s578 + $0x61] sm:$0xff]
      %v586 = vld [vmem:[%s578 + $0x71] sm:$0xff]
      %v587 = vpack.c.bf16 %v580, %v579
      %v588 = vpack.c.bf16 %v582, %v581
      %v589 = vpack.c.bf16 %v584, %v583
      %v590 = vpack.c.bf16 %v586, %v585
      %s591 = scalar_lea.vmem %s3, 2
      %v592 = vld [vmem:[%s591] sm:$0x3]
      %v594 = vsel %vm311, %v587, 0
      %v597 = vsel %vm311, %v588, 0
      %v600 = vsel %vm311, %v589, 0
      %v603 = vsel %vm311, %v590, 0
      %vm605 = vcmask 1041408
      %v607 = vsel %vm605, %v592, 0
      %609 = vmatprep.subr.bf16.mxu0 0
      %610 = vmatpush1.bf16.msra.mxu0 0
      %611 = vmatprep.subr.bf16.mxu0 0
      %612 = vmatpush1.bf16.msra.mxu0 0
      %613 = vmatprep.subr.bf16.mxu0 0
      %614 = vmatpush1.bf16.msra.mxu0 0
      %615 = vmatprep.subr.bf16.mxu0 0
      %616 = vmatpush1.bf16.msra.mxu0 0
      %617 = vmatprep.subr.bf16.mxu0 0
      %618 = vmatpush1.bf16.msra.mxu0 0
      %619 = vmatprep.subr.bf16.mxu0 0
      %620 = vmatpush1.bf16.msra.mxu0 0
      %621 = vmatprep.subr.bf16.mxu0 0
      %622 = vmatpush1.bf16.msra.mxu0 0
      %623 = vmatprep.subr.bf16.mxu0 0
      %624 = vmatpush1.bf16.msra.mxu0 %v607
      %625 = vmatprep.subr.bf16.mxu0 0
      %626 = vmatpush2.bf16.msra.mxu0 0
      %627 = vmatprep.subr.bf16.mxu0 0
      %628 = vmatpush2.bf16.msra.mxu0 0
      %629 = vmatprep.subr.bf16.mxu0 0
      %630 = vmatpush2.bf16.msra.mxu0 0
      %631 = vmatprep.subr.bf16.mxu0 0
      %632 = vmatpush2.bf16.msra.mxu0 0
      %633 = vmatprep.subr.bf16.mxu0 0
      %634 = vmatpush2.bf16.msra.mxu0 0
      %635 = vmatprep.subr.bf16.mxu0 0
      %636 = vmatpush2.bf16.msra.mxu0 0
      %637 = vmatprep.subr.bf16.mxu0 0
      %638 = vmatpush2.bf16.msra.mxu0 0
      %639 = vmatprep.subr.bf16.mxu0 0
      %640 = vmatpush2.bf16.msra.mxu0 0
      %641 = vmatprep.mubr.bf16.mxu0 0
      %642 = vmatmul.mubr.bf16.gmra.mxu0 %v594
      %v643 = vpop.f32.mrf.mxu0
      %v644 = vadd.f32 0.0, %v643
      %v645 = vpop.f32.mrf.mxu0
      %v646 = vpop.f32.mrf.mxu0
      %v647 = vadd.f32 0.0, %v646
      %v648 = vpop.f32.mrf.mxu0
      %649 = vmatprep.mubr.bf16.mxu0 0
      %650 = vmatmul.mubr.bf16.gmra.mxu0 %v597
      %v651 = vpop.f32.mrf.mxu0
      %v652 = vadd.f32 0.0, %v651
      %v653 = vpop.f32.mrf.mxu0
      %v654 = vpop.f32.mrf.mxu0
      %v655 = vadd.f32 0.0, %v654
      %v656 = vpop.f32.mrf.mxu0
      %657 = vmatprep.mubr.bf16.mxu0 0
      %658 = vmatmul.mubr.bf16.gmra.mxu0 %v600
      %v659 = vpop.f32.mrf.mxu0
      %v660 = vadd.f32 0.0, %v659
      %v661 = vpop.f32.mrf.mxu0
      %v662 = vpop.f32.mrf.mxu0
      %v663 = vadd.f32 0.0, %v662
      %v664 = vpop.f32.mrf.mxu0
      %665 = vmatprep.mubr.bf16.mxu0 0
      %666 = vmatmul.mubr.bf16.gmra.mxu0 %v603
      %v667 = vpop.f32.mrf.mxu0
      %v668 = vadd.f32 0.0, %v667
      %v669 = vpop.f32.mrf.mxu0
      %v670 = vpop.f32.mrf.mxu0
      %v671 = vadd.f32 0.0, %v670
      %v672 = vpop.f32.mrf.mxu0
      %673 = vdwg.mxu0
      %v675 = vsel %vm311, %v573, 0
      %v678 = vsel %vm311, %v574, 0
      %v681 = vsel %vm311, %v575, 0
      %v684 = vsel %vm311, %v576, 0
      %v687 = vsel %vm605, %v577, 0
      %689 = vmatprep.subr.bf16.mxu0 0
      %690 = vmatpush1.bf16.msra.mxu0 0
      %691 = vmatprep.subr.bf16.mxu0 0
      %692 = vmatpush1.bf16.msra.mxu0 0
      %693 = vmatprep.subr.bf16.mxu0 0
      %694 = vmatpush1.bf16.msra.mxu0 0
      %695 = vmatprep.subr.bf16.mxu0 0
      %696 = vmatpush1.bf16.msra.mxu0 0
      %697 = vmatprep.subr.bf16.mxu0 0
      %698 = vmatpush1.bf16.msra.mxu0 0
      %699 = vmatprep.subr.bf16.mxu0 0
      %700 = vmatpush1.bf16.msra.mxu0 0
      %701 = vmatprep.subr.bf16.mxu0 0
      %702 = vmatpush1.bf16.msra.mxu0 0
      %703 = vmatprep.subr.bf16.mxu0 0
      %704 = vmatpush1.bf16.msra.mxu0 %v687
      %705 = vmatprep.subr.bf16.mxu0 0
      %706 = vmatpush2.bf16.msra.mxu0 0
      %707 = vmatprep.subr.bf16.mxu0 0
      %708 = vmatpush2.bf16.msra.mxu0 0
      %709 = vmatprep.subr.bf16.mxu0 0
      %710 = vmatpush2.bf16.msra.mxu0 0
      %711 = vmatprep.subr.bf16.mxu0 0
      %712 = vmatpush2.bf16.msra.mxu0 0
      %713 = vmatprep.subr.bf16.mxu0 0
      %714 = vmatpush2.bf16.msra.mxu0 0
      %715 = vmatprep.subr.bf16.mxu0 0
      %716 = vmatpush2.bf16.msra.mxu0 0
      %717 = vmatprep.subr.bf16.mxu0 0
      %718 = vmatpush2.bf16.msra.mxu0 0
      %719 = vmatprep.subr.bf16.mxu0 0
      %720 = vmatpush2.bf16.msra.mxu0 0
      %721 = vmatprep.mubr.bf16.mxu0 0
      %722 = vmatmul.mubr.bf16.gmra.mxu0 %v675
      %v723 = vpop.f32.mrf.mxu0
      %v724 = vadd.f32 %v644, %v723
      %v725 = vpop.f32.mrf.mxu0
      %v726 = vpop.f32.mrf.mxu0
      %v727 = vadd.f32 %v647, %v726
      %v728 = vpop.f32.mrf.mxu0
      %729 = vmatprep.mubr.bf16.mxu0 0
      %730 = vmatmul.mubr.bf16.gmra.mxu0 %v678
      %v731 = vpop.f32.mrf.mxu0
      %v732 = vadd.f32 %v652, %v731
      %v733 = vpop.f32.mrf.mxu0
      %v734 = vpop.f32.mrf.mxu0
      %v735 = vadd.f32 %v655, %v734
      %v736 = vpop.f32.mrf.mxu0
      %737 = vmatprep.mubr.bf16.mxu0 0
      %738 = vmatmul.mubr.bf16.gmra.mxu0 %v681
      %v739 = vpop.f32.mrf.mxu0
      %v740 = vadd.f32 %v660, %v739
      %v741 = vpop.f32.mrf.mxu0
      %v742 = vpop.f32.mrf.mxu0
      %v743 = vadd.f32 %v663, %v742
      %v744 = vpop.f32.mrf.mxu0
      %745 = vmatprep.mubr.bf16.mxu0 0
      %746 = vmatmul.mubr.bf16.gmra.mxu0 %v684
      %v747 = vpop.f32.mrf.mxu0
      %v748 = vadd.f32 %v668, %v747
      %v749 = vpop.f32.mrf.mxu0
      %v750 = vpop.f32.mrf.mxu0
      %v751 = vadd.f32 %v671, %v750
      %v752 = vpop.f32.mrf.mxu0
      %753 = vdwg.mxu0
      %v754 = vld [vmem:[%s564 + $0x1] sm:$0xff]
      %v755 = vld [vmem:[%s564 + $0x11] sm:$0xff]
      %v756 = vld [vmem:[%s564 + $0x21] sm:$0xff]
      %v757 = vld [vmem:[%s564 + $0x31] sm:$0xff]
      %v758 = vld [vmem:[%s564 + $0x41] sm:$0xff]
      %v759 = vld [vmem:[%s564 + $0x51] sm:$0xff]
      %v760 = vld [vmem:[%s564 + $0x61] sm:$0xff]
      %v761 = vld [vmem:[%s564 + $0x71] sm:$0xff]
      %v762 = vpack.c.bf16 %v755, %v754
      %v763 = vpack.c.bf16 %v757, %v756
      %v764 = vpack.c.bf16 %v759, %v758
      %v765 = vpack.c.bf16 %v761, %v760
      %s766 = scalar_lea.vmem %s3, 4
      %v767 = vld [vmem:[%s766] sm:$0x3]
      %v769 = vsel %vm311, %v762, 0
      %v772 = vsel %vm311, %v763, 0
      %v775 = vsel %vm311, %v764, 0
      %v778 = vsel %vm311, %v765, 0
      %v781 = vsel %vm605, %v767, 0
      %783 = vmatprep.subr.bf16.mxu0 0
      %784 = vmatpush1.bf16.msra.mxu0 0
      %785 = vmatprep.subr.bf16.mxu0 0
      %786 = vmatpush1.bf16.msra.mxu0 0
      %787 = vmatprep.subr.bf16.mxu0 0
      %788 = vmatpush1.bf16.msra.mxu0 0
      %789 = vmatprep.subr.bf16.mxu0 0
      %790 = vmatpush1.bf16.msra.mxu0 0
      %791 = vmatprep.subr.bf16.mxu0 0
      %792 = vmatpush1.bf16.msra.mxu0 0
      %793 = vmatprep.subr.bf16.mxu0 0
      %794 = vmatpush1.bf16.msra.mxu0 0
      %795 = vmatprep.subr.bf16.mxu0 0
      %796 = vmatpush1.bf16.msra.mxu0 0
      %797 = vmatprep.subr.bf16.mxu0 0
      %798 = vmatpush1.bf16.msra.mxu0 %v781
      %799 = vmatprep.subr.bf16.mxu0 0
      %800 = vmatpush2.bf16.msra.mxu0 0
      %801 = vmatprep.subr.bf16.mxu0 0
      %802 = vmatpush2.bf16.msra.mxu0 0
      %803 = vmatprep.subr.bf16.mxu0 0
      %804 = vmatpush2.bf16.msra.mxu0 0
      %805 = vmatprep.subr.bf16.mxu0 0
      %806 = vmatpush2.bf16.msra.mxu0 0
      %807 = vmatprep.subr.bf16.mxu0 0
      %808 = vmatpush2.bf16.msra.mxu0 0
      %809 = vmatprep.subr.bf16.mxu0 0
      %810 = vmatpush2.bf16.msra.mxu0 0
      %811 = vmatprep.subr.bf16.mxu0 0
      %812 = vmatpush2.bf16.msra.mxu0 0
      %813 = vmatprep.subr.bf16.mxu0 0
      %814 = vmatpush2.bf16.msra.mxu0 0
      %815 = vmatprep.mubr.bf16.mxu0 0
      %816 = vmatmul.mubr.bf16.gmra.mxu0 %v769
      %v817 = vpop.f32.mrf.mxu0
      %v818 = vadd.f32 0.0, %v817
      %v819 = vpop.f32.mrf.mxu0
      %v820 = vpop.f32.mrf.mxu0
      %v821 = vadd.f32 0.0, %v820
      %v822 = vpop.f32.mrf.mxu0
      %823 = vmatprep.mubr.bf16.mxu0 0
      %824 = vmatmul.mubr.bf16.gmra.mxu0 %v772
      %v825 = vpop.f32.mrf.mxu0
      %v826 = vadd.f32 0.0, %v825
      %v827 = vpop.f32.mrf.mxu0
      %v828 = vpop.f32.mrf.mxu0
      %v829 = vadd.f32 0.0, %v828
      %v830 = vpop.f32.mrf.mxu0
      %831 = vmatprep.mubr.bf16.mxu0 0
      %832 = vmatmul.mubr.bf16.gmra.mxu0 %v775
      %v833 = vpop.f32.mrf.mxu0
      %v834 = vadd.f32 0.0, %v833
      %v835 = vpop.f32.mrf.mxu0
      %v836 = vpop.f32.mrf.mxu0
      %v837 = vadd.f32 0.0, %v836
      %v838 = vpop.f32.mrf.mxu0
      %839 = vmatprep.mubr.bf16.mxu0 0
      %840 = vmatmul.mubr.bf16.gmra.mxu0 %v778
      %v841 = vpop.f32.mrf.mxu0
      %v842 = vadd.f32 0.0, %v841
      %v843 = vpop.f32.mrf.mxu0
      %v844 = vpop.f32.mrf.mxu0
      %v845 = vadd.f32 0.0, %v844
      %v846 = vpop.f32.mrf.mxu0
      %847 = vdwg.mxu0
      %v848 = vadd.f32 %v724, %v818
      %v849 = vadd.f32 %v727, %v821
      %v850 = vadd.f32 %v732, %v826
      %v851 = vadd.f32 %v735, %v829
      %v852 = vadd.f32 %v740, %v834
      %v853 = vadd.f32 %v743, %v837
      %v854 = vadd.f32 %v748, %v842
      %v855 = vadd.f32 %v751, %v845
      %v856 = vld [vmem:[%s471] sm:$0xff]
      %v857 = vld [vmem:[%s471 + $0x10] sm:$0xff]
      %v858 = vld [vmem:[%s471 + $0x20] sm:$0xff]
      %v859 = vld [vmem:[%s471 + $0x30] sm:$0xff]
      %v860 = vld [vmem:[%s471 + $0x40] sm:$0xff]
      %v861 = vld [vmem:[%s471 + $0x50] sm:$0xff]
      %v862 = vld [vmem:[%s471 + $0x60] sm:$0xff]
      %v863 = vld [vmem:[%s471 + $0x70] sm:$0xff]
      %v864 = vpack.c.bf16 %v857, %v856
      %v865 = vpack.c.bf16 %v859, %v858
      %v866 = vpack.c.bf16 %v861, %v860
      %v867 = vpack.c.bf16 %v863, %v862
      %s868 = scalar_lea.vmem %s3, 6
      %v869 = vld [vmem:[%s868] sm:$0x3]
      %v871 = vsel %vm311, %v864, 0
      %v874 = vsel %vm311, %v865, 0
      %v877 = vsel %vm311, %v866, 0
      %v880 = vsel %vm311, %v867, 0
      %v883 = vsel %vm605, %v869, 0
      %885 = vmatprep.subr.bf16.mxu0 0
      %886 = vmatpush1.bf16.msra.mxu0 0
      %887 = vmatprep.subr.bf16.mxu0 0
      %888 = vmatpush1.bf16.msra.mxu0 0
      %889 = vmatprep.subr.bf16.mxu0 0
      %890 = vmatpush1.bf16.msra.mxu0 0
      %891 = vmatprep.subr.bf16.mxu0 0
      %892 = vmatpush1.bf16.msra.mxu0 0
      %893 = vmatprep.subr.bf16.mxu0 0
      %894 = vmatpush1.bf16.msra.mxu0 0
      %895 = vmatprep.subr.bf16.mxu0 0
      %896 = vmatpush1.bf16.msra.mxu0 0
      %897 = vmatprep.subr.bf16.mxu0 0
      %898 = vmatpush1.bf16.msra.mxu0 0
      %899 = vmatprep.subr.bf16.mxu0 0
      %900 = vmatpush1.bf16.msra.mxu0 %v883
      %901 = vmatprep.subr.bf16.mxu0 0
      %902 = vmatpush2.bf16.msra.mxu0 0
      %903 = vmatprep.subr.bf16.mxu0 0
      %904 = vmatpush2.bf16.msra.mxu0 0
      %905 = vmatprep.subr.bf16.mxu0 0
      %906 = vmatpush2.bf16.msra.mxu0 0
      %907 = vmatprep.subr.bf16.mxu0 0
      %908 = vmatpush2.bf16.msra.mxu0 0
      %909 = vmatprep.subr.bf16.mxu0 0
      %910 = vmatpush2.bf16.msra.mxu0 0
      %911 = vmatprep.subr.bf16.mxu0 0
      %912 = vmatpush2.bf16.msra.mxu0 0
      %913 = vmatprep.subr.bf16.mxu0 0
      %914 = vmatpush2.bf16.msra.mxu0 0
      %915 = vmatprep.subr.bf16.mxu0 0
      %916 = vmatpush2.bf16.msra.mxu0 0
      %917 = vmatprep.mubr.bf16.mxu0 0
      %918 = vmatmul.mubr.bf16.gmra.mxu0 %v871
      %v919 = vpop.f32.mrf.mxu0
      %v920 = vadd.f32 0.0, %v919
      %v921 = vpop.f32.mrf.mxu0
      %v922 = vpop.f32.mrf.mxu0
      %v923 = vadd.f32 0.0, %v922
      %v924 = vpop.f32.mrf.mxu0
      %925 = vmatprep.mubr.bf16.mxu0 0
      %926 = vmatmul.mubr.bf16.gmra.mxu0 %v874
      %v927 = vpop.f32.mrf.mxu0
      %v928 = vadd.f32 0.0, %v927
      %v929 = vpop.f32.mrf.mxu0
      %v930 = vpop.f32.mrf.mxu0
      %v931 = vadd.f32 0.0, %v930
      %v932 = vpop.f32.mrf.mxu0
      %933 = vmatprep.mubr.bf16.mxu0 0
      %934 = vmatmul.mubr.bf16.gmra.mxu0 %v877
      %v935 = vpop.f32.mrf.mxu0
      %v936 = vadd.f32 0.0, %v935
      %v937 = vpop.f32.mrf.mxu0
      %v938 = vpop.f32.mrf.mxu0
      %v939 = vadd.f32 0.0, %v938
      %v940 = vpop.f32.mrf.mxu0
      %941 = vmatprep.mubr.bf16.mxu0 0
      %942 = vmatmul.mubr.bf16.gmra.mxu0 %v880
      %v943 = vpop.f32.mrf.mxu0
      %v944 = vadd.f32 0.0, %v943
      %v945 = vpop.f32.mrf.mxu0
      %v946 = vpop.f32.mrf.mxu0
      %v947 = vadd.f32 0.0, %v946
      %v948 = vpop.f32.mrf.mxu0
      %949 = vdwg.mxu0
      %v950 = vadd.f32 %v848, %v920
      %v951 = vadd.f32 %v849, %v923
      %v952 = vadd.f32 %v850, %v928
      %v953 = vadd.f32 %v851, %v931
      %v954 = vadd.f32 %v852, %v936
      %v955 = vadd.f32 %v853, %v939
      %v956 = vadd.f32 %v854, %v944
      %v957 = vadd.f32 %v855, %v947
      %v958 = vld [vmem:[%s429 + $0x1] sm:$0xff]
      %v959 = vld [vmem:[%s429 + $0x11] sm:$0xff]
      %v960 = vld [vmem:[%s429 + $0x21] sm:$0xff]
      %v961 = vld [vmem:[%s429 + $0x31] sm:$0xff]
      %v962 = vld [vmem:[%s429 + $0x41] sm:$0xff]
      %v963 = vld [vmem:[%s429 + $0x51] sm:$0xff]
      %v964 = vld [vmem:[%s429 + $0x61] sm:$0xff]
      %v965 = vld [vmem:[%s429 + $0x71] sm:$0xff]
      %v966 = vpack.c.bf16 %v959, %v958
      %v967 = vpack.c.bf16 %v961, %v960
      %v968 = vpack.c.bf16 %v963, %v962
      %v969 = vpack.c.bf16 %v965, %v964
      %s970 = scalar_lea.vmem %s3, 8
      %v971 = vld [vmem:[%s970] sm:$0x3]
      %v973 = vsel %vm311, %v966, 0
      %v976 = vsel %vm311, %v967, 0
      %v979 = vsel %vm311, %v968, 0
      %v982 = vsel %vm311, %v969, 0
      %v985 = vsel %vm605, %v971, 0
      %987 = vmatprep.subr.bf16.mxu0 0
      %988 = vmatpush1.bf16.msra.mxu0 0
      %989 = vmatprep.subr.bf16.mxu0 0
      %990 = vmatpush1.bf16.msra.mxu0 0
      %991 = vmatprep.subr.bf16.mxu0 0
      %992 = vmatpush1.bf16.msra.mxu0 0
      %993 = vmatprep.subr.bf16.mxu0 0
      %994 = vmatpush1.bf16.msra.mxu0 0
      %995 = vmatprep.subr.bf16.mxu0 0
      %996 = vmatpush1.bf16.msra.mxu0 0
      %997 = vmatprep.subr.bf16.mxu0 0
      %998 = vmatpush1.bf16.msra.mxu0 0
      %999 = vmatprep.subr.bf16.mxu0 0
      %1000 = vmatpush1.bf16.msra.mxu0 0
      %1001 = vmatprep.subr.bf16.mxu0 0
      %1002 = vmatpush1.bf16.msra.mxu0 %v985
      %1003 = vmatprep.subr.bf16.mxu0 0
      %1004 = vmatpush2.bf16.msra.mxu0 0
      %1005 = vmatprep.subr.bf16.mxu0 0
      %1006 = vmatpush2.bf16.msra.mxu0 0
      %1007 = vmatprep.subr.bf16.mxu0 0
      %1008 = vmatpush2.bf16.msra.mxu0 0
      %1009 = vmatprep.subr.bf16.mxu0 0
      %1010 = vmatpush2.bf16.msra.mxu0 0
      %1011 = vmatprep.subr.bf16.mxu0 0
      %1012 = vmatpush2.bf16.msra.mxu0 0
      %1013 = vmatprep.subr.bf16.mxu0 0
      %1014 = vmatpush2.bf16.msra.mxu0 0
      %1015 = vmatprep.subr.bf16.mxu0 0
      %1016 = vmatpush2.bf16.msra.mxu0 0
      %1017 = vmatprep.subr.bf16.mxu0 0
      %1018 = vmatpush2.bf16.msra.mxu0 0
      %1019 = vmatprep.mubr.bf16.mxu0 0
      %1020 = vmatmul.mubr.bf16.gmra.mxu0 %v973
      %v1021 = vpop.f32.mrf.mxu0
      %v1022 = vadd.f32 0.0, %v1021
      %v1023 = vpop.f32.mrf.mxu0
      %v1024 = vpop.f32.mrf.mxu0
      %v1025 = vadd.f32 0.0, %v1024
      %v1026 = vpop.f32.mrf.mxu0
      %1027 = vmatprep.mubr.bf16.mxu0 0
      %1028 = vmatmul.mubr.bf16.gmra.mxu0 %v976
      %v1029 = vpop.f32.mrf.mxu0
      %v1030 = vadd.f32 0.0, %v1029
      %v1031 = vpop.f32.mrf.mxu0
      %v1032 = vpop.f32.mrf.mxu0
      %v1033 = vadd.f32 0.0, %v1032
      %v1034 = vpop.f32.mrf.mxu0
      %1035 = vmatprep.mubr.bf16.mxu0 0
      %1036 = vmatmul.mubr.bf16.gmra.mxu0 %v979
      %v1037 = vpop.f32.mrf.mxu0
      %v1038 = vadd.f32 0.0, %v1037
      %v1039 = vpop.f32.mrf.mxu0
      %v1040 = vpop.f32.mrf.mxu0
      %v1041 = vadd.f32 0.0, %v1040
      %v1042 = vpop.f32.mrf.mxu0
      %1043 = vmatprep.mubr.bf16.mxu0 0
      %1044 = vmatmul.mubr.bf16.gmra.mxu0 %v982
      %v1045 = vpop.f32.mrf.mxu0
      %v1046 = vadd.f32 0.0, %v1045
      %v1047 = vpop.f32.mrf.mxu0
      %v1048 = vpop.f32.mrf.mxu0
      %v1049 = vadd.f32 0.0, %v1048
      %v1050 = vpop.f32.mrf.mxu0
      %1051 = vdwg.mxu0
      %v1052 = vadd.f32 %v950, %v1022
      %v1053 = vadd.f32 %v951, %v1025
      %v1054 = vadd.f32 %v952, %v1030
      %v1055 = vadd.f32 %v953, %v1033
      %v1056 = vadd.f32 %v954, %v1038
      %v1057 = vadd.f32 %v955, %v1041
      %v1058 = vadd.f32 %v956, %v1046
      %v1059 = vadd.f32 %v957, %v1049
      %v1060 = vld [vmem:[%s471 + $0x1] sm:$0xff]
      %v1061 = vld [vmem:[%s471 + $0x11] sm:$0xff]
      %v1062 = vld [vmem:[%s471 + $0x21] sm:$0xff]
      %v1063 = vld [vmem:[%s471 + $0x31] sm:$0xff]
      %v1064 = vld [vmem:[%s471 + $0x41] sm:$0xff]
      %v1065 = vld [vmem:[%s471 + $0x51] sm:$0xff]
      %v1066 = vld [vmem:[%s471 + $0x61] sm:$0xff]
      %v1067 = vld [vmem:[%s471 + $0x71] sm:$0xff]
      %v1068 = vpack.c.bf16 %v1061, %v1060
      %v1069 = vpack.c.bf16 %v1063, %v1062
      %v1070 = vpack.c.bf16 %v1065, %v1064
      %v1071 = vpack.c.bf16 %v1067, %v1066
      %s1072 = scalar_lea.vmem %s3, 10
      %v1073 = vld [vmem:[%s1072] sm:$0x3]
      %v1075 = vsel %vm311, %v1068, 0
      %v1078 = vsel %vm311, %v1069, 0
      %v1081 = vsel %vm311, %v1070, 0
      %v1084 = vsel %vm311, %v1071, 0
      %v1087 = vsel %vm605, %v1073, 0
      %1089 = vmatprep.subr.bf16.mxu0 0
      %1090 = vmatpush1.bf16.msra.mxu0 0
      %1091 = vmatprep.subr.bf16.mxu0 0
      %1092 = vmatpush1.bf16.msra.mxu0 0
      %1093 = vmatprep.subr.bf16.mxu0 0
      %1094 = vmatpush1.bf16.msra.mxu0 0
      %1095 = vmatprep.subr.bf16.mxu0 0
      %1096 = vmatpush1.bf16.msra.mxu0 0
      %1097 = vmatprep.subr.bf16.mxu0 0
      %1098 = vmatpush1.bf16.msra.mxu0 0
      %1099 = vmatprep.subr.bf16.mxu0 0
      %1100 = vmatpush1.bf16.msra.mxu0 0
      %1101 = vmatprep.subr.bf16.mxu0 0
      %1102 = vmatpush1.bf16.msra.mxu0 0
      %1103 = vmatprep.subr.bf16.mxu0 0
      %1104 = vmatpush1.bf16.msra.mxu0 %v1087
      %1105 = vmatprep.subr.bf16.mxu0 0
      %1106 = vmatpush2.bf16.msra.mxu0 0
      %1107 = vmatprep.subr.bf16.mxu0 0
      %1108 = vmatpush2.bf16.msra.mxu0 0
      %1109 = vmatprep.subr.bf16.mxu0 0
      %1110 = vmatpush2.bf16.msra.mxu0 0
      %1111 = vmatprep.subr.bf16.mxu0 0
      %1112 = vmatpush2.bf16.msra.mxu0 0
      %1113 = vmatprep.subr.bf16.mxu0 0
      %1114 = vmatpush2.bf16.msra.mxu0 0
      %1115 = vmatprep.subr.bf16.mxu0 0
      %1116 = vmatpush2.bf16.msra.mxu0 0
      %1117 = vmatprep.subr.bf16.mxu0 0
      %1118 = vmatpush2.bf16.msra.mxu0 0
      %1119 = vmatprep.subr.bf16.mxu0 0
      %1120 = vmatpush2.bf16.msra.mxu0 0
      %1121 = vmatprep.mubr.bf16.mxu0 0
      %1122 = vmatmul.mubr.bf16.gmra.mxu0 %v1075
      %v1123 = vpop.f32.mrf.mxu0
      %v1124 = vadd.f32 0.0, %v1123
      %v1125 = vpop.f32.mrf.mxu0
      %v1126 = vpop.f32.mrf.mxu0
      %v1127 = vadd.f32 0.0, %v1126
      %v1128 = vpop.f32.mrf.mxu0
      %1129 = vmatprep.mubr.bf16.mxu0 0
      %1130 = vmatmul.mubr.bf16.gmra.mxu0 %v1078
      %v1131 = vpop.f32.mrf.mxu0
      %v1132 = vadd.f32 0.0, %v1131
      %v1133 = vpop.f32.mrf.mxu0
      %v1134 = vpop.f32.mrf.mxu0
      %v1135 = vadd.f32 0.0, %v1134
      %v1136 = vpop.f32.mrf.mxu0
      %1137 = vmatprep.mubr.bf16.mxu0 0
      %1138 = vmatmul.mubr.bf16.gmra.mxu0 %v1081
      %v1139 = vpop.f32.mrf.mxu0
      %v1140 = vadd.f32 0.0, %v1139
      %v1141 = vpop.f32.mrf.mxu0
      %v1142 = vpop.f32.mrf.mxu0
      %v1143 = vadd.f32 0.0, %v1142
      %v1144 = vpop.f32.mrf.mxu0
      %1145 = vmatprep.mubr.bf16.mxu0 0
      %1146 = vmatmul.mubr.bf16.gmra.mxu0 %v1084
      %v1147 = vpop.f32.mrf.mxu0
      %v1148 = vadd.f32 0.0, %v1147
      %v1149 = vpop.f32.mrf.mxu0
      %v1150 = vpop.f32.mrf.mxu0
      %v1151 = vadd.f32 0.0, %v1150
      %v1152 = vpop.f32.mrf.mxu0
      %1153 = vdwg.mxu0
      %v1154 = vadd.f32 %v1052, %v1124
      %v1155 = vadd.f32 %v1053, %v1127
      %v1156 = vadd.f32 %v1054, %v1132
      %v1157 = vadd.f32 %v1055, %v1135
      %v1158 = vadd.f32 %v1056, %v1140
      %v1159 = vadd.f32 %v1057, %v1143
      %v1160 = vadd.f32 %v1058, %v1148
      %v1161 = vadd.f32 %v1059, %v1151
      %v1162 = vld [vmem:[%s555] sm:$0xff]
      %v1163 = vld [vmem:[%s555 + $0x10] sm:$0xff]
      %v1164 = vld [vmem:[%s555 + $0x20] sm:$0xff]
      %v1165 = vld [vmem:[%s555 + $0x30] sm:$0xff]
      %v1166 = vld [vmem:[%s555 + $0x40] sm:$0xff]
      %v1167 = vld [vmem:[%s555 + $0x50] sm:$0xff]
      %v1168 = vld [vmem:[%s555 + $0x60] sm:$0xff]
      %v1169 = vld [vmem:[%s555 + $0x70] sm:$0xff]
      %v1170 = vpack.c.bf16 %v1163, %v1162
      %v1171 = vpack.c.bf16 %v1165, %v1164
      %v1172 = vpack.c.bf16 %v1167, %v1166
      %v1173 = vpack.c.bf16 %v1169, %v1168
      %s1174 = scalar_lea.vmem %s3, 12
      %v1175 = vld [vmem:[%s1174] sm:$0x3]
      %v1177 = vsel %vm311, %v1170, 0
      %v1180 = vsel %vm311, %v1171, 0
      %v1183 = vsel %vm311, %v1172, 0
      %v1186 = vsel %vm311, %v1173, 0
      %v1189 = vsel %vm605, %v1175, 0
      %1191 = vmatprep.subr.bf16.mxu0 0
      %1192 = vmatpush1.bf16.msra.mxu0 0
      %1193 = vmatprep.subr.bf16.mxu0 0
      %1194 = vmatpush1.bf16.msra.mxu0 0
      %1195 = vmatprep.subr.bf16.mxu0 0
      %1196 = vmatpush1.bf16.msra.mxu0 0
      %1197 = vmatprep.subr.bf16.mxu0 0
      %1198 = vmatpush1.bf16.msra.mxu0 0
      %1199 = vmatprep.subr.bf16.mxu0 0
      %1200 = vmatpush1.bf16.msra.mxu0 0
      %1201 = vmatprep.subr.bf16.mxu0 0
      %1202 = vmatpush1.bf16.msra.mxu0 0
      %1203 = vmatprep.subr.bf16.mxu0 0
      %1204 = vmatpush1.bf16.msra.mxu0 0
      %1205 = vmatprep.subr.bf16.mxu0 0
      %1206 = vmatpush1.bf16.msra.mxu0 %v1189
      %1207 = vmatprep.subr.bf16.mxu0 0
      %1208 = vmatpush2.bf16.msra.mxu0 0
      %1209 = vmatprep.subr.bf16.mxu0 0
      %1210 = vmatpush2.bf16.msra.mxu0 0
      %1211 = vmatprep.subr.bf16.mxu0 0
      %1212 = vmatpush2.bf16.msra.mxu0 0
      %1213 = vmatprep.subr.bf16.mxu0 0
      %1214 = vmatpush2.bf16.msra.mxu0 0
      %1215 = vmatprep.subr.bf16.mxu0 0
      %1216 = vmatpush2.bf16.msra.mxu0 0
      %1217 = vmatprep.subr.bf16.mxu0 0
      %1218 = vmatpush2.bf16.msra.mxu0 0
      %1219 = vmatprep.subr.bf16.mxu0 0
      %1220 = vmatpush2.bf16.msra.mxu0 0
      %1221 = vmatprep.subr.bf16.mxu0 0
      %1222 = vmatpush2.bf16.msra.mxu0 0
      %1223 = vmatprep.mubr.bf16.mxu0 0
      %1224 = vmatmul.mubr.bf16.gmra.mxu0 %v1177
      %v1225 = vpop.f32.mrf.mxu0
      %v1226 = vadd.f32 0.0, %v1225
      %v1227 = vpop.f32.mrf.mxu0
      %v1228 = vpop.f32.mrf.mxu0
      %v1229 = vadd.f32 0.0, %v1228
      %v1230 = vpop.f32.mrf.mxu0
      %1231 = vmatprep.mubr.bf16.mxu0 0
      %1232 = vmatmul.mubr.bf16.gmra.mxu0 %v1180
      %v1233 = vpop.f32.mrf.mxu0
      %v1234 = vadd.f32 0.0, %v1233
      %v1235 = vpop.f32.mrf.mxu0
      %v1236 = vpop.f32.mrf.mxu0
      %v1237 = vadd.f32 0.0, %v1236
      %v1238 = vpop.f32.mrf.mxu0
      %1239 = vmatprep.mubr.bf16.mxu0 0
      %1240 = vmatmul.mubr.bf16.gmra.mxu0 %v1183
      %v1241 = vpop.f32.mrf.mxu0
      %v1242 = vadd.f32 0.0, %v1241
      %v1243 = vpop.f32.mrf.mxu0
      %v1244 = vpop.f32.mrf.mxu0
      %v1245 = vadd.f32 0.0, %v1244
      %v1246 = vpop.f32.mrf.mxu0
      %1247 = vmatprep.mubr.bf16.mxu0 0
      %1248 = vmatmul.mubr.bf16.gmra.mxu0 %v1186
      %v1249 = vpop.f32.mrf.mxu0
      %v1250 = vadd.f32 0.0, %v1249
      %v1251 = vpop.f32.mrf.mxu0
      %v1252 = vpop.f32.mrf.mxu0
      %v1253 = vadd.f32 0.0, %v1252
      %v1254 = vpop.f32.mrf.mxu0
      %1255 = vdwg.mxu0
      %v1256 = vadd.f32 %v1154, %v1226
      %v1257 = vadd.f32 %v1155, %v1229
      %v1258 = vadd.f32 %v1156, %v1234
      %v1259 = vadd.f32 %v1157, %v1237
      %v1260 = vadd.f32 %v1158, %v1242
      %v1261 = vadd.f32 %v1159, %v1245
      %v1262 = vadd.f32 %v1160, %v1250
      %v1263 = vadd.f32 %v1161, %v1253
      %v1264 = vld [vmem:[%s513 + $0x1] sm:$0xff]
      %v1265 = vld [vmem:[%s513 + $0x11] sm:$0xff]
      %v1266 = vld [vmem:[%s513 + $0x21] sm:$0xff]
      %v1267 = vld [vmem:[%s513 + $0x31] sm:$0xff]
      %v1268 = vld [vmem:[%s513 + $0x41] sm:$0xff]
      %v1269 = vld [vmem:[%s513 + $0x51] sm:$0xff]
      %v1270 = vld [vmem:[%s513 + $0x61] sm:$0xff]
      %v1271 = vld [vmem:[%s513 + $0x71] sm:$0xff]
      %v1272 = vpack.c.bf16 %v1265, %v1264
      %v1273 = vpack.c.bf16 %v1267, %v1266
      %v1274 = vpack.c.bf16 %v1269, %v1268
      %v1275 = vpack.c.bf16 %v1271, %v1270
      %s1276 = scalar_lea.vmem %s3, 14
      %v1277 = vld [vmem:[%s1276] sm:$0x3]
      %v1279 = vsel %vm311, %v1272, 0
      %v1282 = vsel %vm311, %v1273, 0
      %v1285 = vsel %vm311, %v1274, 0
      %v1288 = vsel %vm311, %v1275, 0
      %v1291 = vsel %vm605, %v1277, 0
      %1293 = vmatprep.subr.bf16.mxu0 0
      %1294 = vmatpush1.bf16.msra.mxu0 0
      %1295 = vmatprep.subr.bf16.mxu0 0
      %1296 = vmatpush1.bf16.msra.mxu0 0
      %1297 = vmatprep.subr.bf16.mxu0 0
      %1298 = vmatpush1.bf16.msra.mxu0 0
      %1299 = vmatprep.subr.bf16.mxu0 0
      %1300 = vmatpush1.bf16.msra.mxu0 0
      %1301 = vmatprep.subr.bf16.mxu0 0
      %1302 = vmatpush1.bf16.msra.mxu0 0
      %1303 = vmatprep.subr.bf16.mxu0 0
      %1304 = vmatpush1.bf16.msra.mxu0 0
      %1305 = vmatprep.subr.bf16.mxu0 0
      %1306 = vmatpush1.bf16.msra.mxu0 0
      %1307 = vmatprep.subr.bf16.mxu0 0
      %1308 = vmatpush1.bf16.msra.mxu0 %v1291
      %1309 = vmatprep.subr.bf16.mxu0 0
      %1310 = vmatpush2.bf16.msra.mxu0 0
      %1311 = vmatprep.subr.bf16.mxu0 0
      %1312 = vmatpush2.bf16.msra.mxu0 0
      %1313 = vmatprep.subr.bf16.mxu0 0
      %1314 = vmatpush2.bf16.msra.mxu0 0
      %1315 = vmatprep.subr.bf16.mxu0 0
      %1316 = vmatpush2.bf16.msra.mxu0 0
      %1317 = vmatprep.subr.bf16.mxu0 0
      %1318 = vmatpush2.bf16.msra.mxu0 0
      %1319 = vmatprep.subr.bf16.mxu0 0
      %1320 = vmatpush2.bf16.msra.mxu0 0
      %1321 = vmatprep.subr.bf16.mxu0 0
      %1322 = vmatpush2.bf16.msra.mxu0 0
      %1323 = vmatprep.subr.bf16.mxu0 0
      %1324 = vmatpush2.bf16.msra.mxu0 0
      %1325 = vmatprep.mubr.bf16.mxu0 0
      %1326 = vmatmul.mubr.bf16.gmra.mxu0 %v1279
      %v1327 = vpop.f32.mrf.mxu0
      %v1328 = vadd.f32 0.0, %v1327
      %v1329 = vpop.f32.mrf.mxu0
      %v1330 = vpop.f32.mrf.mxu0
      %v1331 = vadd.f32 0.0, %v1330
      %v1332 = vpop.f32.mrf.mxu0
      %1333 = vmatprep.mubr.bf16.mxu0 0
      %1334 = vmatmul.mubr.bf16.gmra.mxu0 %v1282
      %v1335 = vpop.f32.mrf.mxu0
      %v1336 = vadd.f32 0.0, %v1335
      %v1337 = vpop.f32.mrf.mxu0
      %v1338 = vpop.f32.mrf.mxu0
      %v1339 = vadd.f32 0.0, %v1338
      %v1340 = vpop.f32.mrf.mxu0
      %1341 = vmatprep.mubr.bf16.mxu0 0
      %1342 = vmatmul.mubr.bf16.gmra.mxu0 %v1285
      %v1343 = vpop.f32.mrf.mxu0
      %v1344 = vadd.f32 0.0, %v1343
      %v1345 = vpop.f32.mrf.mxu0
      %v1346 = vpop.f32.mrf.mxu0
      %v1347 = vadd.f32 0.0, %v1346
      %v1348 = vpop.f32.mrf.mxu0
      %1349 = vmatprep.mubr.bf16.mxu0 0
      %1350 = vmatmul.mubr.bf16.gmra.mxu0 %v1288
      %v1351 = vpop.f32.mrf.mxu0
      %v1352 = vadd.f32 0.0, %v1351
      %v1353 = vpop.f32.mrf.mxu0
      %v1354 = vpop.f32.mrf.mxu0
      %v1355 = vadd.f32 0.0, %v1354
      %v1356 = vpop.f32.mrf.mxu0
      %1357 = vdwg.mxu0
      %v1358 = vadd.f32 %v1256, %v1328
      %v1359 = vadd.f32 %v1257, %v1331
      %v1360 = vadd.f32 %v1258, %v1336
      %v1361 = vadd.f32 %v1259, %v1339
      %v1362 = vadd.f32 %v1260, %v1344
      %v1363 = vadd.f32 %v1261, %v1347
      %v1364 = vadd.f32 %v1262, %v1352
      %v1365 = vadd.f32 %v1263, %v1355
      %v1366 = vld [vmem:[%s555 + $0x1] sm:$0xff]
      %v1367 = vld [vmem:[%s555 + $0x11] sm:$0xff]
      %v1368 = vld [vmem:[%s555 + $0x21] sm:$0xff]
      %v1369 = vld [vmem:[%s555 + $0x31] sm:$0xff]
      %v1370 = vld [vmem:[%s555 + $0x41] sm:$0xff]
      %v1371 = vld [vmem:[%s555 + $0x51] sm:$0xff]
      %v1372 = vld [vmem:[%s555 + $0x61] sm:$0xff]
      %v1373 = vld [vmem:[%s555 + $0x71] sm:$0xff]
      %v1374 = vpack.c.bf16 %v1367, %v1366
      %v1375 = vpack.c.bf16 %v1369, %v1368
      %v1376 = vpack.c.bf16 %v1371, %v1370
      %v1377 = vpack.c.bf16 %v1373, %v1372
      %s1378 = scalar_lea.vmem %s3, 16
      %v1379 = vld [vmem:[%s1378] sm:$0x3]
      %v1381 = vsel %vm311, %v1374, 0
      %v1384 = vsel %vm311, %v1375, 0
      %v1387 = vsel %vm311, %v1376, 0
      %v1390 = vsel %vm311, %v1377, 0
      %v1393 = vsel %vm605, %v1379, 0
      %1395 = vmatprep.subr.bf16.mxu0 0
      %1396 = vmatpush1.bf16.msra.mxu0 0
      %1397 = vmatprep.subr.bf16.mxu0 0
      %1398 = vmatpush1.bf16.msra.mxu0 0
      %1399 = vmatprep.subr.bf16.mxu0 0
      %1400 = vmatpush1.bf16.msra.mxu0 0
      %1401 = vmatprep.subr.bf16.mxu0 0
      %1402 = vmatpush1.bf16.msra.mxu0 0
      %1403 = vmatprep.subr.bf16.mxu0 0
      %1404 = vmatpush1.bf16.msra.mxu0 0
      %1405 = vmatprep.subr.bf16.mxu0 0
      %1406 = vmatpush1.bf16.msra.mxu0 0
      %1407 = vmatprep.subr.bf16.mxu0 0
      %1408 = vmatpush1.bf16.msra.mxu0 0
      %1409 = vmatprep.subr.bf16.mxu0 0
      %1410 = vmatpush1.bf16.msra.mxu0 %v1393
      %1411 = vmatprep.subr.bf16.mxu0 0
      %1412 = vmatpush2.bf16.msra.mxu0 0
      %1413 = vmatprep.subr.bf16.mxu0 0
      %1414 = vmatpush2.bf16.msra.mxu0 0
      %1415 = vmatprep.subr.bf16.mxu0 0
      %1416 = vmatpush2.bf16.msra.mxu0 0
      %1417 = vmatprep.subr.bf16.mxu0 0
      %1418 = vmatpush2.bf16.msra.mxu0 0
      %1419 = vmatprep.subr.bf16.mxu0 0
      %1420 = vmatpush2.bf16.msra.mxu0 0
      %1421 = vmatprep.subr.bf16.mxu0 0
      %1422 = vmatpush2.bf16.msra.mxu0 0
      %1423 = vmatprep.subr.bf16.mxu0 0
      %1424 = vmatpush2.bf16.msra.mxu0 0
      %1425 = vmatprep.subr.bf16.mxu0 0
      %1426 = vmatpush2.bf16.msra.mxu0 0
      %1427 = vmatprep.mubr.bf16.mxu0 0
      %1428 = vmatmul.mubr.bf16.gmra.mxu0 %v1381
      %v1429 = vpop.f32.mrf.mxu0
      %v1430 = vadd.f32 0.0, %v1429
      %v1431 = vpop.f32.mrf.mxu0
      %v1432 = vpop.f32.mrf.mxu0
      %v1433 = vadd.f32 0.0, %v1432
      %v1434 = vpop.f32.mrf.mxu0
      %1435 = vmatprep.mubr.bf16.mxu0 0
      %1436 = vmatmul.mubr.bf16.gmra.mxu0 %v1384
      %v1437 = vpop.f32.mrf.mxu0
      %v1438 = vadd.f32 0.0, %v1437
      %v1439 = vpop.f32.mrf.mxu0
      %v1440 = vpop.f32.mrf.mxu0
      %v1441 = vadd.f32 0.0, %v1440
      %v1442 = vpop.f32.mrf.mxu0
      %1443 = vmatprep.mubr.bf16.mxu0 0
      %1444 = vmatmul.mubr.bf16.gmra.mxu0 %v1387
      %v1445 = vpop.f32.mrf.mxu0
      %v1446 = vadd.f32 0.0, %v1445
      %v1447 = vpop.f32.mrf.mxu0
      %v1448 = vpop.f32.mrf.mxu0
      %v1449 = vadd.f32 0.0, %v1448
      %v1450 = vpop.f32.mrf.mxu0
      %1451 = vmatprep.mubr.bf16.mxu0 0
      %1452 = vmatmul.mubr.bf16.gmra.mxu0 %v1390
      %v1453 = vpop.f32.mrf.mxu0
      %v1454 = vadd.f32 0.0, %v1453
      %v1455 = vpop.f32.mrf.mxu0
      %v1456 = vpop.f32.mrf.mxu0
      %v1457 = vadd.f32 0.0, %v1456
      %v1458 = vpop.f32.mrf.mxu0
      %1459 = vdwg.mxu0
      %v1460 = vadd.f32 %v1358, %v1430
      %v1461 = vadd.f32 %v1359, %v1433
      %v1462 = vadd.f32 %v1360, %v1438
      %v1463 = vadd.f32 %v1361, %v1441
      %v1464 = vadd.f32 %v1362, %v1446
      %v1465 = vadd.f32 %v1363, %v1449
      %v1466 = vadd.f32 %v1364, %v1454
      %v1467 = vadd.f32 %v1365, %v1457
      %v1469 = vlaneseq
      %v1470 = vshrl.u32 %v1469, 7
      %v1471 = vsub.s32 0, %v1470
      %v1472 = vrot.slane %v309, %v1471
      %v1474 = vmul.f32 %v1460, %v1472
      %v1475 = vmul.f32 %v1461, %v1472
      %v1476 = vmul.f32 %v1462, %v1472
      %v1477 = vmul.f32 %v1463, %v1472
      %v1478 = vmul.f32 %v1464, %v1472
      %v1479 = vmul.f32 %v1465, %v1472
      %v1480 = vmul.f32 %v1466, %v1472
      %v1481 = vmul.f32 %v1467, %v1472
      %v1483 = vlaneseq
      %v1484 = vshrl.u32 %v1483, 7
      %v1485 = vsub.s32 0, %v1484
      %v1486 = vrot.slane %v310, %v1485
      %v1488 = vadd.f32 %v1474, %v1486
      %v1489 = vadd.f32 %v1475, %v1486
      %v1490 = vadd.f32 %v1476, %v1486
      %v1491 = vadd.f32 %v1477, %v1486
      %v1492 = vadd.f32 %v1478, %v1486
      %v1493 = vadd.f32 %v1479, %v1486
      %v1494 = vadd.f32 %v1480, %v1486
      %v1495 = vadd.f32 %v1481, %v1486
      %v1496 = vmax.f32 %v1488, 0.0
      %v1497 = vmax.f32 %v1489, 0.0
      %v1498 = vmax.f32 %v1490, 0.0
      %v1499 = vmax.f32 %v1491, 0.0
      %v1500 = vmax.f32 %v1492, 0.0
      %v1501 = vmax.f32 %v1493, 0.0
      %v1502 = vmax.f32 %v1494, 0.0
      %v1503 = vmax.f32 %v1495, 0.0
      %vm1504 = vcmask 64512
      %1505 = vst.msk [vmem:[#allocation3] sm:$0xff] %vm1504, 0.0
      %vm1506 = vcmask 58368
      %1507 = vst.msk [vmem:[#allocation3 + $0x8] sm:$0x3] %vm1506, 0.0
      %1508 = vst.msk [vmem:[#allocation3 + $0x10] sm:$0xff] %vm1504, 0.0
      %1509 = vst.msk [vmem:[#allocation3 + $0x18] sm:$0x3] %vm1506, 0.0
      %1510 = vst.msk [vmem:[#allocation3 + $0x20] sm:$0xff] %vm1504, 0.0
      %1511 = vst.msk [vmem:[#allocation3 + $0x28] sm:$0x3] %vm1506, 0.0
      %1512 = vst.msk [vmem:[#allocation3 + $0x30] sm:$0xff] %vm1504, 0.0
      %1513 = vst.msk [vmem:[#allocation3 + $0x38] sm:$0x3] %vm1506, 0.0
      %1514 = vst.msk [vmem:[#allocation3 + $0x40] sm:$0xff] %vm1504, 0.0
      %1515 = vst.msk [vmem:[#allocation3 + $0x48] sm:$0x3] %vm1506, 0.0
      %1516 = vst.msk [vmem:[#allocation3 + $0x50] sm:$0xff] %vm1504, 0.0
      %1517 = vst.msk [vmem:[#allocation3 + $0x58] sm:$0x3] %vm1506, 0.0
      %1518 = vst.msk [vmem:[#allocation3 + $0x60] sm:$0xff] %vm1504, 0.0
      %1519 = vst.msk [vmem:[#allocation3 + $0x68] sm:$0x3] %vm1506, 0.0
      %1520 = vst.msk [vmem:[#allocation3 + $0x70] sm:$0xff] %vm1504, 0.0
      %1521 = vst.msk [vmem:[#allocation3 + $0x78] sm:$0x3] %vm1506, 0.0
      %1522 = vst.msk [vmem:[#allocation3 + $0x80] sm:$0xff] %vm1504, 0.0
      %1523 = vst.msk [vmem:[#allocation3 + $0x88] sm:$0x3] %vm1506, 0.0
      %1524 = vst.msk [vmem:[#allocation3 + $0x90] sm:$0xff] %vm1504, 0.0
      %1525 = vst.msk [vmem:[#allocation3 + $0x98] sm:$0x3] %vm1506, 0.0
      %s1526 = scalar_lea.vmem [#allocation3], 16
      %1527 = vst.msk [vmem:[%s1526 + $0x1] sm:$0xff] %vm1504, %v1496
      %1528 = vst.msk [vmem:[%s1526 + $0x11] sm:$0xff] %vm1504, %v1497
      %1529 = vst.msk [vmem:[%s1526 + $0x21] sm:$0xff] %vm1504, %v1498
      %1530 = vst.msk [vmem:[%s1526 + $0x31] sm:$0xff] %vm1504, %v1499
      %1531 = vst.msk [vmem:[%s1526 + $0x41] sm:$0xff] %vm1504, %v1500
      %1532 = vst.msk [vmem:[%s1526 + $0x51] sm:$0xff] %vm1504, %v1501
      %1533 = vst.msk [vmem:[%s1526 + $0x61] sm:$0xff] %vm1504, %v1502
      %1534 = vst.msk [vmem:[%s1526 + $0x71] sm:$0xff] %vm1504, %v1503
      %v1535 = vpack.c.bf16 %v422, %v421
      %v1536 = vpack.c.bf16 %v424, %v423
      %v1537 = vpack.c.bf16 %v426, %v425
      %v1538 = vpack.c.bf16 %v428, %v427
      %v1539 = vld [vmem:[%s7] sm:$0x3]
      %v1540 = vld [vmem:[#allocation3] sm:$0xff]
      %v1541 = vld [vmem:[#allocation3 + $0x10] sm:$0xff]
      %v1542 = vld [vmem:[#allocation3 + $0x20] sm:$0xff]
      %v1543 = vld [vmem:[#allocation3 + $0x30] sm:$0xff]
      %v1544 = vld [vmem:[#allocation3 + $0x40] sm:$0xff]
      %v1545 = vld [vmem:[#allocation3 + $0x50] sm:$0xff]
      %v1546 = vld [vmem:[#allocation3 + $0x60] sm:$0xff]
      %v1547 = vld [vmem:[#allocation3 + $0x70] sm:$0xff]
      %v1548 = vpack.c.bf16 %v1541, %v1540
      %v1549 = vpack.c.bf16 %v1543, %v1542
      %v1550 = vpack.c.bf16 %v1545, %v1544
      %v1551 = vpack.c.bf16 %v1547, %v1546
      %v1552 = vld [vmem:[%s6] sm:$0xf]
      %v1554 = vsel %vm1504, %v1548, 0
      %v1557 = vsel %vm1504, %v1549, 0
      %v1560 = vsel %vm1504, %v1550, 0
      %v1563 = vsel %vm1504, %v1551, 0
      %vm1565 = vcmask 1043456
      %v1567 = vsel %vm1565, %v1552, 0
      %1569 = vmatprep.subr.bf16.mxu0 0
      %1570 = vmatpush1.bf16.msra.mxu0 0
      %1571 = vmatprep.subr.bf16.mxu0 0
      %1572 = vmatpush1.bf16.msra.mxu0 0
      %1573 = vmatprep.subr.bf16.mxu0 0
      %1574 = vmatpush1.bf16.msra.mxu0 0
      %1575 = vmatprep.subr.bf16.mxu0 0
      %1576 = vmatpush1.bf16.msra.mxu0 0
      %1577 = vmatprep.subr.bf16.mxu0 0
      %1578 = vmatpush1.bf16.msra.mxu0 0
      %1579 = vmatprep.subr.bf16.mxu0 0
      %1580 = vmatpush1.bf16.msra.mxu0 0
      %1581 = vmatprep.subr.bf16.mxu0 0
      %1582 = vmatpush1.bf16.msra.mxu0 0
      %1583 = vmatprep.subr.bf16.mxu0 0
      %1584 = vmatpush1.bf16.msra.mxu0 %v1567
      %1585 = vmatprep.subr.bf16.mxu0 0
      %1586 = vmatpush2.bf16.msra.mxu0 0
      %1587 = vmatprep.subr.bf16.mxu0 0
      %1588 = vmatpush2.bf16.msra.mxu0 0
      %1589 = vmatprep.subr.bf16.mxu0 0
      %1590 = vmatpush2.bf16.msra.mxu0 0
      %1591 = vmatprep.subr.bf16.mxu0 0
      %1592 = vmatpush2.bf16.msra.mxu0 0
      %1593 = vmatprep.subr.bf16.mxu0 0
      %1594 = vmatpush2.bf16.msra.mxu0 0
      %1595 = vmatprep.subr.bf16.mxu0 0
      %1596 = vmatpush2.bf16.msra.mxu0 0
      %1597 = vmatprep.subr.bf16.mxu0 0
      %1598 = vmatpush2.bf16.msra.mxu0 0
      %1599 = vmatprep.subr.bf16.mxu0 0
      %1600 = vmatpush2.bf16.msra.mxu0 0
      %1601 = vmatprep.mubr.bf16.mxu0 0
      %1602 = vmatmul.mubr.bf16.gmra.mxu0 %v1554
      %v1603 = vpop.f32.mrf.mxu0
      %v1604 = vadd.f32 0.0, %v1603
      %v1605 = vpop.f32.mrf.mxu0
      %v1606 = vpop.f32.mrf.mxu0
      %v1607 = vadd.f32 0.0, %v1606
      %v1608 = vpop.f32.mrf.mxu0
      %1609 = vmatprep.mubr.bf16.mxu0 0
      %1610 = vmatmul.mubr.bf16.gmra.mxu0 %v1557
      %v1611 = vpop.f32.mrf.mxu0
      %v1612 = vadd.f32 0.0, %v1611
      %v1613 = vpop.f32.mrf.mxu0
      %v1614 = vpop.f32.mrf.mxu0
      %v1615 = vadd.f32 0.0, %v1614
      %v1616 = vpop.f32.mrf.mxu0
      %1617 = vmatprep.mubr.bf16.mxu0 0
      %1618 = vmatmul.mubr.bf16.gmra.mxu0 %v1560
      %v1619 = vpop.f32.mrf.mxu0
      %v1620 = vadd.f32 0.0, %v1619
      %v1621 = vpop.f32.mrf.mxu0
      %v1622 = vpop.f32.mrf.mxu0
      %v1623 = vadd.f32 0.0, %v1622
      %v1624 = vpop.f32.mrf.mxu0
      %1625 = vmatprep.mubr.bf16.mxu0 0
      %1626 = vmatmul.mubr.bf16.gmra.mxu0 %v1563
      %v1627 = vpop.f32.mrf.mxu0
      %v1628 = vadd.f32 0.0, %v1627
      %v1629 = vpop.f32.mrf.mxu0
      %v1630 = vpop.f32.mrf.mxu0
      %v1631 = vadd.f32 0.0, %v1630
      %v1632 = vpop.f32.mrf.mxu0
      %1633 = vdwg.mxu0
      %v1635 = vsel %vm311, %v1535, 0
      %v1638 = vsel %vm311, %v1536, 0
      %v1641 = vsel %vm311, %v1537, 0
      %v1644 = vsel %vm311, %v1538, 0
      %v1647 = vsel %vm605, %v1539, 0
      %1649 = vmatprep.subr.bf16.mxu0 0
      %1650 = vmatpush1.bf16.msra.mxu0 0
      %1651 = vmatprep.subr.bf16.mxu0 0
      %1652 = vmatpush1.bf16.msra.mxu0 0
      %1653 = vmatprep.subr.bf16.mxu0 0
      %1654 = vmatpush1.bf16.msra.mxu0 0
      %1655 = vmatprep.subr.bf16.mxu0 0
      %1656 = vmatpush1.bf16.msra.mxu0 0
      %1657 = vmatprep.subr.bf16.mxu0 0
      %1658 = vmatpush1.bf16.msra.mxu0 0
      %1659 = vmatprep.subr.bf16.mxu0 0
      %1660 = vmatpush1.bf16.msra.mxu0 0
      %1661 = vmatprep.subr.bf16.mxu0 0
      %1662 = vmatpush1.bf16.msra.mxu0 0
      %1663 = vmatprep.subr.bf16.mxu0 0
      %1664 = vmatpush1.bf16.msra.mxu0 %v1647
      %1665 = vmatprep.subr.bf16.mxu0 0
      %1666 = vmatpush2.bf16.msra.mxu0 0
      %1667 = vmatprep.subr.bf16.mxu0 0
      %1668 = vmatpush2.bf16.msra.mxu0 0
      %1669 = vmatprep.subr.bf16.mxu0 0
      %1670 = vmatpush2.bf16.msra.mxu0 0
      %1671 = vmatprep.subr.bf16.mxu0 0
      %1672 = vmatpush2.bf16.msra.mxu0 0
      %1673 = vmatprep.subr.bf16.mxu0 0
      %1674 = vmatpush2.bf16.msra.mxu0 0
      %1675 = vmatprep.subr.bf16.mxu0 0
      %1676 = vmatpush2.bf16.msra.mxu0 0
      %1677 = vmatprep.subr.bf16.mxu0 0
      %1678 = vmatpush2.bf16.msra.mxu0 0
      %1679 = vmatprep.subr.bf16.mxu0 0
      %1680 = vmatpush2.bf16.msra.mxu0 0
      %1681 = vmatprep.mubr.bf16.mxu0 0
      %1682 = vmatmul.mubr.bf16.gmra.mxu0 %v1635
      %v1683 = vpop.f32.mrf.mxu0
      %v1684 = vadd.f32 %v1604, %v1683
      %v1685 = vpop.f32.mrf.mxu0
      %v1686 = vpop.f32.mrf.mxu0
      %v1687 = vadd.f32 %v1607, %v1686
      %v1688 = vpop.f32.mrf.mxu0
      %1689 = vmatprep.mubr.bf16.mxu0 0
      %1690 = vmatmul.mubr.bf16.gmra.mxu0 %v1638
      %v1691 = vpop.f32.mrf.mxu0
      %v1692 = vadd.f32 %v1612, %v1691
      %v1693 = vpop.f32.mrf.mxu0
      %v1694 = vpop.f32.mrf.mxu0
      %v1695 = vadd.f32 %v1615, %v1694
      %v1696 = vpop.f32.mrf.mxu0
      %1697 = vmatprep.mubr.bf16.mxu0 0
      %1698 = vmatmul.mubr.bf16.gmra.mxu0 %v1641
      %v1699 = vpop.f32.mrf.mxu0
      %v1700 = vadd.f32 %v1620, %v1699
      %v1701 = vpop.f32.mrf.mxu0
      %v1702 = vpop.f32.mrf.mxu0
      %v1703 = vadd.f32 %v1623, %v1702
      %v1704 = vpop.f32.mrf.mxu0
      %1705 = vmatprep.mubr.bf16.mxu0 0
      %1706 = vmatmul.mubr.bf16.gmra.mxu0 %v1644
      %v1707 = vpop.f32.mrf.mxu0
      %v1708 = vadd.f32 %v1628, %v1707
      %v1709 = vpop.f32.mrf.mxu0
      %v1710 = vpop.f32.mrf.mxu0
      %v1711 = vadd.f32 %v1631, %v1710
      %v1712 = vpop.f32.mrf.mxu0
      %1713 = vdwg.mxu0
      %v1714 = vld [vmem:[#allocation3 + $0x1] sm:$0xff]
      %v1715 = vld [vmem:[#allocation3 + $0x11] sm:$0xff]
      %v1716 = vld [vmem:[#allocation3 + $0x21] sm:$0xff]
      %v1717 = vld [vmem:[#allocation3 + $0x31] sm:$0xff]
      %v1718 = vld [vmem:[#allocation3 + $0x41] sm:$0xff]
      %v1719 = vld [vmem:[#allocation3 + $0x51] sm:$0xff]
      %v1720 = vld [vmem:[#allocation3 + $0x61] sm:$0xff]
      %v1721 = vld [vmem:[#allocation3 + $0x71] sm:$0xff]
      %v1722 = vpack.c.bf16 %v1715, %v1714
      %v1723 = vpack.c.bf16 %v1717, %v1716
      %v1724 = vpack.c.bf16 %v1719, %v1718
      %v1725 = vpack.c.bf16 %v1721, %v1720
      %s1726 = scalar_lea.vmem %s6, 4
      %v1727 = vld [vmem:[%s1726] sm:$0xf]
      %v1729 = vsel %vm1504, %v1722, 0
      %v1732 = vsel %vm1504, %v1723, 0
      %v1735 = vsel %vm1504, %v1724, 0
      %v1738 = vsel %vm1504, %v1725, 0
      %v1741 = vsel %vm1565, %v1727, 0
      %1743 = vmatprep.subr.bf16.mxu0 0
      %1744 = vmatpush1.bf16.msra.mxu0 0
      %1745 = vmatprep.subr.bf16.mxu0 0
      %1746 = vmatpush1.bf16.msra.mxu0 0
      %1747 = vmatprep.subr.bf16.mxu0 0
      %1748 = vmatpush1.bf16.msra.mxu0 0
      %1749 = vmatprep.subr.bf16.mxu0 0
      %1750 = vmatpush1.bf16.msra.mxu0 0
      %1751 = vmatprep.subr.bf16.mxu0 0
      %1752 = vmatpush1.bf16.msra.mxu0 0
      %1753 = vmatprep.subr.bf16.mxu0 0
      %1754 = vmatpush1.bf16.msra.mxu0 0
      %1755 = vmatprep.subr.bf16.mxu0 0
      %1756 = vmatpush1.bf16.msra.mxu0 0
      %1757 = vmatprep.subr.bf16.mxu0 0
      %1758 = vmatpush1.bf16.msra.mxu0 %v1741
      %1759 = vmatprep.subr.bf16.mxu0 0
      %1760 = vmatpush2.bf16.msra.mxu0 0
      %1761 = vmatprep.subr.bf16.mxu0 0
      %1762 = vmatpush2.bf16.msra.mxu0 0
      %1763 = vmatprep.subr.bf16.mxu0 0
      %1764 = vmatpush2.bf16.msra.mxu0 0
      %1765 = vmatprep.subr.bf16.mxu0 0
      %1766 = vmatpush2.bf16.msra.mxu0 0
      %1767 = vmatprep.subr.bf16.mxu0 0
      %1768 = vmatpush2.bf16.msra.mxu0 0
      %1769 = vmatprep.subr.bf16.mxu0 0
      %1770 = vmatpush2.bf16.msra.mxu0 0
      %1771 = vmatprep.subr.bf16.mxu0 0
      %1772 = vmatpush2.bf16.msra.mxu0 0
      %1773 = vmatprep.subr.bf16.mxu0 0
      %1774 = vmatpush2.bf16.msra.mxu0 0
      %1775 = vmatprep.mubr.bf16.mxu0 0
      %1776 = vmatmul.mubr.bf16.gmra.mxu0 %v1729
      %v1777 = vpop.f32.mrf.mxu0
      %v1778 = vadd.f32 0.0, %v1777
      %v1779 = vpop.f32.mrf.mxu0
      %v1780 = vpop.f32.mrf.mxu0
      %v1781 = vadd.f32 0.0, %v1780
      %v1782 = vpop.f32.mrf.mxu0
      %1783 = vmatprep.mubr.bf16.mxu0 0
      %1784 = vmatmul.mubr.bf16.gmra.mxu0 %v1732
      %v1785 = vpop.f32.mrf.mxu0
      %v1786 = vadd.f32 0.0, %v1785
      %v1787 = vpop.f32.mrf.mxu0
      %v1788 = vpop.f32.mrf.mxu0
      %v1789 = vadd.f32 0.0, %v1788
      %v1790 = vpop.f32.mrf.mxu0
      %1791 = vmatprep.mubr.bf16.mxu0 0
      %1792 = vmatmul.mubr.bf16.gmra.mxu0 %v1735
      %v1793 = vpop.f32.mrf.mxu0
      %v1794 = vadd.f32 0.0, %v1793
      %v1795 = vpop.f32.mrf.mxu0
      %v1796 = vpop.f32.mrf.mxu0
      %v1797 = vadd.f32 0.0, %v1796
      %v1798 = vpop.f32.mrf.mxu0
      %1799 = vmatprep.mubr.bf16.mxu0 0
      %1800 = vmatmul.mubr.bf16.gmra.mxu0 %v1738
      %v1801 = vpop.f32.mrf.mxu0
      %v1802 = vadd.f32 0.0, %v1801
      %v1803 = vpop.f32.mrf.mxu0
      %v1804 = vpop.f32.mrf.mxu0
      %v1805 = vadd.f32 0.0, %v1804
      %v1806 = vpop.f32.mrf.mxu0
      %1807 = vdwg.mxu0
      %v1808 = vadd.f32 %v1684, %v1778
      %v1809 = vadd.f32 %v1687, %v1781
      %v1810 = vadd.f32 %v1692, %v1786
      %v1811 = vadd.f32 %v1695, %v1789
      %v1812 = vadd.f32 %v1700, %v1794
      %v1813 = vadd.f32 %v1703, %v1797
      %v1814 = vadd.f32 %v1708, %v1802
      %v1815 = vadd.f32 %v1711, %v1805
      %v1816 = vld [vmem:[#allocation3 + $0x2] sm:$0xff]
      %v1817 = vld [vmem:[#allocation3 + $0x12] sm:$0xff]
      %v1818 = vld [vmem:[#allocation3 + $0x22] sm:$0xff]
      %v1819 = vld [vmem:[#allocation3 + $0x32] sm:$0xff]
      %v1820 = vld [vmem:[#allocation3 + $0x42] sm:$0xff]
      %v1821 = vld [vmem:[#allocation3 + $0x52] sm:$0xff]
      %v1822 = vld [vmem:[#allocation3 + $0x62] sm:$0xff]
      %v1823 = vld [vmem:[#allocation3 + $0x72] sm:$0xff]
      %v1824 = vpack.c.bf16 %v1817, %v1816
      %v1825 = vpack.c.bf16 %v1819, %v1818
      %v1826 = vpack.c.bf16 %v1821, %v1820
      %v1827 = vpack.c.bf16 %v1823, %v1822
      %s1828 = scalar_lea.vmem %s6, 8
      %v1829 = vld [vmem:[%s1828] sm:$0xf]
      %v1831 = vsel %vm1504, %v1824, 0
      %v1834 = vsel %vm1504, %v1825, 0
      %v1837 = vsel %vm1504, %v1826, 0
      %v1840 = vsel %vm1504, %v1827, 0
      %v1843 = vsel %vm1565, %v1829, 0
      %1845 = vmatprep.subr.bf16.mxu0 0
      %1846 = vmatpush1.bf16.msra.mxu0 0
      %1847 = vmatprep.subr.bf16.mxu0 0
      %1848 = vmatpush1.bf16.msra.mxu0 0
      %1849 = vmatprep.subr.bf16.mxu0 0
      %1850 = vmatpush1.bf16.msra.mxu0 0
      %1851 = vmatprep.subr.bf16.mxu0 0
      %1852 = vmatpush1.bf16.msra.mxu0 0
      %1853 = vmatprep.subr.bf16.mxu0 0
      %1854 = vmatpush1.bf16.msra.mxu0 0
      %1855 = vmatprep.subr.bf16.mxu0 0
      %1856 = vmatpush1.bf16.msra.mxu0 0
      %1857 = vmatprep.subr.bf16.mxu0 0
      %1858 = vmatpush1.bf16.msra.mxu0 0
      %1859 = vmatprep.subr.bf16.mxu0 0
      %1860 = vmatpush1.bf16.msra.mxu0 %v1843
      %1861 = vmatprep.subr.bf16.mxu0 0
      %1862 = vmatpush2.bf16.msra.mxu0 0
      %1863 = vmatprep.subr.bf16.mxu0 0
      %1864 = vmatpush2.bf16.msra.mxu0 0
      %1865 = vmatprep.subr.bf16.mxu0 0
      %1866 = vmatpush2.bf16.msra.mxu0 0
      %1867 = vmatprep.subr.bf16.mxu0 0
      %1868 = vmatpush2.bf16.msra.mxu0 0
      %1869 = vmatprep.subr.bf16.mxu0 0
      %1870 = vmatpush2.bf16.msra.mxu0 0
      %1871 = vmatprep.subr.bf16.mxu0 0
      %1872 = vmatpush2.bf16.msra.mxu0 0
      %1873 = vmatprep.subr.bf16.mxu0 0
      %1874 = vmatpush2.bf16.msra.mxu0 0
      %1875 = vmatprep.subr.bf16.mxu0 0
      %1876 = vmatpush2.bf16.msra.mxu0 0
      %1877 = vmatprep.mubr.bf16.mxu0 0
      %1878 = vmatmul.mubr.bf16.gmra.mxu0 %v1831
      %v1879 = vpop.f32.mrf.mxu0
      %v1880 = vadd.f32 0.0, %v1879
      %v1881 = vpop.f32.mrf.mxu0
      %v1882 = vpop.f32.mrf.mxu0
      %v1883 = vadd.f32 0.0, %v1882
      %v1884 = vpop.f32.mrf.mxu0
      %1885 = vmatprep.mubr.bf16.mxu0 0
      %1886 = vmatmul.mubr.bf16.gmra.mxu0 %v1834
      %v1887 = vpop.f32.mrf.mxu0
      %v1888 = vadd.f32 0.0, %v1887
      %v1889 = vpop.f32.mrf.mxu0
      %v1890 = vpop.f32.mrf.mxu0
      %v1891 = vadd.f32 0.0, %v1890
      %v1892 = vpop.f32.mrf.mxu0
      %1893 = vmatprep.mubr.bf16.mxu0 0
      %1894 = vmatmul.mubr.bf16.gmra.mxu0 %v1837
      %v1895 = vpop.f32.mrf.mxu0
      %v1896 = vadd.f32 0.0, %v1895
      %v1897 = vpop.f32.mrf.mxu0
      %v1898 = vpop.f32.mrf.mxu0
      %v1899 = vadd.f32 0.0, %v1898
      %v1900 = vpop.f32.mrf.mxu0
      %1901 = vmatprep.mubr.bf16.mxu0 0
      %1902 = vmatmul.mubr.bf16.gmra.mxu0 %v1840
      %v1903 = vpop.f32.mrf.mxu0
      %v1904 = vadd.f32 0.0, %v1903
      %v1905 = vpop.f32.mrf.mxu0
      %v1906 = vpop.f32.mrf.mxu0
      %v1907 = vadd.f32 0.0, %v1906
      %v1908 = vpop.f32.mrf.mxu0
      %1909 = vdwg.mxu0
      %v1910 = vadd.f32 %v1808, %v1880
      %v1911 = vadd.f32 %v1809, %v1883
      %v1912 = vadd.f32 %v1810, %v1888
      %v1913 = vadd.f32 %v1811, %v1891
      %v1914 = vadd.f32 %v1812, %v1896
      %v1915 = vadd.f32 %v1813, %v1899
      %v1916 = vadd.f32 %v1814, %v1904
      %v1917 = vadd.f32 %v1815, %v1907
      %v1918 = vld [vmem:[%s1526] sm:$0xff]
      %v1919 = vld [vmem:[%s1526 + $0x10] sm:$0xff]
      %v1920 = vld [vmem:[%s1526 + $0x20] sm:$0xff]
      %v1921 = vld [vmem:[%s1526 + $0x30] sm:$0xff]
      %v1922 = vld [vmem:[%s1526 + $0x40] sm:$0xff]
      %v1923 = vld [vmem:[%s1526 + $0x50] sm:$0xff]
      %v1924 = vld [vmem:[%s1526 + $0x60] sm:$0xff]
      %v1925 = vld [vmem:[%s1526 + $0x70] sm:$0xff]
      %v1926 = vpack.c.bf16 %v1919, %v1918
      %v1927 = vpack.c.bf16 %v1921, %v1920
      %v1928 = vpack.c.bf16 %v1923, %v1922
      %v1929 = vpack.c.bf16 %v1925, %v1924
      %s1930 = scalar_lea.vmem %s6, 12
      %v1931 = vld [vmem:[%s1930] sm:$0xf]
      %v1933 = vsel %vm1504, %v1926, 0
      %v1936 = vsel %vm1504, %v1927, 0
      %v1939 = vsel %vm1504, %v1928, 0
      %v1942 = vsel %vm1504, %v1929, 0
      %v1945 = vsel %vm1565, %v1931, 0
      %1947 = vmatprep.subr.bf16.mxu0 0
      %1948 = vmatpush1.bf16.msra.mxu0 0
      %1949 = vmatprep.subr.bf16.mxu0 0
      %1950 = vmatpush1.bf16.msra.mxu0 0
      %1951 = vmatprep.subr.bf16.mxu0 0
      %1952 = vmatpush1.bf16.msra.mxu0 0
      %1953 = vmatprep.subr.bf16.mxu0 0
      %1954 = vmatpush1.bf16.msra.mxu0 0
      %1955 = vmatprep.subr.bf16.mxu0 0
      %1956 = vmatpush1.bf16.msra.mxu0 0
      %1957 = vmatprep.subr.bf16.mxu0 0
      %1958 = vmatpush1.bf16.msra.mxu0 0
      %1959 = vmatprep.subr.bf16.mxu0 0
      %1960 = vmatpush1.bf16.msra.mxu0 0
      %1961 = vmatprep.subr.bf16.mxu0 0
      %1962 = vmatpush1.bf16.msra.mxu0 %v1945
      %1963 = vmatprep.subr.bf16.mxu0 0
      %1964 = vmatpush2.bf16.msra.mxu0 0
      %1965 = vmatprep.subr.bf16.mxu0 0
      %1966 = vmatpush2.bf16.msra.mxu0 0
      %1967 = vmatprep.subr.bf16.mxu0 0
      %1968 = vmatpush2.bf16.msra.mxu0 0
      %1969 = vmatprep.subr.bf16.mxu0 0
      %1970 = vmatpush2.bf16.msra.mxu0 0
      %1971 = vmatprep.subr.bf16.mxu0 0
      %1972 = vmatpush2.bf16.msra.mxu0 0
      %1973 = vmatprep.subr.bf16.mxu0 0
      %1974 = vmatpush2.bf16.msra.mxu0 0
      %1975 = vmatprep.subr.bf16.mxu0 0
      %1976 = vmatpush2.bf16.msra.mxu0 0
      %1977 = vmatprep.subr.bf16.mxu0 0
      %1978 = vmatpush2.bf16.msra.mxu0 0
      %1979 = vmatprep.mubr.bf16.mxu0 0
      %1980 = vmatmul.mubr.bf16.gmra.mxu0 %v1933
      %v1981 = vpop.f32.mrf.mxu0
      %v1982 = vadd.f32 0.0, %v1981
      %v1983 = vpop.f32.mrf.mxu0
      %v1984 = vpop.f32.mrf.mxu0
      %v1985 = vadd.f32 0.0, %v1984
      %v1986 = vpop.f32.mrf.mxu0
      %1987 = vmatprep.mubr.bf16.mxu0 0
      %1988 = vmatmul.mubr.bf16.gmra.mxu0 %v1936
      %v1989 = vpop.f32.mrf.mxu0
      %v1990 = vadd.f32 0.0, %v1989
      %v1991 = vpop.f32.mrf.mxu0
      %v1992 = vpop.f32.mrf.mxu0
      %v1993 = vadd.f32 0.0, %v1992
      %v1994 = vpop.f32.mrf.mxu0
      %1995 = vmatprep.mubr.bf16.mxu0 0
      %1996 = vmatmul.mubr.bf16.gmra.mxu0 %v1939
      %v1997 = vpop.f32.mrf.mxu0
      %v1998 = vadd.f32 0.0, %v1997
      %v1999 = vpop.f32.mrf.mxu0
      %v2000 = vpop.f32.mrf.mxu0
      %v2001 = vadd.f32 0.0, %v2000
      %v2002 = vpop.f32.mrf.mxu0
      %2003 = vmatprep.mubr.bf16.mxu0 0
      %2004 = vmatmul.mubr.bf16.gmra.mxu0 %v1942
      %v2005 = vpop.f32.mrf.mxu0
      %v2006 = vadd.f32 0.0, %v2005
      %v2007 = vpop.f32.mrf.mxu0
      %v2008 = vpop.f32.mrf.mxu0
      %v2009 = vadd.f32 0.0, %v2008
      %v2010 = vpop.f32.mrf.mxu0
      %2011 = vdwg.mxu0
      %v2012 = vadd.f32 %v1910, %v1982
      %v2013 = vadd.f32 %v1911, %v1985
      %v2014 = vadd.f32 %v1912, %v1990
      %v2015 = vadd.f32 %v1913, %v1993
      %v2016 = vadd.f32 %v1914, %v1998
      %v2017 = vadd.f32 %v1915, %v2001
      %v2018 = vadd.f32 %v1916, %v2006
      %v2019 = vadd.f32 %v1917, %v2009
      %v2020 = vld [vmem:[%s1526 + $0x1] sm:$0xff]
      %v2021 = vld [vmem:[%s1526 + $0x11] sm:$0xff]
      %v2022 = vld [vmem:[%s1526 + $0x21] sm:$0xff]
      %v2023 = vld [vmem:[%s1526 + $0x31] sm:$0xff]
      %v2024 = vld [vmem:[%s1526 + $0x41] sm:$0xff]
      %v2025 = vld [vmem:[%s1526 + $0x51] sm:$0xff]
      %v2026 = vld [vmem:[%s1526 + $0x61] sm:$0xff]
      %v2027 = vld [vmem:[%s1526 + $0x71] sm:$0xff]
      %v2028 = vpack.c.bf16 %v2021, %v2020
      %v2029 = vpack.c.bf16 %v2023, %v2022
      %v2030 = vpack.c.bf16 %v2025, %v2024
      %v2031 = vpack.c.bf16 %v2027, %v2026
      %s2032 = scalar_lea.vmem %s6, 16
      %v2033 = vld [vmem:[%s2032] sm:$0xf]
      %v2035 = vsel %vm1504, %v2028, 0
      %v2038 = vsel %vm1504, %v2029, 0
      %v2041 = vsel %vm1504, %v2030, 0
      %v2044 = vsel %vm1504, %v2031, 0
      %v2047 = vsel %vm1565, %v2033, 0
      %2049 = vmatprep.subr.bf16.mxu0 0
      %2050 = vmatpush1.bf16.msra.mxu0 0
      %2051 = vmatprep.subr.bf16.mxu0 0
      %2052 = vmatpush1.bf16.msra.mxu0 0
      %2053 = vmatprep.subr.bf16.mxu0 0
      %2054 = vmatpush1.bf16.msra.mxu0 0
      %2055 = vmatprep.subr.bf16.mxu0 0
      %2056 = vmatpush1.bf16.msra.mxu0 0
      %2057 = vmatprep.subr.bf16.mxu0 0
      %2058 = vmatpush1.bf16.msra.mxu0 0
      %2059 = vmatprep.subr.bf16.mxu0 0
      %2060 = vmatpush1.bf16.msra.mxu0 0
      %2061 = vmatprep.subr.bf16.mxu0 0
      %2062 = vmatpush1.bf16.msra.mxu0 0
      %2063 = vmatprep.subr.bf16.mxu0 0
      %2064 = vmatpush1.bf16.msra.mxu0 %v2047
      %2065 = vmatprep.subr.bf16.mxu0 0
      %2066 = vmatpush2.bf16.msra.mxu0 0
      %2067 = vmatprep.subr.bf16.mxu0 0
      %2068 = vmatpush2.bf16.msra.mxu0 0
      %2069 = vmatprep.subr.bf16.mxu0 0
      %2070 = vmatpush2.bf16.msra.mxu0 0
      %2071 = vmatprep.subr.bf16.mxu0 0
      %2072 = vmatpush2.bf16.msra.mxu0 0
      %2073 = vmatprep.subr.bf16.mxu0 0
      %2074 = vmatpush2.bf16.msra.mxu0 0
      %2075 = vmatprep.subr.bf16.mxu0 0
      %2076 = vmatpush2.bf16.msra.mxu0 0
      %2077 = vmatprep.subr.bf16.mxu0 0
      %2078 = vmatpush2.bf16.msra.mxu0 0
      %2079 = vmatprep.subr.bf16.mxu0 0
      %2080 = vmatpush2.bf16.msra.mxu0 0
      %2081 = vmatprep.mubr.bf16.mxu0 0
      %2082 = vmatmul.mubr.bf16.gmra.mxu0 %v2035
      %v2083 = vpop.f32.mrf.mxu0
      %v2084 = vadd.f32 0.0, %v2083
      %v2085 = vpop.f32.mrf.mxu0
      %v2086 = vpop.f32.mrf.mxu0
      %v2087 = vadd.f32 0.0, %v2086
      %v2088 = vpop.f32.mrf.mxu0
      %2089 = vmatprep.mubr.bf16.mxu0 0
      %2090 = vmatmul.mubr.bf16.gmra.mxu0 %v2038
      %v2091 = vpop.f32.mrf.mxu0
      %v2092 = vadd.f32 0.0, %v2091
      %v2093 = vpop.f32.mrf.mxu0
      %v2094 = vpop.f32.mrf.mxu0
      %v2095 = vadd.f32 0.0, %v2094
      %v2096 = vpop.f32.mrf.mxu0
      %2097 = vmatprep.mubr.bf16.mxu0 0
      %2098 = vmatmul.mubr.bf16.gmra.mxu0 %v2041
      %v2099 = vpop.f32.mrf.mxu0
      %v2100 = vadd.f32 0.0, %v2099
      %v2101 = vpop.f32.mrf.mxu0
      %v2102 = vpop.f32.mrf.mxu0
      %v2103 = vadd.f32 0.0, %v2102
      %v2104 = vpop.f32.mrf.mxu0
      %2105 = vmatprep.mubr.bf16.mxu0 0
      %2106 = vmatmul.mubr.bf16.gmra.mxu0 %v2044
      %v2107 = vpop.f32.mrf.mxu0
      %v2108 = vadd.f32 0.0, %v2107
      %v2109 = vpop.f32.mrf.mxu0
      %v2110 = vpop.f32.mrf.mxu0
      %v2111 = vadd.f32 0.0, %v2110
      %v2112 = vpop.f32.mrf.mxu0
      %2113 = vdwg.mxu0
      %v2114 = vadd.f32 %v2012, %v2084
      %v2115 = vadd.f32 %v2013, %v2087
      %v2116 = vadd.f32 %v2014, %v2092
      %v2117 = vadd.f32 %v2015, %v2095
      %v2118 = vadd.f32 %v2016, %v2100
      %v2119 = vadd.f32 %v2017, %v2103
      %v2120 = vadd.f32 %v2018, %v2108
      %v2121 = vadd.f32 %v2019, %v2111
      %v2122 = vld [vmem:[%s1526 + $0x2] sm:$0xff]
      %v2123 = vld [vmem:[%s1526 + $0x12] sm:$0xff]
      %v2124 = vld [vmem:[%s1526 + $0x22] sm:$0xff]
      %v2125 = vld [vmem:[%s1526 + $0x32] sm:$0xff]
      %v2126 = vld [vmem:[%s1526 + $0x42] sm:$0xff]
      %v2127 = vld [vmem:[%s1526 + $0x52] sm:$0xff]
      %v2128 = vld [vmem:[%s1526 + $0x62] sm:$0xff]
      %v2129 = vld [vmem:[%s1526 + $0x72] sm:$0xff]
      %v2130 = vpack.c.bf16 %v2123, %v2122
      %v2131 = vpack.c.bf16 %v2125, %v2124
      %v2132 = vpack.c.bf16 %v2127, %v2126
      %v2133 = vpack.c.bf16 %v2129, %v2128
      %s2134 = scalar_lea.vmem %s6, 20
      %v2135 = vld [vmem:[%s2134] sm:$0xf]
      %v2137 = vsel %vm1504, %v2130, 0
      %v2140 = vsel %vm1504, %v2131, 0
      %v2143 = vsel %vm1504, %v2132, 0
      %v2146 = vsel %vm1504, %v2133, 0
      %v2149 = vsel %vm1565, %v2135, 0
      %2151 = vmatprep.subr.bf16.mxu0 0
      %2152 = vmatpush1.bf16.msra.mxu0 0
      %2153 = vmatprep.subr.bf16.mxu0 0
      %2154 = vmatpush1.bf16.msra.mxu0 0
      %2155 = vmatprep.subr.bf16.mxu0 0
      %2156 = vmatpush1.bf16.msra.mxu0 0
      %2157 = vmatprep.subr.bf16.mxu0 0
      %2158 = vmatpush1.bf16.msra.mxu0 0
      %2159 = vmatprep.subr.bf16.mxu0 0
      %2160 = vmatpush1.bf16.msra.mxu0 0
      %2161 = vmatprep.subr.bf16.mxu0 0
      %2162 = vmatpush1.bf16.msra.mxu0 0
      %2163 = vmatprep.subr.bf16.mxu0 0
      %2164 = vmatpush1.bf16.msra.mxu0 0
      %2165 = vmatprep.subr.bf16.mxu0 0
      %2166 = vmatpush1.bf16.msra.mxu0 %v2149
      %2167 = vmatprep.subr.bf16.mxu0 0
      %2168 = vmatpush2.bf16.msra.mxu0 0
      %2169 = vmatprep.subr.bf16.mxu0 0
      %2170 = vmatpush2.bf16.msra.mxu0 0
      %2171 = vmatprep.subr.bf16.mxu0 0
      %2172 = vmatpush2.bf16.msra.mxu0 0
      %2173 = vmatprep.subr.bf16.mxu0 0
      %2174 = vmatpush2.bf16.msra.mxu0 0
      %2175 = vmatprep.subr.bf16.mxu0 0
      %2176 = vmatpush2.bf16.msra.mxu0 0
      %2177 = vmatprep.subr.bf16.mxu0 0
      %2178 = vmatpush2.bf16.msra.mxu0 0
      %2179 = vmatprep.subr.bf16.mxu0 0
      %2180 = vmatpush2.bf16.msra.mxu0 0
      %2181 = vmatprep.subr.bf16.mxu0 0
      %2182 = vmatpush2.bf16.msra.mxu0 0
      %2183 = vmatprep.mubr.bf16.mxu0 0
      %2184 = vmatmul.mubr.bf16.gmra.mxu0 %v2137
      %v2185 = vpop.f32.mrf.mxu0
      %v2186 = vadd.f32 0.0, %v2185
      %v2187 = vpop.f32.mrf.mxu0
      %v2188 = vpop.f32.mrf.mxu0
      %v2189 = vadd.f32 0.0, %v2188
      %v2190 = vpop.f32.mrf.mxu0
      %2191 = vmatprep.mubr.bf16.mxu0 0
      %2192 = vmatmul.mubr.bf16.gmra.mxu0 %v2140
      %v2193 = vpop.f32.mrf.mxu0
      %v2194 = vadd.f32 0.0, %v2193
      %v2195 = vpop.f32.mrf.mxu0
      %v2196 = vpop.f32.mrf.mxu0
      %v2197 = vadd.f32 0.0, %v2196
      %v2198 = vpop.f32.mrf.mxu0
      %2199 = vmatprep.mubr.bf16.mxu0 0
      %2200 = vmatmul.mubr.bf16.gmra.mxu0 %v2143
      %v2201 = vpop.f32.mrf.mxu0
      %v2202 = vadd.f32 0.0, %v2201
      %v2203 = vpop.f32.mrf.mxu0
      %v2204 = vpop.f32.mrf.mxu0
      %v2205 = vadd.f32 0.0, %v2204
      %v2206 = vpop.f32.mrf.mxu0
      %2207 = vmatprep.mubr.bf16.mxu0 0
      %2208 = vmatmul.mubr.bf16.gmra.mxu0 %v2146
      %v2209 = vpop.f32.mrf.mxu0
      %v2210 = vadd.f32 0.0, %v2209
      %v2211 = vpop.f32.mrf.mxu0
      %v2212 = vpop.f32.mrf.mxu0
      %v2213 = vadd.f32 0.0, %v2212
      %v2214 = vpop.f32.mrf.mxu0
      %2215 = vdwg.mxu0
      %v2216 = vadd.f32 %v2114, %v2186
      %v2217 = vadd.f32 %v2115, %v2189
      %v2218 = vadd.f32 %v2116, %v2194
      %v2219 = vadd.f32 %v2117, %v2197
      %v2220 = vadd.f32 %v2118, %v2202
      %v2221 = vadd.f32 %v2119, %v2205
      %v2222 = vadd.f32 %v2120, %v2210
      %v2223 = vadd.f32 %v2121, %v2213
      %s2224 = scalar_lea.vmem [#allocation3], 32
      %v2225 = vld [vmem:[%s2224] sm:$0xff]
      %v2226 = vld [vmem:[%s2224 + $0x10] sm:$0xff]
      %v2227 = vld [vmem:[%s2224 + $0x20] sm:$0xff]
      %v2228 = vld [vmem:[%s2224 + $0x30] sm:$0xff]
      %v2229 = vld [vmem:[%s2224 + $0x40] sm:$0xff]
      %v2230 = vld [vmem:[%s2224 + $0x50] sm:$0xff]
      %v2231 = vld [vmem:[%s2224 + $0x60] sm:$0xff]
      %v2232 = vld [vmem:[%s2224 + $0x70] sm:$0xff]
      %v2233 = vpack.c.bf16 %v2226, %v2225
      %v2234 = vpack.c.bf16 %v2228, %v2227
      %v2235 = vpack.c.bf16 %v2230, %v2229
      %v2236 = vpack.c.bf16 %v2232, %v2231
      %s2237 = scalar_lea.vmem %s6, 24
      %v2238 = vld [vmem:[%s2237] sm:$0xf]
      %v2240 = vsel %vm1504, %v2233, 0
      %v2243 = vsel %vm1504, %v2234, 0
      %v2246 = vsel %vm1504, %v2235, 0
      %v2249 = vsel %vm1504, %v2236, 0
      %v2252 = vsel %vm1565, %v2238, 0
      %2254 = vmatprep.subr.bf16.mxu0 0
      %2255 = vmatpush1.bf16.msra.mxu0 0
      %2256 = vmatprep.subr.bf16.mxu0 0
      %2257 = vmatpush1.bf16.msra.mxu0 0
      %2258 = vmatprep.subr.bf16.mxu0 0
      %2259 = vmatpush1.bf16.msra.mxu0 0
      %2260 = vmatprep.subr.bf16.mxu0 0
      %2261 = vmatpush1.bf16.msra.mxu0 0
      %2262 = vmatprep.subr.bf16.mxu0 0
      %2263 = vmatpush1.bf16.msra.mxu0 0
      %2264 = vmatprep.subr.bf16.mxu0 0
      %2265 = vmatpush1.bf16.msra.mxu0 0
      %2266 = vmatprep.subr.bf16.mxu0 0
      %2267 = vmatpush1.bf16.msra.mxu0 0
      %2268 = vmatprep.subr.bf16.mxu0 0
      %2269 = vmatpush1.bf16.msra.mxu0 %v2252
      %2270 = vmatprep.subr.bf16.mxu0 0
      %2271 = vmatpush2.bf16.msra.mxu0 0
      %2272 = vmatprep.subr.bf16.mxu0 0
      %2273 = vmatpush2.bf16.msra.mxu0 0
      %2274 = vmatprep.subr.bf16.mxu0 0
      %2275 = vmatpush2.bf16.msra.mxu0 0
      %2276 = vmatprep.subr.bf16.mxu0 0
      %2277 = vmatpush2.bf16.msra.mxu0 0
      %2278 = vmatprep.subr.bf16.mxu0 0
      %2279 = vmatpush2.bf16.msra.mxu0 0
      %2280 = vmatprep.subr.bf16.mxu0 0
      %2281 = vmatpush2.bf16.msra.mxu0 0
      %2282 = vmatprep.subr.bf16.mxu0 0
      %2283 = vmatpush2.bf16.msra.mxu0 0
      %2284 = vmatprep.subr.bf16.mxu0 0
      %2285 = vmatpush2.bf16.msra.mxu0 0
      %2286 = vmatprep.mubr.bf16.mxu0 0
      %2287 = vmatmul.mubr.bf16.gmra.mxu0 %v2240
      %v2288 = vpop.f32.mrf.mxu0
      %v2289 = vadd.f32 0.0, %v2288
      %v2290 = vpop.f32.mrf.mxu0
      %v2291 = vpop.f32.mrf.mxu0
      %v2292 = vadd.f32 0.0, %v2291
      %v2293 = vpop.f32.mrf.mxu0
      %2294 = vmatprep.mubr.bf16.mxu0 0
      %2295 = vmatmul.mubr.bf16.gmra.mxu0 %v2243
      %v2296 = vpop.f32.mrf.mxu0
      %v2297 = vadd.f32 0.0, %v2296
      %v2298 = vpop.f32.mrf.mxu0
      %v2299 = vpop.f32.mrf.mxu0
      %v2300 = vadd.f32 0.0, %v2299
      %v2301 = vpop.f32.mrf.mxu0
      %2302 = vmatprep.mubr.bf16.mxu0 0
      %2303 = vmatmul.mubr.bf16.gmra.mxu0 %v2246
      %v2304 = vpop.f32.mrf.mxu0
      %v2305 = vadd.f32 0.0, %v2304
      %v2306 = vpop.f32.mrf.mxu0
      %v2307 = vpop.f32.mrf.mxu0
      %v2308 = vadd.f32 0.0, %v2307
      %v2309 = vpop.f32.mrf.mxu0
      %2310 = vmatprep.mubr.bf16.mxu0 0
      %2311 = vmatmul.mubr.bf16.gmra.mxu0 %v2249
      %v2312 = vpop.f32.mrf.mxu0
      %v2313 = vadd.f32 0.0, %v2312
      %v2314 = vpop.f32.mrf.mxu0
      %v2315 = vpop.f32.mrf.mxu0
      %v2316 = vadd.f32 0.0, %v2315
      %v2317 = vpop.f32.mrf.mxu0
      %2318 = vdwg.mxu0
      %v2319 = vadd.f32 %v2216, %v2289
      %v2320 = vadd.f32 %v2217, %v2292
      %v2321 = vadd.f32 %v2218, %v2297
      %v2322 = vadd.f32 %v2219, %v2300
      %v2323 = vadd.f32 %v2220, %v2305
      %v2324 = vadd.f32 %v2221, %v2308
      %v2325 = vadd.f32 %v2222, %v2313
      %v2326 = vadd.f32 %v2223, %v2316
      %v2327 = vld [vmem:[%s2224 + $0x1] sm:$0xff]
      %v2328 = vld [vmem:[%s2224 + $0x11] sm:$0xff]
      %v2329 = vld [vmem:[%s2224 + $0x21] sm:$0xff]
      %v2330 = vld [vmem:[%s2224 + $0x31] sm:$0xff]
      %v2331 = vld [vmem:[%s2224 + $0x41] sm:$0xff]
      %v2332 = vld [vmem:[%s2224 + $0x51] sm:$0xff]
      %v2333 = vld [vmem:[%s2224 + $0x61] sm:$0xff]
      %v2334 = vld [vmem:[%s2224 + $0x71] sm:$0xff]
      %v2335 = vpack.c.bf16 %v2328, %v2327
      %v2336 = vpack.c.bf16 %v2330, %v2329
      %v2337 = vpack.c.bf16 %v2332, %v2331
      %v2338 = vpack.c.bf16 %v2334, %v2333
      %s2339 = scalar_lea.vmem %s6, 28
      %v2340 = vld [vmem:[%s2339] sm:$0xf]
      %v2342 = vsel %vm1504, %v2335, 0
      %v2345 = vsel %vm1504, %v2336, 0
      %v2348 = vsel %vm1504, %v2337, 0
      %v2351 = vsel %vm1504, %v2338, 0
      %v2354 = vsel %vm1565, %v2340, 0
      %2356 = vmatprep.subr.bf16.mxu0 0
      %2357 = vmatpush1.bf16.msra.mxu0 0
      %2358 = vmatprep.subr.bf16.mxu0 0
      %2359 = vmatpush1.bf16.msra.mxu0 0
      %2360 = vmatprep.subr.bf16.mxu0 0
      %2361 = vmatpush1.bf16.msra.mxu0 0
      %2362 = vmatprep.subr.bf16.mxu0 0
      %2363 = vmatpush1.bf16.msra.mxu0 0
      %2364 = vmatprep.subr.bf16.mxu0 0
      %2365 = vmatpush1.bf16.msra.mxu0 0
      %2366 = vmatprep.subr.bf16.mxu0 0
      %2367 = vmatpush1.bf16.msra.mxu0 0
      %2368 = vmatprep.subr.bf16.mxu0 0
      %2369 = vmatpush1.bf16.msra.mxu0 0
      %2370 = vmatprep.subr.bf16.mxu0 0
      %2371 = vmatpush1.bf16.msra.mxu0 %v2354
      %2372 = vmatprep.subr.bf16.mxu0 0
      %2373 = vmatpush2.bf16.msra.mxu0 0
      %2374 = vmatprep.subr.bf16.mxu0 0
      %2375 = vmatpush2.bf16.msra.mxu0 0
      %2376 = vmatprep.subr.bf16.mxu0 0
      %2377 = vmatpush2.bf16.msra.mxu0 0
      %2378 = vmatprep.subr.bf16.mxu0 0
      %2379 = vmatpush2.bf16.msra.mxu0 0
      %2380 = vmatprep.subr.bf16.mxu0 0
      %2381 = vmatpush2.bf16.msra.mxu0 0
      %2382 = vmatprep.subr.bf16.mxu0 0
      %2383 = vmatpush2.bf16.msra.mxu0 0
      %2384 = vmatprep.subr.bf16.mxu0 0
      %2385 = vmatpush2.bf16.msra.mxu0 0
      %2386 = vmatprep.subr.bf16.mxu0 0
      %2387 = vmatpush2.bf16.msra.mxu0 0
      %2388 = vmatprep.mubr.bf16.mxu0 0
      %2389 = vmatmul.mubr.bf16.gmra.mxu0 %v2342
      %v2390 = vpop.f32.mrf.mxu0
      %v2391 = vadd.f32 0.0, %v2390
      %v2392 = vpop.f32.mrf.mxu0
      %v2393 = vpop.f32.mrf.mxu0
      %v2394 = vadd.f32 0.0, %v2393
      %v2395 = vpop.f32.mrf.mxu0
      %2396 = vmatprep.mubr.bf16.mxu0 0
      %2397 = vmatmul.mubr.bf16.gmra.mxu0 %v2345
      %v2398 = vpop.f32.mrf.mxu0
      %v2399 = vadd.f32 0.0, %v2398
      %v2400 = vpop.f32.mrf.mxu0
      %v2401 = vpop.f32.mrf.mxu0
      %v2402 = vadd.f32 0.0, %v2401
      %v2403 = vpop.f32.mrf.mxu0
      %2404 = vmatprep.mubr.bf16.mxu0 0
      %2405 = vmatmul.mubr.bf16.gmra.mxu0 %v2348
      %v2406 = vpop.f32.mrf.mxu0
      %v2407 = vadd.f32 0.0, %v2406
      %v2408 = vpop.f32.mrf.mxu0
      %v2409 = vpop.f32.mrf.mxu0
      %v2410 = vadd.f32 0.0, %v2409
      %v2411 = vpop.f32.mrf.mxu0
      %2412 = vmatprep.mubr.bf16.mxu0 0
      %2413 = vmatmul.mubr.bf16.gmra.mxu0 %v2351
      %v2414 = vpop.f32.mrf.mxu0
      %v2415 = vadd.f32 0.0, %v2414
      %v2416 = vpop.f32.mrf.mxu0
      %v2417 = vpop.f32.mrf.mxu0
      %v2418 = vadd.f32 0.0, %v2417
      %v2419 = vpop.f32.mrf.mxu0
      %2420 = vdwg.mxu0
      %v2421 = vadd.f32 %v2319, %v2391
      %v2422 = vadd.f32 %v2320, %v2394
      %v2423 = vadd.f32 %v2321, %v2399
      %v2424 = vadd.f32 %v2322, %v2402
      %v2425 = vadd.f32 %v2323, %v2407
      %v2426 = vadd.f32 %v2324, %v2410
      %v2427 = vadd.f32 %v2325, %v2415
      %v2428 = vadd.f32 %v2326, %v2418
      %v2429 = vld [vmem:[%s2224 + $0x2] sm:$0xff]
      %v2430 = vld [vmem:[%s2224 + $0x12] sm:$0xff]
      %v2431 = vld [vmem:[%s2224 + $0x22] sm:$0xff]
      %v2432 = vld [vmem:[%s2224 + $0x32] sm:$0xff]
      %v2433 = vld [vmem:[%s2224 + $0x42] sm:$0xff]
      %v2434 = vld [vmem:[%s2224 + $0x52] sm:$0xff]
      %v2435 = vld [vmem:[%s2224 + $0x62] sm:$0xff]
      %v2436 = vld [vmem:[%s2224 + $0x72] sm:$0xff]
      %v2437 = vpack.c.bf16 %v2430, %v2429
      %v2438 = vpack.c.bf16 %v2432, %v2431
      %v2439 = vpack.c.bf16 %v2434, %v2433
      %v2440 = vpack.c.bf16 %v2436, %v2435
      %s2441 = scalar_lea.vmem %s6, 32
      %v2442 = vld [vmem:[%s2441] sm:$0xf]
      %v2444 = vsel %vm1504, %v2437, 0
      %v2447 = vsel %vm1504, %v2438, 0
      %v2450 = vsel %vm1504, %v2439, 0
      %v2453 = vsel %vm1504, %v2440, 0
      %v2456 = vsel %vm1565, %v2442, 0
      %2458 = vmatprep.subr.bf16.mxu0 0
      %2459 = vmatpush1.bf16.msra.mxu0 0
      %2460 = vmatprep.subr.bf16.mxu0 0
      %2461 = vmatpush1.bf16.msra.mxu0 0
      %2462 = vmatprep.subr.bf16.mxu0 0
      %2463 = vmatpush1.bf16.msra.mxu0 0
      %2464 = vmatprep.subr.bf16.mxu0 0
      %2465 = vmatpush1.bf16.msra.mxu0 0
      %2466 = vmatprep.subr.bf16.mxu0 0
      %2467 = vmatpush1.bf16.msra.mxu0 0
      %2468 = vmatprep.subr.bf16.mxu0 0
      %2469 = vmatpush1.bf16.msra.mxu0 0
      %2470 = vmatprep.subr.bf16.mxu0 0
      %2471 = vmatpush1.bf16.msra.mxu0 0
      %2472 = vmatprep.subr.bf16.mxu0 0
      %2473 = vmatpush1.bf16.msra.mxu0 %v2456
      %2474 = vmatprep.subr.bf16.mxu0 0
      %2475 = vmatpush2.bf16.msra.mxu0 0
      %2476 = vmatprep.subr.bf16.mxu0 0
      %2477 = vmatpush2.bf16.msra.mxu0 0
      %2478 = vmatprep.subr.bf16.mxu0 0
      %2479 = vmatpush2.bf16.msra.mxu0 0
      %2480 = vmatprep.subr.bf16.mxu0 0
      %2481 = vmatpush2.bf16.msra.mxu0 0
      %2482 = vmatprep.subr.bf16.mxu0 0
      %2483 = vmatpush2.bf16.msra.mxu0 0
      %2484 = vmatprep.subr.bf16.mxu0 0
      %2485 = vmatpush2.bf16.msra.mxu0 0
      %2486 = vmatprep.subr.bf16.mxu0 0
      %2487 = vmatpush2.bf16.msra.mxu0 0
      %2488 = vmatprep.subr.bf16.mxu0 0
      %2489 = vmatpush2.bf16.msra.mxu0 0
      %2490 = vmatprep.mubr.bf16.mxu0 0
      %2491 = vmatmul.mubr.bf16.gmra.mxu0 %v2444
      %v2492 = vpop.f32.mrf.mxu0
      %v2493 = vadd.f32 0.0, %v2492
      %v2494 = vpop.f32.mrf.mxu0
      %v2495 = vpop.f32.mrf.mxu0
      %v2496 = vadd.f32 0.0, %v2495
      %v2497 = vpop.f32.mrf.mxu0
      %2498 = vmatprep.mubr.bf16.mxu0 0
      %2499 = vmatmul.mubr.bf16.gmra.mxu0 %v2447
      %v2500 = vpop.f32.mrf.mxu0
      %v2501 = vadd.f32 0.0, %v2500
      %v2502 = vpop.f32.mrf.mxu0
      %v2503 = vpop.f32.mrf.mxu0
      %v2504 = vadd.f32 0.0, %v2503
      %v2505 = vpop.f32.mrf.mxu0
      %2506 = vmatprep.mubr.bf16.mxu0 0
      %2507 = vmatmul.mubr.bf16.gmra.mxu0 %v2450
      %v2508 = vpop.f32.mrf.mxu0
      %v2509 = vadd.f32 0.0, %v2508
      %v2510 = vpop.f32.mrf.mxu0
      %v2511 = vpop.f32.mrf.mxu0
      %v2512 = vadd.f32 0.0, %v2511
      %v2513 = vpop.f32.mrf.mxu0
      %2514 = vmatprep.mubr.bf16.mxu0 0
      %2515 = vmatmul.mubr.bf16.gmra.mxu0 %v2453
      %v2516 = vpop.f32.mrf.mxu0
      %v2517 = vadd.f32 0.0, %v2516
      %v2518 = vpop.f32.mrf.mxu0
      %v2519 = vpop.f32.mrf.mxu0
      %v2520 = vadd.f32 0.0, %v2519
      %v2521 = vpop.f32.mrf.mxu0
      %2522 = vdwg.mxu0
      %v2523 = vadd.f32 %v2421, %v2493
      %v2524 = vadd.f32 %v2422, %v2496
      %v2525 = vadd.f32 %v2423, %v2501
      %v2526 = vadd.f32 %v2424, %v2504
      %v2527 = vadd.f32 %v2425, %v2509
      %v2528 = vadd.f32 %v2426, %v2512
      %v2529 = vadd.f32 %v2427, %v2517
      %v2530 = vadd.f32 %v2428, %v2520
      %2531 = vst.msk [vmem:[%s305] sm:$0xff] %vm1504, %v2523
      %2532 = vst.msk [vmem:[%s305 + $0x8] sm:$0xff] %vm1504, %v2524
      %2533 = vst.msk [vmem:[%s305 + $0x10] sm:$0xff] %vm1504, %v2525
      %2534 = vst.msk [vmem:[%s305 + $0x18] sm:$0xff] %vm1504, %v2526
      %2535 = vst.msk [vmem:[%s305 + $0x20] sm:$0xff] %vm1504, %v2527
      %2536 = vst.msk [vmem:[%s305 + $0x28] sm:$0xff] %vm1504, %v2528
      %2537 = vst.msk [vmem:[%s305 + $0x30] sm:$0xff] %vm1504, %v2529
      %2538 = vst.msk [vmem:[%s305 + $0x38] sm:$0xff] %vm1504, %v2530
      %p2539 = scmp.lt.s32.totalorder %s19, 1
      %s2540 = scalar_select %p2539, %s19, 1
      %s2541 = smul.addr %s2540, 8
      %s2542 = smul.addr %s2541, 8
      %s2543 = scalar_lea.vmem %s8, %s2542
      // Predicated region
      $region53: #{_lambda_.2} parent=51 // pred_check
        %p2544 = pneg %p210
      $region54: #{_lambda_.2} parent=51 // pred_check_branch
        %2546 = sbr.rel (%p2544) target = $region56
      $region55: #{_lambda_.2} parent=51 // pred_region
        _
      $region56: #{_lambda_.2} parent=51 // pred_fallthru
        _
    $region52: #{_lambda_.2} parent=5 // pred_fallthru
      _
    %p2547 = scmp.le.s32.totalorder 2, %s14
    // Predicated region
    $region57: #{_lambda_.2} parent=5 // pred_check
      %p2548 = pneg %p2547
    $region58: #{_lambda_.2} parent=5 // pred_check_branch
      %2550 = sbr.rel (%p2548) target = $region60
    $region59: #{_lambda_.2} parent=5 // pred_region
      %s2551 = ssub.s32 %s14, 2
      // Predicated region
      $region61: #{_lambda_.2} parent=59 // pred_check
        %p2552 = pneg %p216
      $region62: #{_lambda_.2} parent=59 // pred_check_branch
        %2554 = sbr.rel (%p2552) target = $region64
      $region63: #{_lambda_.2} parent=59 // pred_region
        %p2555 = scmp.lt.s32.totalorder %s20, 1
        %s2556 = scalar_select %p2555, %s20, 1
        %s2557 = smul.addr %s2556, 8
        %s2558 = smul.addr %s2557, 8
        %s2559 = scalar_lea.vmem %s8, %s2558
      $region64: #{_lambda_.2} parent=59 // pred_fallthru
        _
    $region60: #{_lambda_.2} parent=5 // pred_fallthru
      _
  $region6: #{_lambda_.2} parent=0 // loop_footer
    %s18 = sadd.s32 1, %s14
  $region7: #{_lambda_.2} parent=0 // loop_footer_branch
    %13 = sbr.rel target = $region3
  $region8: #{_lambda_.2} parent=0 // loop_exit
    _

</llo_original>
